<compile_context>
chip_gen: v5e
topology: v5e:2x2
jax: 0.10.0
libtpu: 0.0.40
codegen_flags: <defaults>
</compile_context>

<pallas_src>
import functools

import jax
import jax.numpy as jnp
from jax import lax
from jax.experimental import pallas as pl
from jax.experimental.pallas import tpu as pltpu


# ----------------------------- Pallas kernel --------------------------------
def _bilstm_kernel(len_ref, xgf_ref, xgb_ref, wblk_ref,
                   out_f_ref, out_b_ref, hid_ref, c_ref):
    """One (batch-block, time-chunk) step of the fused bidirectional recurrence.

    len_ref:   (B_blk, 2H)          i32  lengths, pre-broadcast over lanes
    xgf_ref:   (tile_t, B_blk, 4H)  bf16 precomputed x-gates, fwd half, chunk t
    xgb_ref:   (tile_t, B_blk, 4H)  bf16 precomputed x-gates, bwd half, chunk nc-1-t
    wblk_ref:  (2H, 8H)             bf16 blockdiag(W_hh_f^T, W_hh_b^T)
    out_f_ref: (tile_t, B_blk, H)   f32  forward outputs for chunk t
    out_b_ref: (tile_t, B_blk, H)   f32  backward outputs for chunk nc-1-t
    hid_ref:   (B_blk, 2H)          f32  [h_fwd | h_bwd] final hidden; doubles as h carry
    c_ref:     (B_blk, 2H)          f32  VMEM scratch cell-state carry [c_fwd | c_bwd]
    """
    tile_t, b_blk, _ = out_f_ref.shape
    two_h = hid_ref.shape[1]
    H = two_h // 2

    t_idx = pl.program_id(1)
    nc = pl.num_programs(1)

    @pl.when(t_idx == 0)
    def _():
        hid_ref[...] = jnp.zeros_like(hid_ref)
        c_ref[...] = jnp.zeros_like(c_ref)

    # Hoisted out of the serial time loop.
    w_blk = wblk_ref[...]                                   # (2H, 8H) bf16
    len_v = len_ref[...]                                    # (B_blk, 2H) i32
    lane = lax.broadcasted_iota(jnp.int32, (b_blk, two_h), 1)
    is_fwd = lane < H                                       # first H lanes = fwd state
    t0_f = t_idx * tile_t                                   # fwd abs time at local s=0
    t0_b = (nc - 1 - t_idx) * tile_t                        # bwd chunk base time
    base = jnp.where(is_fwd, t0_f, t0_b + tile_t - 1)       # abs time at s=0, per lane
    sign = jnp.where(is_fwd, 1, -1)                         # fwd counts up, bwd down

    def step(s, carry):
        h, c = carry                                        # (B_blk, 2H) f32 each
        sb = tile_t - 1 - s                                 # backward local row

        # One fused recurrent matmul for both directions (block-diagonal weights).
        hw = jnp.dot(h.astype(w_blk.dtype), w_blk,
                     preferred_element_type=jnp.float32)    # (B_blk, 8H) f32
        gates_f = xgf_ref[s].astype(jnp.float32) + hw[:, :4 * H]
        gates_b = xgb_ref[sb].astype(jnp.float32) + hw[:, 4 * H:]

        def act(g, c_dir):
            # PyTorch gate order [i, f, g, o]; H is a multiple of 128 -> lane-aligned.
            i_g = jax.nn.sigmoid(g[:, 0 * H:1 * H])
            f_g = jax.nn.sigmoid(g[:, 1 * H:2 * H])
            g_g = jnp.tanh(g[:, 2 * H:3 * H])
            o_g = jax.nn.sigmoid(g[:, 3 * H:4 * H])
            c_new = f_g * c_dir + i_g * g_g
            return o_g * jnp.tanh(c_new), c_new

        h_f, c_f = act(gates_f, c[:, :H])
        h_b, c_b = act(gates_b, c[:, H:])
        h_new = jnp.concatenate([h_f, h_b], axis=-1)        # (B_blk, 2H)
        c_new = jnp.concatenate([c_f, c_b], axis=-1)

        m = (base + sign * s) < len_v                       # packed-sequence mask
        out_v = jnp.where(m, h_new, 0.0)                    # zero padded positions
        out_f_ref[s] = out_v[:, :H]
        out_b_ref[sb] = out_v[:, H:]
        return jnp.where(m, h_new, h), jnp.where(m, c_new, c)   # freeze past length

    h, c = lax.fori_loop(0, tile_t, step, (hid_ref[...], c_ref[...]), unroll=8)
    hid_ref[...] = h          # resident output block doubles as the h carry
    c_ref[...] = c


def _pick_tile_t(T, B, H, tile_t=None):
    """Largest time tile that keeps the double-buffered streams ~<= 24 MiB."""
    if tile_t is None:
        # Per time step streamed: bf16 xg in (B*8H*2B) + f32 out (B*2H*4B) = 24*B*H bytes.
        per_t = 24 * B * H
        tile_t = max(8, (24 << 20) // (2 * per_t))
        tile_t = min(tile_t, 512)
    tile_t = max(8, ((int(tile_t) + 7) // 8) * 8)           # multiple of 8 (loop unroll)
    tile_t = min(tile_t, ((T + 7) // 8) * 8)
    return tile_t


def _bilstm_pallas(xg, len_bcast, w_blk, *, hidden_dim, tile_t, batch_block=None):
    """Chunked bidirectional recurrence.

    xg:        (T_pad, B, 8H) bf16  precomputed input-gate activations [fwd 4H | bwd 4H]
    len_bcast: (B, 2H)        i32
    w_blk:     (2H, 8H)       bf16  blockdiag(W_hh_f^T, W_hh_b^T)
    """
    T_pad, B, G = xg.shape
    H = hidden_dim
    assert G == 8 * H and T_pad % tile_t == 0
    nc = T_pad // tile_t

    if batch_block is None:
        batch_block = B                       # one batch block (split for v7x megacore)
    assert B % batch_block == 0
    assert batch_block == B or batch_block % 8 == 0
    nb = B // batch_block

    grid_spec = pltpu.PrefetchScalarGridSpec(
        num_scalar_prefetch=0,
        grid=(nb, nc),
        in_specs=[
            pl.BlockSpec((batch_block, 2 * H), lambda b, t: (b, 0)),              # lengths
            pl.BlockSpec((tile_t, batch_block, 4 * H),
                         lambda b, t: (t, b, 0)),                                 # xg fwd half
            pl.BlockSpec((tile_t, batch_block, 4 * H),
                         lambda b, t: (nc - 1 - t, b, 1)),                        # xg bwd half
            pl.BlockSpec((2 * H, 8 * H), lambda b, t: (0, 0)),                    # W blockdiag
        ],
        out_specs=(
            pl.BlockSpec((tile_t, batch_block, H), lambda b, t: (t, b, 0)),       # out fwd
            pl.BlockSpec((tile_t, batch_block, H), lambda b, t: (nc - 1 - t, b, 0)),  # out bwd
            pl.BlockSpec((batch_block, 2 * H), lambda b, t: (b, 0)),              # final hidden
        ),
        scratch_shapes=[pltpu.VMEM((batch_block, 2 * H), jnp.float32)],           # c carry
    )
    out_shape = (
        jax.ShapeDtypeStruct((T_pad, B, H), jnp.float32),
        jax.ShapeDtypeStruct((T_pad, B, H), jnp.float32),
        jax.ShapeDtypeStruct((B, 2 * H), jnp.float32),
    )
    # TODO(synk): explicit MXU RHS staging (pltpu.matmul_push_rhs) across the time loop
    # is not applied here; add it if the bundle dump shows per-step weight re-staging.
    return pl.pallas_call(
        _bilstm_kernel,
        out_shape=out_shape,
        grid_spec=grid_spec,
        compiler_params=pltpu.CompilerParams(
            dimension_semantics=("parallel", "arbitrary"),
            vmem_limit_bytes=48 * 1024 * 1024,
        ),
    )(len_bcast, xg, xg, w_blk)


# ------------------------------ Encoder glue ---------------------------------
def init_params(key, config):
    V = config['vocab_size']
    E = config['embedding_dim']
    H = config['hidden_dim']
    pad_idx = config['pad_idx']
    keys = jax.random.split(key, 9)

    emb = jax.random.normal(keys[0], (V, E), jnp.float32)
    emb = emb.at[pad_idx].set(0.0)                      # padding_idx row is zero

    k = 1.0 / jnp.sqrt(H)
    def unif(kk, shape):
        return jax.random.uniform(kk, shape, jnp.float32, -k, k)

    return {
        'embedding': emb,
        'w_ih_f': unif(keys[1], (4 * H, E)), 'w_hh_f': unif(keys[2], (4 * H, H)),
        'b_ih_f': unif(keys[3], (4 * H,)),   'b_hh_f': unif(keys[4], (4 * H,)),
        'w_ih_b': unif(keys[5], (4 * H, E)), 'w_hh_b': unif(keys[6], (4 * H, H)),
        'b_ih_b': unif(keys[7], (4 * H,)),   'b_hh_b': unif(keys[8], (4 * H,)),
    }


def encoder_forward(params, text, text_lengths, *, tile_t=None, batch_block=None):
    """Mirrors Encoder.forward(text, text_lengths).  Fully jittable.

    text:         (B, T) int32 token ids
    text_lengths: (B,)   int32 valid lengths (must be >= 1, as pack_padded_sequence requires)
    returns: output (B, T, 2H)  -- padded positions are zero (caller may truncate to
                                   max(text_lengths), matching pad_packed_sequence),
             hidden (B, 2H) = cat(hidden[-2], hidden[-1])
    """
    H = params['w_hh_f'].shape[1]
    B, T = text.shape
    assert H % 128 == 0, "hidden_dim must be a multiple of 128 (lane-aligned gate slices)"
    bf16 = jnp.bfloat16

    tile_t = _pick_tile_t(T, B, H, tile_t)
    T_pad = -(-T // tile_t) * tile_t

    # Embedding lookup -> time-major bf16 activations, padded to T_pad BEFORE the
    # big GEMM (cheap bf16 pad instead of padding/slicing the large xg tensor).
    emb = jnp.take(params['embedding'], text, axis=0)               # (B, T, E)
    emb_tm = jnp.transpose(emb, (1, 0, 2)).astype(bf16)             # (T, B, E)
    if T_pad != T:
        emb_tm = jnp.pad(emb_tm, ((0, T_pad - T), (0, 0), (0, 0)))
    E = emb_tm.shape[-1]

    # Hoisted fused input projection for both directions: one (T_pad*B,E)x(E,8H) MXU
    # GEMM, biases folded in.  The xg stream is stored bf16; gate math stays f32.
    w_ih_cat = jnp.concatenate([params['w_ih_f'].T, params['w_ih_b'].T],
                               axis=1).astype(bf16)                 # (E, 8H)
    b_cat = jnp.concatenate([params['b_ih_f'] + params['b_hh_f'],
                             params['b_ih_b'] + params['b_hh_b']])[None, :]
    xg = (jnp.dot(emb_tm.reshape(T_pad * B, E), w_ih_cat,
                  preferred_element_type=jnp.float32) + b_cat)
    xg = xg.astype(bf16).reshape(T_pad, B, 8 * H)                   # [fwd 4H | bwd 4H]

    # Block-diagonal recurrent weights: one (B,2H)@(2H,8H) matmul per step serves both
    # directions (fills the 256-deep MXU contraction on v6e/v7x; acceptable on v5e).
    zero = jnp.zeros((H, 4 * H), jnp.float32)
    w_blk = jnp.concatenate(
        [jnp.concatenate([params['w_hh_f'].T, zero], axis=1),
         jnp.concatenate([zero, params['w_hh_b'].T], axis=1)], axis=0).astype(bf16)

    # Lengths pre-broadcast to a lane-dense (B, 2H) i32 tile (no (B,1) VMEM tile).
    len_bcast = jnp.broadcast_to(text_lengths.astype(jnp.int32)[:, None], (B, 2 * H))

    out_f, out_b, hidden = _bilstm_pallas(xg, len_bcast, w_blk, hidden_dim=H,
                                          tile_t=tile_t, batch_block=batch_block)
    if T_pad != T:
        out_f = out_f[:T]
        out_b = out_b[:T]
    # TODO(synk): the concat+transpose below are extra HBM passes; keep time-major or
    # fuse the layout change into the consumer if the downstream model allows it.
    output = jnp.transpose(jnp.concatenate([out_f, out_b], axis=-1), (1, 0, 2))
    return output, hidden


# ----------------------- pure-JAX reference (same numerics) ------------------
def _reference_forward(params, text, text_lengths):
    H = params['w_hh_f'].shape[1]
    B, T = text.shape
    bf16 = jnp.bfloat16

    emb = jnp.take(params['embedding'], text, axis=0)
    emb_tm = jnp.transpose(emb, (1, 0, 2)).astype(bf16)
    E = emb_tm.shape[-1]
    w_ih_cat = jnp.concatenate([params['w_ih_f'].T, params['w_ih_b'].T], axis=1).astype(bf16)
    b_cat = jnp.concatenate([params['b_ih_f'] + params['b_hh_f'],
                             params['b_ih_b'] + params['b_hh_b']])[None, :]
    xg = (jnp.dot(emb_tm.reshape(T * B, E), w_ih_cat,
                  preferred_element_type=jnp.float32) + b_cat)
    xg = xg.astype(bf16).reshape(T, B, 8 * H).astype(jnp.float32)
    xg_f, xg_b = xg[..., :4 * H], xg[..., 4 * H:]
    whh_f = params['w_hh_f'].T.astype(bf16)
    whh_b = params['w_hh_b'].T.astype(bf16)
    lens = text_lengths.astype(jnp.int32)[:, None]

    def make_cell(w):
        def cell(carry, inp):
            h, c = carry
            gx, t = inp
            gates = gx + jnp.dot(h.astype(bf16), w, preferred_element_type=jnp.float32)
            i_g = jax.nn.sigmoid(gates[:, :H]); f_g = jax.nn.sigmoid(gates[:, H:2 * H])
            g_g = jnp.tanh(gates[:, 2 * H:3 * H]); o_g = jax.nn.sigmoid(gates[:, 3 * H:])
            c_new = f_g * c + i_g * g_g
            h_new = o_g * jnp.tanh(c_new)
            m = t < lens
            out = jnp.where(m, h_new, 0.0)
            return (jnp.where(m, h_new, h), jnp.where(m, c_new, c)), out
        return cell

    z = jnp.zeros((B, H), jnp.float32)
    ts = jnp.arange(T, dtype=jnp.int32)
    (h_f, _), out_f = lax.scan(make_cell(whh_f), (z, z), (xg_f, ts))
    (h_b, _), out_b_rev = lax.scan(make_cell(whh_b), (z, z), (xg_b[::-1], ts[::-1]))
    out_b = out_b_rev[::-1]
    output = jnp.transpose(jnp.concatenate([out_f, out_b], axis=-1), (1, 0, 2))
    hidden = jnp.concatenate([h_f, h_b], axis=-1)
    return output, hidden


# --------------------------------- demo --------------------------------------
if __name__ == "__main__":
    # Small config consistent with the module (hidden kept a multiple of 128 for
    # lane-aligned gate slices / lane-dense output stores).
    config = {'vocab_size': 100, 'embedding_dim': 64, 'hidden_dim': 128,
              'num_layers': 1, 'dropout': 0.5, 'pad_idx': 0}
    B, T = 2, 24

    key = jax.random.PRNGKey(0)
    pkey, tkey = jax.random.split(key)
    params = init_params(pkey, config)

    text_lengths = jnp.array([24, 13], dtype=jnp.int32)   # > 0, as pack_padded_sequence requires
    text = jax.random.randint(tkey, (B, T), 1, config['vocab_size'], dtype=jnp.int32)
    pos = jnp.arange(T)[None, :]
    text = jnp.where(pos < text_lengths[:, None], text, config['pad_idx'])

    # tile_t=8 -> grid of 3 time chunks, exercising the cross-chunk carries both ways.
    fwd = jax.jit(functools.partial(encoder_forward, tile_t=8))
    output, hidden = fwd(params, text, text_lengths)
    jax.block_until_ready((output, hidden))

    # Sanity check vs a pure-JAX reference with matching numerics.
    ref_out, ref_hid = jax.jit(_reference_forward)(params, text, text_lengths)
    jax.block_until_ready((ref_out, ref_hid))
    err_out = float(jnp.max(jnp.abs(output - ref_out)))
    err_hid = float(jnp.max(jnp.abs(hidden - ref_hid)))
    assert err_out < 2e-2 and err_hid < 2e-2, (err_out, err_hid)

    # pad_packed_sequence truncates to the batch max length; host-side, outside jit.
    t_max = int(text_lengths.max())
    output = output[:, :t_max, :]
    assert output.shape == (B, t_max, 2 * config['hidden_dim'])
    assert hidden.shape == (B, 2 * config['hidden_dim'])
    print("KERNEL_OK")
</pallas_src>

<mosaic_0001>
module attributes {stable_mosaic.version = 11 : i64} {
  func.func @_bilstm_kernel(%arg0: i32, %arg1: i32, %arg2: memref<2x256xi32, #tpu.memory_space<vmem>>, %arg3: memref<8x2x512xbf16, #tpu.memory_space<vmem>>, %arg4: memref<8x2x512xbf16, #tpu.memory_space<vmem>>, %arg5: memref<256x1024xbf16, #tpu.memory_space<vmem>>, %arg6: memref<8x2x128xf32, #tpu.memory_space<vmem>>, %arg7: memref<8x2x128xf32, #tpu.memory_space<vmem>>, %arg8: memref<2x256xf32, #tpu.memory_space<vmem>>, %arg9: memref<2x256xf32, #tpu.memory_space<vmem>>) attributes {dimension_semantics = [#tpu.dimension_semantics<parallel>, #tpu.dimension_semantics<arbitrary>], iteration_bounds = array<i64: 1, 3>, scalar_prefetch = 0 : i64, scratch_operands = 1 : i64, tpu.core_type = #tpu.core_type<tc>, window_params = [{transform_indices = @transform_0, window_bounds = array<i64: 2, 256>}, {transform_indices = @transform_1, window_bounds = array<i64: 8, 2, 512>}, {transform_indices = @transform_2, window_bounds = array<i64: 8, 2, 512>}, {pipeline_mode = #tpu.pipeline_mode<synchronous>, transform_indices = @transform_3, window_bounds = array<i64: 256, 1024>}, {transform_indices = @transform_4, window_bounds = array<i64: 8, 2, 128>}, {transform_indices = @transform_5, window_bounds = array<i64: 8, 2, 128>}, {transform_indices = @transform_6, window_bounds = array<i64: 2, 256>}]} {
    %c0_i32 = arith.constant 0 : i32
    %0 = arith.cmpi eq, %arg1, %c0_i32 : i32
    %1 = arith.extui %0 : i1 to i32
    %c0_i32_0 = arith.constant 0 : i32
    %2 = arith.cmpi ne, %1, %c0_i32_0 : i32
    scf.if %2 {
      %cst_154 = arith.constant 0.000000e+00 : f32
      %719 = vector.broadcast %cst_154 : f32 to vector<2x256xf32>
      %c0_155 = arith.constant 0 : index
      %c0_156 = arith.constant 0 : index
      %720 = vector.load %arg8[%c0_155, %c0_156] : memref<2x256xf32, #tpu.memory_space<vmem>>, vector<2x256xf32>
      tpu.vector_store %arg8[%c0_155, %c0_156], %719 {strides = array<i32>} : memref<2x256xf32, #tpu.memory_space<vmem>>, vector<2x256xf32>,
      %cst_157 = arith.constant 0.000000e+00 : f32
      %721 = vector.broadcast %cst_157 : f32 to vector<2x256xf32>
      %c0_158 = arith.constant 0 : index
      %c0_159 = arith.constant 0 : index
      %722 = vector.load %arg9[%c0_158, %c0_159] : memref<2x256xf32, #tpu.memory_space<vmem>>, vector<2x256xf32>
      tpu.vector_store %arg9[%c0_158, %c0_159], %721 {strides = array<i32>} : memref<2x256xf32, #tpu.memory_space<vmem>>, vector<2x256xf32>,
    } else {
    }
    %c0 = arith.constant 0 : index
    %c0_1 = arith.constant 0 : index
    %3 = vector.load %arg5[%c0, %c0_1] : memref<256x1024xbf16, #tpu.memory_space<vmem>>, vector<256x1024xbf16>
    %c0_2 = arith.constant 0 : index
    %c0_3 = arith.constant 0 : index
    %4 = vector.load %arg2[%c0_2, %c0_3] : memref<2x256xi32, #tpu.memory_space<vmem>>, vector<2x256xi32>
    %5 = tpu.iota {dimensions = array<i32: 1>} : vector<2x256xi32>
    %c128_i32 = arith.constant 128 : i32
    %6 = vector.broadcast %c128_i32 : i32 to vector<2x256xi32>
    %7 = arith.cmpi slt, %5, %6 : vector<2x256xi32>
    %c8_i32 = arith.constant 8 : i32
    %8 = arith.muli %arg1, %c8_i32 : i32
    %c2_i32 = arith.constant 2 : i32
    %9 = arith.subi %c2_i32, %arg1 : i32
    %c8_i32_4 = arith.constant 8 : i32
    %10 = arith.muli %9, %c8_i32_4 : i32
    %c8_i32_5 = arith.constant 8 : i32
    %11 = arith.addi %10, %c8_i32_5 : i32
    %c1_i32 = arith.constant 1 : i32
    %12 = arith.subi %11, %c1_i32 : i32
    %13 = vector.broadcast %8 : i32 to vector<2x256xi32>
    %14 = vector.broadcast %12 : i32 to vector<2x256xi32>
    %15 = arith.select %7, %13, %14 : vector<2x256xi1>, vector<2x256xi32>
    %c1_i32_6 = arith.constant 1 : i32
    %c-1_i32 = arith.constant -1 : i32
    %16 = vector.broadcast %c1_i32_6 : i32 to vector<2x256xi32>
    %17 = vector.broadcast %c-1_i32 : i32 to vector<2x256xi32>
    %18 = arith.select %7, %16, %17 : vector<2x256xi1>, vector<2x256xi32>
    %c0_7 = arith.constant 0 : index
    %c0_8 = arith.constant 0 : index
    %19 = vector.load %arg8[%c0_7, %c0_8] : memref<2x256xf32, #tpu.memory_space<vmem>>, vector<2x256xf32>
    %c0_9 = arith.constant 0 : index
    %c0_10 = arith.constant 0 : index
    %20 = vector.load %arg9[%c0_9, %c0_10] : memref<2x256xf32, #tpu.memory_space<vmem>>, vector<2x256xf32>
    %c0_i32_11 = arith.constant 0 : i32
    %c7_i32 = arith.constant 7 : i32
    %21 = arith.subi %c7_i32, %c0_i32_11 : i32
    %22 = arith.truncf %19 : vector<2x256xf32> to vector<2x256xbf16>
    %cst = arith.constant dense<0.000000e+00> : vector<2x1024xf32>
    %23 = tpu.matmul %22, %3, %cst {dimension_numbers = #tpu.dot_dimension_numbers<[1], [0], [0], [1], [0, 0, 1, 1], [], []>} : vector<2x256xbf16>, vector<256x1024xbf16>, vector<2x1024xf32> -> vector<2x1024xf32>
    %24 = arith.index_cast %c0_i32_11 : i32 to index
    %c0_12 = arith.constant 0 : index
    %c0_13 = arith.constant 0 : index
    %25 = vector.load %arg3[%24, %c0_12, %c0_13] : memref<8x2x512xbf16, #tpu.memory_space<vmem>>, vector<1x2x512xbf16>
    %26 = vector.shape_cast %25 : vector<1x2x512xbf16> to vector<2x512xbf16>
    %27 = arith.extf %26 : vector<2x512xbf16> to vector<2x512xf32>
    %28 = vector.extract_strided_slice %23 {offsets = [0, 0], sizes = [2, 512], strides = [1, 1]} : vector<2x1024xf32> to vector<2x512xf32>
    %29 = arith.addf %27, %28 : vector<2x512xf32>
    %30 = arith.index_cast %21 : i32 to index
    %c0_14 = arith.constant 0 : index
    %c0_15 = arith.constant 0 : index
    %31 = vector.load %arg4[%30, %c0_14, %c0_15] : memref<8x2x512xbf16, #tpu.memory_space<vmem>>, vector<1x2x512xbf16>
    %32 = vector.shape_cast %31 : vector<1x2x512xbf16> to vector<2x512xbf16>
    %33 = arith.extf %32 : vector<2x512xbf16> to vector<2x512xf32>
    %34 = vector.extract_strided_slice %23 {offsets = [0, 512], sizes = [2, 512], strides = [1, 1]} : vector<2x1024xf32> to vector<2x512xf32>
    %35 = arith.addf %33, %34 : vector<2x512xf32>
    %36 = vector.extract_strided_slice %20 {offsets = [0, 0], sizes = [2, 128], strides = [1, 1]} : vector<2x256xf32> to vector<2x128xf32>
    %37 = vector.extract_strided_slice %29 {offsets = [0, 0], sizes = [2, 128], strides = [1, 1]} : vector<2x512xf32> to vector<2x128xf32>
    %38 = arith.negf %37 : vector<2x128xf32>
    %39 = math.exp %38 : vector<2x128xf32>
    %cst_16 = arith.constant 1.000000e+00 : f32
    %40 = vector.broadcast %cst_16 : f32 to vector<2x128xf32>
    %41 = arith.addf %40, %39 : vector<2x128xf32>
    %42 = arith.divf %40, %41 : vector<2x128xf32>
    %43 = vector.extract_strided_slice %29 {offsets = [0, 128], sizes = [2, 128], strides = [1, 1]} : vector<2x512xf32> to vector<2x128xf32>
    %44 = arith.negf %43 : vector<2x128xf32>
    %45 = math.exp %44 : vector<2x128xf32>
    %cst_17 = arith.constant 1.000000e+00 : f32
    %46 = vector.broadcast %cst_17 : f32 to vector<2x128xf32>
    %47 = arith.addf %46, %45 : vector<2x128xf32>
    %48 = arith.divf %46, %47 : vector<2x128xf32>
    %49 = vector.extract_strided_slice %29 {offsets = [0, 256], sizes = [2, 128], strides = [1, 1]} : vector<2x512xf32> to vector<2x128xf32>
    %50 = math.tanh %49 : vector<2x128xf32>
    %51 = vector.extract_strided_slice %29 {offsets = [0, 384], sizes = [2, 128], strides = [1, 1]} : vector<2x512xf32> to vector<2x128xf32>
    %52 = arith.negf %51 : vector<2x128xf32>
    %53 = math.exp %52 : vector<2x128xf32>
    %cst_18 = arith.constant 1.000000e+00 : f32
    %54 = vector.broadcast %cst_18 : f32 to vector<2x128xf32>
    %55 = arith.addf %54, %53 : vector<2x128xf32>
    %56 = arith.divf %54, %55 : vector<2x128xf32>
    %57 = arith.mulf %48, %36 : vector<2x128xf32>
    %58 = arith.mulf %42, %50 : vector<2x128xf32>
    %59 = arith.addf %57, %58 : vector<2x128xf32>
    %60 = math.tanh %59 : vector<2x128xf32>
    %61 = arith.mulf %56, %60 : vector<2x128xf32>
    %62 = vector.extract_strided_slice %20 {offsets = [0, 128], sizes = [2, 128], strides = [1, 1]} : vector<2x256xf32> to vector<2x128xf32>
    %63 = vector.extract_strided_slice %35 {offsets = [0, 0], sizes = [2, 128], strides = [1, 1]} : vector<2x512xf32> to vector<2x128xf32>
    %64 = arith.negf %63 : vector<2x128xf32>
    %65 = math.exp %64 : vector<2x128xf32>
    %cst_19 = arith.constant 1.000000e+00 : f32
    %66 = vector.broadcast %cst_19 : f32 to vector<2x128xf32>
    %67 = arith.addf %66, %65 : vector<2x128xf32>
    %68 = arith.divf %66, %67 : vector<2x128xf32>
    %69 = vector.extract_strided_slice %35 {offsets = [0, 128], sizes = [2, 128], strides = [1, 1]} : vector<2x512xf32> to vector<2x128xf32>
    %70 = arith.negf %69 : vector<2x128xf32>
    %71 = math.exp %70 : vector<2x128xf32>
    %cst_20 = arith.constant 1.000000e+00 : f32
    %72 = vector.broadcast %cst_20 : f32 to vector<2x128xf32>
    %73 = arith.addf %72, %71 : vector<2x128xf32>
    %74 = arith.divf %72, %73 : vector<2x128xf32>
    %75 = vector.extract_strided_slice %35 {offsets = [0, 256], sizes = [2, 128], strides = [1, 1]} : vector<2x512xf32> to vector<2x128xf32>
    %76 = math.tanh %75 : vector<2x128xf32>
    %77 = vector.extract_strided_slice %35 {offsets = [0, 384], sizes = [2, 128], strides = [1, 1]} : vector<2x512xf32> to vector<2x128xf32>
    %78 = arith.negf %77 : vector<2x128xf32>
    %79 = math.exp %78 : vector<2x128xf32>
    %cst_21 = arith.constant 1.000000e+00 : f32
    %80 = vector.broadcast %cst_21 : f32 to vector<2x128xf32>
    %81 = arith.addf %80, %79 : vector<2x128xf32>
    %82 = arith.divf %80, %81 : vector<2x128xf32>
    %83 = arith.mulf %74, %62 : vector<2x128xf32>
    %84 = arith.mulf %68, %76 : vector<2x128xf32>
    %85 = arith.addf %83, %84 : vector<2x128xf32>
    %86 = math.tanh %85 : vector<2x128xf32>
    %87 = arith.mulf %82, %86 : vector<2x128xf32>
    %88 = tpu.concatenate %61, %87 in 1 : vector<2x128xf32>, vector<2x128xf32> -> vector<2x256xf32>
    %89 = tpu.concatenate %59, %85 in 1 : vector<2x128xf32>, vector<2x128xf32> -> vector<2x256xf32>
    %90 = vector.broadcast %c0_i32_11 : i32 to vector<2x256xi32>
    %91 = arith.muli %18, %90 : vector<2x256xi32>
    %92 = arith.addi %15, %91 : vector<2x256xi32>
    %93 = arith.cmpi slt, %92, %4 : vector<2x256xi32>
    %cst_22 = arith.constant 0.000000e+00 : f32
    %94 = vector.broadcast %cst_22 : f32 to vector<2x256xf32>
    %95 = arith.select %93, %88, %94 : vector<2x256xi1>, vector<2x256xf32>
    %96 = vector.extract_strided_slice %95 {offsets = [0, 0], sizes = [2, 128], strides = [1, 1]} : vector<2x256xf32> to vector<2x128xf32>
    %97 = arith.index_cast %c0_i32_11 : i32 to index
    %c0_23 = arith.constant 0 : index
    %c0_24 = arith.constant 0 : index
    %98 = vector.load %arg6[%97, %c0_23, %c0_24] : memref<8x2x128xf32, #tpu.memory_space<vmem>>, vector<1x2x128xf32>
    %99 = vector.shape_cast %98 : vector<1x2x128xf32> to vector<2x128xf32>
    %100 = vector.shape_cast %96 : vector<2x128xf32> to vector<1x2x128xf32>
    tpu.vector_store %arg6[%97, %c0_23, %c0_24], %100 {strides = array<i32>} : memref<8x2x128xf32, #tpu.memory_space<vmem>>, vector<1x2x128xf32>,
    %101 = vector.extract_strided_slice %95 {offsets = [0, 128], sizes = [2, 128], strides = [1, 1]} : vector<2x256xf32> to vector<2x128xf32>
    %102 = arith.index_cast %21 : i32 to index
    %c0_25 = arith.constant 0 : index
    %c0_26 = arith.constant 0 : index
    %103 = vector.load %arg7[%102, %c0_25, %c0_26] : memref<8x2x128xf32, #tpu.memory_space<vmem>>, vector<1x2x128xf32>
    %104 = vector.shape_cast %103 : vector<1x2x128xf32> to vector<2x128xf32>
    %105 = vector.shape_cast %101 : vector<2x128xf32> to vector<1x2x128xf32>
    tpu.vector_store %arg7[%102, %c0_25, %c0_26], %105 {strides = array<i32>} : memref<8x2x128xf32, #tpu.memory_space<vmem>>, vector<1x2x128xf32>,
    %106 = arith.select %93, %88, %19 : vector<2x256xi1>, vector<2x256xf32>
    %107 = arith.select %93, %89, %20 : vector<2x256xi1>, vector<2x256xf32>
    %c1_i32_27 = arith.constant 1 : i32
    %c7_i32_28 = arith.constant 7 : i32
    %108 = arith.subi %c7_i32_28, %c1_i32_27 : i32
    %109 = arith.truncf %106 : vector<2x256xf32> to vector<2x256xbf16>
    %cst_29 = arith.constant dense<0.000000e+00> : vector<2x1024xf32>
    %110 = tpu.matmul %109, %3, %cst_29 {dimension_numbers = #tpu.dot_dimension_numbers<[1], [0], [0], [1], [0, 0, 1, 1], [], []>} : vector<2x256xbf16>, vector<256x1024xbf16>, vector<2x1024xf32> -> vector<2x1024xf32>
    %111 = arith.index_cast %c1_i32_27 : i32 to index
    %c0_30 = arith.constant 0 : index
    %c0_31 = arith.constant 0 : index
    %112 = vector.load %arg3[%111, %c0_30, %c0_31] : memref<8x2x512xbf16, #tpu.memory_space<vmem>>, vector<1x2x512xbf16>
    %113 = vector.shape_cast %112 : vector<1x2x512xbf16> to vector<2x512xbf16>
    %114 = arith.extf %113 : vector<2x512xbf16> to vector<2x512xf32>
    %115 = vector.extract_strided_slice %110 {offsets = [0, 0], sizes = [2, 512], strides = [1, 1]} : vector<2x1024xf32> to vector<2x512xf32>
    %116 = arith.addf %114, %115 : vector<2x512xf32>
    %117 = arith.index_cast %108 : i32 to index
    %c0_32 = arith.constant 0 : index
    %c0_33 = arith.constant 0 : index
    %118 = vector.load %arg4[%117, %c0_32, %c0_33] : memref<8x2x512xbf16, #tpu.memory_space<vmem>>, vector<1x2x512xbf16>
    %119 = vector.shape_cast %118 : vector<1x2x512xbf16> to vector<2x512xbf16>
    %120 = arith.extf %119 : vector<2x512xbf16> to vector<2x512xf32>
    %121 = vector.extract_strided_slice %110 {offsets = [0, 512], sizes = [2, 512], strides = [1, 1]} : vector<2x1024xf32> to vector<2x512xf32>
    %122 = arith.addf %120, %121 : vector<2x512xf32>
    %123 = vector.extract_strided_slice %107 {offsets = [0, 0], sizes = [2, 128], strides = [1, 1]} : vector<2x256xf32> to vector<2x128xf32>
    %124 = vector.extract_strided_slice %116 {offsets = [0, 0], sizes = [2, 128], strides = [1, 1]} : vector<2x512xf32> to vector<2x128xf32>
    %125 = arith.negf %124 : vector<2x128xf32>
    %126 = math.exp %125 : vector<2x128xf32>
    %cst_34 = arith.constant 1.000000e+00 : f32
    %127 = vector.broadcast %cst_34 : f32 to vector<2x128xf32>
    %128 = arith.addf %127, %126 : vector<2x128xf32>
    %129 = arith.divf %127, %128 : vector<2x128xf32>
    %130 = vector.extract_strided_slice %116 {offsets = [0, 128], sizes = [2, 128], strides = [1, 1]} : vector<2x512xf32> to vector<2x128xf32>
    %131 = arith.negf %130 : vector<2x128xf32>
    %132 = math.exp %131 : vector<2x128xf32>
    %cst_35 = arith.constant 1.000000e+00 : f32
    %133 = vector.broadcast %cst_35 : f32 to vector<2x128xf32>
    %134 = arith.addf %133, %132 : vector<2x128xf32>
    %135 = arith.divf %133, %134 : vector<2x128xf32>
    %136 = vector.extract_strided_slice %116 {offsets = [0, 256], sizes = [2, 128], strides = [1, 1]} : vector<2x512xf32> to vector<2x128xf32>
    %137 = math.tanh %136 : vector<2x128xf32>
    %138 = vector.extract_strided_slice %116 {offsets = [0, 384], sizes = [2, 128], strides = [1, 1]} : vector<2x512xf32> to vector<2x128xf32>
    %139 = arith.negf %138 : vector<2x128xf32>
    %140 = math.exp %139 : vector<2x128xf32>
    %cst_36 = arith.constant 1.000000e+00 : f32
    %141 = vector.broadcast %cst_36 : f32 to vector<2x128xf32>
    %142 = arith.addf %141, %140 : vector<2x128xf32>
    %143 = arith.divf %141, %142 : vector<2x128xf32>
    %144 = arith.mulf %135, %123 : vector<2x128xf32>
    %145 = arith.mulf %129, %137 : vector<2x128xf32>
    %146 = arith.addf %144, %145 : vector<2x128xf32>
    %147 = math.tanh %146 : vector<2x128xf32>
    %148 = arith.mulf %143, %147 : vector<2x128xf32>
    %149 = vector.extract_strided_slice %107 {offsets = [0, 128], sizes = [2, 128], strides = [1, 1]} : vector<2x256xf32> to vector<2x128xf32>
    %150 = vector.extract_strided_slice %122 {offsets = [0, 0], sizes = [2, 128], strides = [1, 1]} : vector<2x512xf32> to vector<2x128xf32>
    %151 = arith.negf %150 : vector<2x128xf32>
    %152 = math.exp %151 : vector<2x128xf32>
    %cst_37 = arith.constant 1.000000e+00 : f32
    %153 = vector.broadcast %cst_37 : f32 to vector<2x128xf32>
    %154 = arith.addf %153, %152 : vector<2x128xf32>
    %155 = arith.divf %153, %154 : vector<2x128xf32>
    %156 = vector.extract_strided_slice %122 {offsets = [0, 128], sizes = [2, 128], strides = [1, 1]} : vector<2x512xf32> to vector<2x128xf32>
    %157 = arith.negf %156 : vector<2x128xf32>
    %158 = math.exp %157 : vector<2x128xf32>
    %cst_38 = arith.constant 1.000000e+00 : f32
    %159 = vector.broadcast %cst_38 : f32 to vector<2x128xf32>
    %160 = arith.addf %159, %158 : vector<2x128xf32>
    %161 = arith.divf %159, %160 : vector<2x128xf32>
    %162 = vector.extract_strided_slice %122 {offsets = [0, 256], sizes = [2, 128], strides = [1, 1]} : vector<2x512xf32> to vector<2x128xf32>
    %163 = math.tanh %162 : vector<2x128xf32>
    %164 = vector.extract_strided_slice %122 {offsets = [0, 384], sizes = [2, 128], strides = [1, 1]} : vector<2x512xf32> to vector<2x128xf32>
    %165 = arith.negf %164 : vector<2x128xf32>
    %166 = math.exp %165 : vector<2x128xf32>
    %cst_39 = arith.constant 1.000000e+00 : f32
    %167 = vector.broadcast %cst_39 : f32 to vector<2x128xf32>
    %168 = arith.addf %167, %166 : vector<2x128xf32>
    %169 = arith.divf %167, %168 : vector<2x128xf32>
    %170 = arith.mulf %161, %149 : vector<2x128xf32>
    %171 = arith.mulf %155, %163 : vector<2x128xf32>
    %172 = arith.addf %170, %171 : vector<2x128xf32>
    %173 = math.tanh %172 : vector<2x128xf32>
    %174 = arith.mulf %169, %173 : vector<2x128xf32>
    %175 = tpu.concatenate %148, %174 in 1 : vector<2x128xf32>, vector<2x128xf32> -> vector<2x256xf32>
    %176 = tpu.concatenate %146, %172 in 1 : vector<2x128xf32>, vector<2x128xf32> -> vector<2x256xf32>
    %177 = vector.broadcast %c1_i32_27 : i32 to vector<2x256xi32>
    %178 = arith.muli %18, %177 : vector<2x256xi32>
    %179 = arith.addi %15, %178 : vector<2x256xi32>
    %180 = arith.cmpi slt, %179, %4 : vector<2x256xi32>
    %cst_40 = arith.constant 0.000000e+00 : f32
    %181 = vector.broadcast %cst_40 : f32 to vector<2x256xf32>
    %182 = arith.select %180, %175, %181 : vector<2x256xi1>, vector<2x256xf32>
    %183 = vector.extract_strided_slice %182 {offsets = [0, 0], sizes = [2, 128], strides = [1, 1]} : vector<2x256xf32> to vector<2x128xf32>
    %184 = arith.index_cast %c1_i32_27 : i32 to index
    %c0_41 = arith.constant 0 : index
    %c0_42 = arith.constant 0 : index
    %185 = vector.load %arg6[%184, %c0_41, %c0_42] : memref<8x2x128xf32, #tpu.memory_space<vmem>>, vector<1x2x128xf32>
    %186 = vector.shape_cast %185 : vector<1x2x128xf32> to vector<2x128xf32>
    %187 = vector.shape_cast %183 : vector<2x128xf32> to vector<1x2x128xf32>
    tpu.vector_store %arg6[%184, %c0_41, %c0_42], %187 {strides = array<i32>} : memref<8x2x128xf32, #tpu.memory_space<vmem>>, vector<1x2x128xf32>,
    %188 = vector.extract_strided_slice %182 {offsets = [0, 128], sizes = [2, 128], strides = [1, 1]} : vector<2x256xf32> to vector<2x128xf32>
    %189 = arith.index_cast %108 : i32 to index
    %c0_43 = arith.constant 0 : index
    %c0_44 = arith.constant 0 : index
    %190 = vector.load %arg7[%189, %c0_43, %c0_44] : memref<8x2x128xf32, #tpu.memory_space<vmem>>, vector<1x2x128xf32>
    %191 = vector.shape_cast %190 : vector<1x2x128xf32> to vector<2x128xf32>
    %192 = vector.shape_cast %188 : vector<2x128xf32> to vector<1x2x128xf32>
    tpu.vector_store %arg7[%189, %c0_43, %c0_44], %192 {strides = array<i32>} : memref<8x2x128xf32, #tpu.memory_space<vmem>>, vector<1x2x128xf32>,
    %193 = arith.select %180, %175, %106 : vector<2x256xi1>, vector<2x256xf32>
    %194 = arith.select %180, %176, %107 : vector<2x256xi1>, vector<2x256xf32>
    %c2_i32_45 = arith.constant 2 : i32
    %c7_i32_46 = arith.constant 7 : i32
    %195 = arith.subi %c7_i32_46, %c2_i32_45 : i32
    %196 = arith.truncf %193 : vector<2x256xf32> to vector<2x256xbf16>
    %cst_47 = arith.constant dense<0.000000e+00> : vector<2x1024xf32>
    %197 = tpu.matmul %196, %3, %cst_47 {dimension_numbers = #tpu.dot_dimension_numbers<[1], [0], [0], [1], [0, 0, 1, 1], [], []>} : vector<2x256xbf16>, vector<256x1024xbf16>, vector<2x1024xf32> -> vector<2x1024xf32>
    %198 = arith.index_cast %c2_i32_45 : i32 to index
    %c0_48 = arith.constant 0 : index
    %c0_49 = arith.constant 0 : index
    %199 = vector.load %arg3[%198, %c0_48, %c0_49] : memref<8x2x512xbf16, #tpu.memory_space<vmem>>, vector<1x2x512xbf16>
    %200 = vector.shape_cast %199 : vector<1x2x512xbf16> to vector<2x512xbf16>
    %201 = arith.extf %200 : vector<2x512xbf16> to vector<2x512xf32>
    %202 = vector.extract_strided_slice %197 {offsets = [0, 0], sizes = [2, 512], strides = [1, 1]} : vector<2x1024xf32> to vector<2x512xf32>
    %203 = arith.addf %201, %202 : vector<2x512xf32>
    %204 = arith.index_cast %195 : i32 to index
    %c0_50 = arith.constant 0 : index
    %c0_51 = arith.constant 0 : index
    %205 = vector.load %arg4[%204, %c0_50, %c0_51] : memref<8x2x512xbf16, #tpu.memory_space<vmem>>, vector<1x2x512xbf16>
    %206 = vector.shape_cast %205 : vector<1x2x512xbf16> to vector<2x512xbf16>
    %207 = arith.extf %206 : vector<2x512xbf16> to vector<2x512xf32>
    %208 = vector.extract_strided_slice %197 {offsets = [0, 512], sizes = [2, 512], strides = [1, 1]} : vector<2x1024xf32> to vector<2x512xf32>
    %209 = arith.addf %207, %208 : vector<2x512xf32>
    %210 = vector.extract_strided_slice %194 {offsets = [0, 0], sizes = [2, 128], strides = [1, 1]} : vector<2x256xf32> to vector<2x128xf32>
    %211 = vector.extract_strided_slice %203 {offsets = [0, 0], sizes = [2, 128], strides = [1, 1]} : vector<2x512xf32> to vector<2x128xf32>
    %212 = arith.negf %211 : vector<2x128xf32>
    %213 = math.exp %212 : vector<2x128xf32>
    %cst_52 = arith.constant 1.000000e+00 : f32
    %214 = vector.broadcast %cst_52 : f32 to vector<2x128xf32>
    %215 = arith.addf %214, %213 : vector<2x128xf32>
    %216 = arith.divf %214, %215 : vector<2x128xf32>
    %217 = vector.extract_strided_slice %203 {offsets = [0, 128], sizes = [2, 128], strides = [1, 1]} : vector<2x512xf32> to vector<2x128xf32>
    %218 = arith.negf %217 : vector<2x128xf32>
    %219 = math.exp %218 : vector<2x128xf32>
    %cst_53 = arith.constant 1.000000e+00 : f32
    %220 = vector.broadcast %cst_53 : f32 to vector<2x128xf32>
    %221 = arith.addf %220, %219 : vector<2x128xf32>
    %222 = arith.divf %220, %221 : vector<2x128xf32>
    %223 = vector.extract_strided_slice %203 {offsets = [0, 256], sizes = [2, 128], strides = [1, 1]} : vector<2x512xf32> to vector<2x128xf32>
    %224 = math.tanh %223 : vector<2x128xf32>
    %225 = vector.extract_strided_slice %203 {offsets = [0, 384], sizes = [2, 128], strides = [1, 1]} : vector<2x512xf32> to vector<2x128xf32>
    %226 = arith.negf %225 : vector<2x128xf32>
    %227 = math.exp %226 : vector<2x128xf32>
    %cst_54 = arith.constant 1.000000e+00 : f32
    %228 = vector.broadcast %cst_54 : f32 to vector<2x128xf32>
    %229 = arith.addf %228, %227 : vector<2x128xf32>
    %230 = arith.divf %228, %229 : vector<2x128xf32>
    %231 = arith.mulf %222, %210 : vector<2x128xf32>
    %232 = arith.mulf %216, %224 : vector<2x128xf32>
    %233 = arith.addf %231, %232 : vector<2x128xf32>
    %234 = math.tanh %233 : vector<2x128xf32>
    %235 = arith.mulf %230, %234 : vector<2x128xf32>
    %236 = vector.extract_strided_slice %194 {offsets = [0, 128], sizes = [2, 128], strides = [1, 1]} : vector<2x256xf32> to vector<2x128xf32>
    %237 = vector.extract_strided_slice %209 {offsets = [0, 0], sizes = [2, 128], strides = [1, 1]} : vector<2x512xf32> to vector<2x128xf32>
    %238 = arith.negf %237 : vector<2x128xf32>
    %239 = math.exp %238 : vector<2x128xf32>
    %cst_55 = arith.constant 1.000000e+00 : f32
    %240 = vector.broadcast %cst_55 : f32 to vector<2x128xf32>
    %241 = arith.addf %240, %239 : vector<2x128xf32>
    %242 = arith.divf %240, %241 : vector<2x128xf32>
    %243 = vector.extract_strided_slice %209 {offsets = [0, 128], sizes = [2, 128], strides = [1, 1]} : vector<2x512xf32> to vector<2x128xf32>
    %244 = arith.negf %243 : vector<2x128xf32>
    %245 = math.exp %244 : vector<2x128xf32>
    %cst_56 = arith.constant 1.000000e+00 : f32
    %246 = vector.broadcast %cst_56 : f32 to vector<2x128xf32>
    %247 = arith.addf %246, %245 : vector<2x128xf32>
    %248 = arith.divf %246, %247 : vector<2x128xf32>
    %249 = vector.extract_strided_slice %209 {offsets = [0, 256], sizes = [2, 128], strides = [1, 1]} : vector<2x512xf32> to vector<2x128xf32>
    %250 = math.tanh %249 : vector<2x128xf32>
    %251 = vector.extract_strided_slice %209 {offsets = [0, 384], sizes = [2, 128], strides = [1, 1]} : vector<2x512xf32> to vector<2x128xf32>
    %252 = arith.negf %251 : vector<2x128xf32>
    %253 = math.exp %252 : vector<2x128xf32>
    %cst_57 = arith.constant 1.000000e+00 : f32
    %254 = vector.broadcast %cst_57 : f32 to vector<2x128xf32>
    %255 = arith.addf %254, %253 : vector<2x128xf32>
    %256 = arith.divf %254, %255 : vector<2x128xf32>
    %257 = arith.mulf %248, %236 : vector<2x128xf32>
    %258 = arith.mulf %242, %250 : vector<2x128xf32>
    %259 = arith.addf %257, %258 : vector<2x128xf32>
    %260 = math.tanh %259 : vector<2x128xf32>
    %261 = arith.mulf %256, %260 : vector<2x128xf32>
    %262 = tpu.concatenate %235, %261 in 1 : vector<2x128xf32>, vector<2x128xf32> -> vector<2x256xf32>
    %263 = tpu.concatenate %233, %259 in 1 : vector<2x128xf32>, vector<2x128xf32> -> vector<2x256xf32>
    %264 = vector.broadcast %c2_i32_45 : i32 to vector<2x256xi32>
    %265 = arith.muli %18, %264 : vector<2x256xi32>
    %266 = arith.addi %15, %265 : vector<2x256xi32>
    %267 = arith.cmpi slt, %266, %4 : vector<2x256xi32>
    %cst_58 = arith.constant 0.000000e+00 : f32
    %268 = vector.broadcast %cst_58 : f32 to vector<2x256xf32>
    %269 = arith.select %267, %262, %268 : vector<2x256xi1>, vector<2x256xf32>
    %270 = vector.extract_strided_slice %269 {offsets = [0, 0], sizes = [2, 128], strides = [1, 1]} : vector<2x256xf32> to vector<2x128xf32>
    %271 = arith.index_cast %c2_i32_45 : i32 to index
    %c0_59 = arith.constant 0 : index
    %c0_60 = arith.constant 0 : index
    %272 = vector.load %arg6[%271, %c0_59, %c0_60] : memref<8x2x128xf32, #tpu.memory_space<vmem>>, vector<1x2x128xf32>
    %273 = vector.shape_cast %272 : vector<1x2x128xf32> to vector<2x128xf32>
    %274 = vector.shape_cast %270 : vector<2x128xf32> to vector<1x2x128xf32>
    tpu.vector_store %arg6[%271, %c0_59, %c0_60], %274 {strides = array<i32>} : memref<8x2x128xf32, #tpu.memory_space<vmem>>, vector<1x2x128xf32>,
    %275 = vector.extract_strided_slice %269 {offsets = [0, 128], sizes = [2, 128], strides = [1, 1]} : vector<2x256xf32> to vector<2x128xf32>
    %276 = arith.index_cast %195 : i32 to index
    %c0_61 = arith.constant 0 : index
    %c0_62 = arith.constant 0 : index
    %277 = vector.load %arg7[%276, %c0_61, %c0_62] : memref<8x2x128xf32, #tpu.memory_space<vmem>>, vector<1x2x128xf32>
    %278 = vector.shape_cast %277 : vector<1x2x128xf32> to vector<2x128xf32>
    %279 = vector.shape_cast %275 : vector<2x128xf32> to vector<1x2x128xf32>
    tpu.vector_store %arg7[%276, %c0_61, %c0_62], %279 {strides = array<i32>} : memref<8x2x128xf32, #tpu.memory_space<vmem>>, vector<1x2x128xf32>,
    %280 = arith.select %267, %262, %193 : vector<2x256xi1>, vector<2x256xf32>
    %281 = arith.select %267, %263, %194 : vector<2x256xi1>, vector<2x256xf32>
    %c3_i32 = arith.constant 3 : i32
    %c7_i32_63 = arith.constant 7 : i32
    %282 = arith.subi %c7_i32_63, %c3_i32 : i32
    %283 = arith.truncf %280 : vector<2x256xf32> to vector<2x256xbf16>
    %cst_64 = arith.constant dense<0.000000e+00> : vector<2x1024xf32>
    %284 = tpu.matmul %283, %3, %cst_64 {dimension_numbers = #tpu.dot_dimension_numbers<[1], [0], [0], [1], [0, 0, 1, 1], [], []>} : vector<2x256xbf16>, vector<256x1024xbf16>, vector<2x1024xf32> -> vector<2x1024xf32>
    %285 = arith.index_cast %c3_i32 : i32 to index
    %c0_65 = arith.constant 0 : index
    %c0_66 = arith.constant 0 : index
    %286 = vector.load %arg3[%285, %c0_65, %c0_66] : memref<8x2x512xbf16, #tpu.memory_space<vmem>>, vector<1x2x512xbf16>
    %287 = vector.shape_cast %286 : vector<1x2x512xbf16> to vector<2x512xbf16>
    %288 = arith.extf %287 : vector<2x512xbf16> to vector<2x512xf32>
    %289 = vector.extract_strided_slice %284 {offsets = [0, 0], sizes = [2, 512], strides = [1, 1]} : vector<2x1024xf32> to vector<2x512xf32>
    %290 = arith.addf %288, %289 : vector<2x512xf32>
    %291 = arith.index_cast %282 : i32 to index
    %c0_67 = arith.constant 0 : index
    %c0_68 = arith.constant 0 : index
    %292 = vector.load %arg4[%291, %c0_67, %c0_68] : memref<8x2x512xbf16, #tpu.memory_space<vmem>>, vector<1x2x512xbf16>
    %293 = vector.shape_cast %292 : vector<1x2x512xbf16> to vector<2x512xbf16>
    %294 = arith.extf %293 : vector<2x512xbf16> to vector<2x512xf32>
    %295 = vector.extract_strided_slice %284 {offsets = [0, 512], sizes = [2, 512], strides = [1, 1]} : vector<2x1024xf32> to vector<2x512xf32>
    %296 = arith.addf %294, %295 : vector<2x512xf32>
    %297 = vector.extract_strided_slice %281 {offsets = [0, 0], sizes = [2, 128], strides = [1, 1]} : vector<2x256xf32> to vector<2x128xf32>
    %298 = vector.extract_strided_slice %290 {offsets = [0, 0], sizes = [2, 128], strides = [1, 1]} : vector<2x512xf32> to vector<2x128xf32>
    %299 = arith.negf %298 : vector<2x128xf32>
    %300 = math.exp %299 : vector<2x128xf32>
    %cst_69 = arith.constant 1.000000e+00 : f32
    %301 = vector.broadcast %cst_69 : f32 to vector<2x128xf32>
    %302 = arith.addf %301, %300 : vector<2x128xf32>
    %303 = arith.divf %301, %302 : vector<2x128xf32>
    %304 = vector.extract_strided_slice %290 {offsets = [0, 128], sizes = [2, 128], strides = [1, 1]} : vector<2x512xf32> to vector<2x128xf32>
    %305 = arith.negf %304 : vector<2x128xf32>
    %306 = math.exp %305 : vector<2x128xf32>
    %cst_70 = arith.constant 1.000000e+00 : f32
    %307 = vector.broadcast %cst_70 : f32 to vector<2x128xf32>
    %308 = arith.addf %307, %306 : vector<2x128xf32>
    %309 = arith.divf %307, %308 : vector<2x128xf32>
    %310 = vector.extract_strided_slice %290 {offsets = [0, 256], sizes = [2, 128], strides = [1, 1]} : vector<2x512xf32> to vector<2x128xf32>
    %311 = math.tanh %310 : vector<2x128xf32>
    %312 = vector.extract_strided_slice %290 {offsets = [0, 384], sizes = [2, 128], strides = [1, 1]} : vector<2x512xf32> to vector<2x128xf32>
    %313 = arith.negf %312 : vector<2x128xf32>
    %314 = math.exp %313 : vector<2x128xf32>
    %cst_71 = arith.constant 1.000000e+00 : f32
    %315 = vector.broadcast %cst_71 : f32 to vector<2x128xf32>
    %316 = arith.addf %315, %314 : vector<2x128xf32>
    %317 = arith.divf %315, %316 : vector<2x128xf32>
    %318 = arith.mulf %309, %297 : vector<2x128xf32>
    %319 = arith.mulf %303, %311 : vector<2x128xf32>
    %320 = arith.addf %318, %319 : vector<2x128xf32>
    %321 = math.tanh %320 : vector<2x128xf32>
    %322 = arith.mulf %317, %321 : vector<2x128xf32>
    %323 = vector.extract_strided_slice %281 {offsets = [0, 128], sizes = [2, 128], strides = [1, 1]} : vector<2x256xf32> to vector<2x128xf32>
    %324 = vector.extract_strided_slice %296 {offsets = [0, 0], sizes = [2, 128], strides = [1, 1]} : vector<2x512xf32> to vector<2x128xf32>
    %325 = arith.negf %324 : vector<2x128xf32>
    %326 = math.exp %325 : vector<2x128xf32>
    %cst_72 = arith.constant 1.000000e+00 : f32
    %327 = vector.broadcast %cst_72 : f32 to vector<2x128xf32>
    %328 = arith.addf %327, %326 : vector<2x128xf32>
    %329 = arith.divf %327, %328 : vector<2x128xf32>
    %330 = vector.extract_strided_slice %296 {offsets = [0, 128], sizes = [2, 128], strides = [1, 1]} : vector<2x512xf32> to vector<2x128xf32>
    %331 = arith.negf %330 : vector<2x128xf32>
    %332 = math.exp %331 : vector<2x128xf32>
    %cst_73 = arith.constant 1.000000e+00 : f32
    %333 = vector.broadcast %cst_73 : f32 to vector<2x128xf32>
    %334 = arith.addf %333, %332 : vector<2x128xf32>
    %335 = arith.divf %333, %334 : vector<2x128xf32>
    %336 = vector.extract_strided_slice %296 {offsets = [0, 256], sizes = [2, 128], strides = [1, 1]} : vector<2x512xf32> to vector<2x128xf32>
    %337 = math.tanh %336 : vector<2x128xf32>
    %338 = vector.extract_strided_slice %296 {offsets = [0, 384], sizes = [2, 128], strides = [1, 1]} : vector<2x512xf32> to vector<2x128xf32>
    %339 = arith.negf %338 : vector<2x128xf32>
    %340 = math.exp %339 : vector<2x128xf32>
    %cst_74 = arith.constant 1.000000e+00 : f32
    %341 = vector.broadcast %cst_74 : f32 to vector<2x128xf32>
    %342 = arith.addf %341, %340 : vector<2x128xf32>
    %343 = arith.divf %341, %342 : vector<2x128xf32>
    %344 = arith.mulf %335, %323 : vector<2x128xf32>
    %345 = arith.mulf %329, %337 : vector<2x128xf32>
    %346 = arith.addf %344, %345 : vector<2x128xf32>
    %347 = math.tanh %346 : vector<2x128xf32>
    %348 = arith.mulf %343, %347 : vector<2x128xf32>
    %349 = tpu.concatenate %322, %348 in 1 : vector<2x128xf32>, vector<2x128xf32> -> vector<2x256xf32>
    %350 = tpu.concatenate %320, %346 in 1 : vector<2x128xf32>, vector<2x128xf32> -> vector<2x256xf32>
    %351 = vector.broadcast %c3_i32 : i32 to vector<2x256xi32>
    %352 = arith.muli %18, %351 : vector<2x256xi32>
    %353 = arith.addi %15, %352 : vector<2x256xi32>
    %354 = arith.cmpi slt, %353, %4 : vector<2x256xi32>
    %cst_75 = arith.constant 0.000000e+00 : f32
    %355 = vector.broadcast %cst_75 : f32 to vector<2x256xf32>
    %356 = arith.select %354, %349, %355 : vector<2x256xi1>, vector<2x256xf32>
    %357 = vector.extract_strided_slice %356 {offsets = [0, 0], sizes = [2, 128], strides = [1, 1]} : vector<2x256xf32> to vector<2x128xf32>
    %358 = arith.index_cast %c3_i32 : i32 to index
    %c0_76 = arith.constant 0 : index
    %c0_77 = arith.constant 0 : index
    %359 = vector.load %arg6[%358, %c0_76, %c0_77] : memref<8x2x128xf32, #tpu.memory_space<vmem>>, vector<1x2x128xf32>
    %360 = vector.shape_cast %359 : vector<1x2x128xf32> to vector<2x128xf32>
    %361 = vector.shape_cast %357 : vector<2x128xf32> to vector<1x2x128xf32>
    tpu.vector_store %arg6[%358, %c0_76, %c0_77], %361 {strides = array<i32>} : memref<8x2x128xf32, #tpu.memory_space<vmem>>, vector<1x2x128xf32>,
    %362 = vector.extract_strided_slice %356 {offsets = [0, 128], sizes = [2, 128], strides = [1, 1]} : vector<2x256xf32> to vector<2x128xf32>
    %363 = arith.index_cast %282 : i32 to index
    %c0_78 = arith.constant 0 : index
    %c0_79 = arith.constant 0 : index
    %364 = vector.load %arg7[%363, %c0_78, %c0_79] : memref<8x2x128xf32, #tpu.memory_space<vmem>>, vector<1x2x128xf32>
    %365 = vector.shape_cast %364 : vector<1x2x128xf32> to vector<2x128xf32>
    %366 = vector.shape_cast %362 : vector<2x128xf32> to vector<1x2x128xf32>
    tpu.vector_store %arg7[%363, %c0_78, %c0_79], %366 {strides = array<i32>} : memref<8x2x128xf32, #tpu.memory_space<vmem>>, vector<1x2x128xf32>,
    %367 = arith.select %354, %349, %280 : vector<2x256xi1>, vector<2x256xf32>
    %368 = arith.select %354, %350, %281 : vector<2x256xi1>, vector<2x256xf32>
    %c4_i32 = arith.constant 4 : i32
    %c7_i32_80 = arith.constant 7 : i32
    %369 = arith.subi %c7_i32_80, %c4_i32 : i32
    %370 = arith.truncf %367 : vector<2x256xf32> to vector<2x256xbf16>
    %cst_81 = arith.constant dense<0.000000e+00> : vector<2x1024xf32>
    %371 = tpu.matmul %370, %3, %cst_81 {dimension_numbers = #tpu.dot_dimension_numbers<[1], [0], [0], [1], [0, 0, 1, 1], [], []>} : vector<2x256xbf16>, vector<256x1024xbf16>, vector<2x1024xf32> -> vector<2x1024xf32>
    %372 = arith.index_cast %c4_i32 : i32 to index
    %c0_82 = arith.constant 0 : index
    %c0_83 = arith.constant 0 : index
    %373 = vector.load %arg3[%372, %c0_82, %c0_83] : memref<8x2x512xbf16, #tpu.memory_space<vmem>>, vector<1x2x512xbf16>
    %374 = vector.shape_cast %373 : vector<1x2x512xbf16> to vector<2x512xbf16>
    %375 = arith.extf %374 : vector<2x512xbf16> to vector<2x512xf32>
    %376 = vector.extract_strided_slice %371 {offsets = [0, 0], sizes = [2, 512], strides = [1, 1]} : vector<2x1024xf32> to vector<2x512xf32>
    %377 = arith.addf %375, %376 : vector<2x512xf32>
    %378 = arith.index_cast %369 : i32 to index
    %c0_84 = arith.constant 0 : index
    %c0_85 = arith.constant 0 : index
    %379 = vector.load %arg4[%378, %c0_84, %c0_85] : memref<8x2x512xbf16, #tpu.memory_space<vmem>>, vector<1x2x512xbf16>
    %380 = vector.shape_cast %379 : vector<1x2x512xbf16> to vector<2x512xbf16>
    %381 = arith.extf %380 : vector<2x512xbf16> to vector<2x512xf32>
    %382 = vector.extract_strided_slice %371 {offsets = [0, 512], sizes = [2, 512], strides = [1, 1]} : vector<2x1024xf32> to vector<2x512xf32>
    %383 = arith.addf %381, %382 : vector<2x512xf32>
    %384 = vector.extract_strided_slice %368 {offsets = [0, 0], sizes = [2, 128], strides = [1, 1]} : vector<2x256xf32> to vector<2x128xf32>
    %385 = vector.extract_strided_slice %377 {offsets = [0, 0], sizes = [2, 128], strides = [1, 1]} : vector<2x512xf32> to vector<2x128xf32>
    %386 = arith.negf %385 : vector<2x128xf32>
    %387 = math.exp %386 : vector<2x128xf32>
    %cst_86 = arith.constant 1.000000e+00 : f32
    %388 = vector.broadcast %cst_86 : f32 to vector<2x128xf32>
    %389 = arith.addf %388, %387 : vector<2x128xf32>
    %390 = arith.divf %388, %389 : vector<2x128xf32>
    %391 = vector.extract_strided_slice %377 {offsets = [0, 128], sizes = [2, 128], strides = [1, 1]} : vector<2x512xf32> to vector<2x128xf32>
    %392 = arith.negf %391 : vector<2x128xf32>
    %393 = math.exp %392 : vector<2x128xf32>
    %cst_87 = arith.constant 1.000000e+00 : f32
    %394 = vector.broadcast %cst_87 : f32 to vector<2x128xf32>
    %395 = arith.addf %394, %393 : vector<2x128xf32>
    %396 = arith.divf %394, %395 : vector<2x128xf32>
    %397 = vector.extract_strided_slice %377 {offsets = [0, 256], sizes = [2, 128], strides = [1, 1]} : vector<2x512xf32> to vector<2x128xf32>
    %398 = math.tanh %397 : vector<2x128xf32>
    %399 = vector.extract_strided_slice %377 {offsets = [0, 384], sizes = [2, 128], strides = [1, 1]} : vector<2x512xf32> to vector<2x128xf32>
    %400 = arith.negf %399 : vector<2x128xf32>
    %401 = math.exp %400 : vector<2x128xf32>
    %cst_88 = arith.constant 1.000000e+00 : f32
    %402 = vector.broadcast %cst_88 : f32 to vector<2x128xf32>
    %403 = arith.addf %402, %401 : vector<2x128xf32>
    %404 = arith.divf %402, %403 : vector<2x128xf32>
    %405 = arith.mulf %396, %384 : vector<2x128xf32>
    %406 = arith.mulf %390, %398 : vector<2x128xf32>
    %407 = arith.addf %405, %406 : vector<2x128xf32>
    %408 = math.tanh %407 : vector<2x128xf32>
    %409 = arith.mulf %404, %408 : vector<2x128xf32>
    %410 = vector.extract_strided_slice %368 {offsets = [0, 128], sizes = [2, 128], strides = [1, 1]} : vector<2x256xf32> to vector<2x128xf32>
    %411 = vector.extract_strided_slice %383 {offsets = [0, 0], sizes = [2, 128], strides = [1, 1]} : vector<2x512xf32> to vector<2x128xf32>
    %412 = arith.negf %411 : vector<2x128xf32>
    %413 = math.exp %412 : vector<2x128xf32>
    %cst_89 = arith.constant 1.000000e+00 : f32
    %414 = vector.broadcast %cst_89 : f32 to vector<2x128xf32>
    %415 = arith.addf %414, %413 : vector<2x128xf32>
    %416 = arith.divf %414, %415 : vector<2x128xf32>
    %417 = vector.extract_strided_slice %383 {offsets = [0, 128], sizes = [2, 128], strides = [1, 1]} : vector<2x512xf32> to vector<2x128xf32>
    %418 = arith.negf %417 : vector<2x128xf32>
    %419 = math.exp %418 : vector<2x128xf32>
    %cst_90 = arith.constant 1.000000e+00 : f32
    %420 = vector.broadcast %cst_90 : f32 to vector<2x128xf32>
    %421 = arith.addf %420, %419 : vector<2x128xf32>
    %422 = arith.divf %420, %421 : vector<2x128xf32>
    %423 = vector.extract_strided_slice %383 {offsets = [0, 256], sizes = [2, 128], strides = [1, 1]} : vector<2x512xf32> to vector<2x128xf32>
    %424 = math.tanh %423 : vector<2x128xf32>
    %425 = vector.extract_strided_slice %383 {offsets = [0, 384], sizes = [2, 128], strides = [1, 1]} : vector<2x512xf32> to vector<2x128xf32>
    %426 = arith.negf %425 : vector<2x128xf32>
    %427 = math.exp %426 : vector<2x128xf32>
    %cst_91 = arith.constant 1.000000e+00 : f32
    %428 = vector.broadcast %cst_91 : f32 to vector<2x128xf32>
    %429 = arith.addf %428, %427 : vector<2x128xf32>
    %430 = arith.divf %428, %429 : vector<2x128xf32>
    %431 = arith.mulf %422, %410 : vector<2x128xf32>
    %432 = arith.mulf %416, %424 : vector<2x128xf32>
    %433 = arith.addf %431, %432 : vector<2x128xf32>
    %434 = math.tanh %433 : vector<2x128xf32>
    %435 = arith.mulf %430, %434 : vector<2x128xf32>
    %436 = tpu.concatenate %409, %435 in 1 : vector<2x128xf32>, vector<2x128xf32> -> vector<2x256xf32>
    %437 = tpu.concatenate %407, %433 in 1 : vector<2x128xf32>, vector<2x128xf32> -> vector<2x256xf32>
    %438 = vector.broadcast %c4_i32 : i32 to vector<2x256xi32>
    %439 = arith.muli %18, %438 : vector<2x256xi32>
    %440 = arith.addi %15, %439 : vector<2x256xi32>
    %441 = arith.cmpi slt, %440, %4 : vector<2x256xi32>
    %cst_92 = arith.constant 0.000000e+00 : f32
    %442 = vector.broadcast %cst_92 : f32 to vector<2x256xf32>
    %443 = arith.select %441, %436, %442 : vector<2x256xi1>, vector<2x256xf32>
    %444 = vector.extract_strided_slice %443 {offsets = [0, 0], sizes = [2, 128], strides = [1, 1]} : vector<2x256xf32> to vector<2x128xf32>
    %445 = arith.index_cast %c4_i32 : i32 to index
    %c0_93 = arith.constant 0 : index
    %c0_94 = arith.constant 0 : index
    %446 = vector.load %arg6[%445, %c0_93, %c0_94] : memref<8x2x128xf32, #tpu.memory_space<vmem>>, vector<1x2x128xf32>
    %447 = vector.shape_cast %446 : vector<1x2x128xf32> to vector<2x128xf32>
    %448 = vector.shape_cast %444 : vector<2x128xf32> to vector<1x2x128xf32>
    tpu.vector_store %arg6[%445, %c0_93, %c0_94], %448 {strides = array<i32>} : memref<8x2x128xf32, #tpu.memory_space<vmem>>, vector<1x2x128xf32>,
    %449 = vector.extract_strided_slice %443 {offsets = [0, 128], sizes = [2, 128], strides = [1, 1]} : vector<2x256xf32> to vector<2x128xf32>
    %450 = arith.index_cast %369 : i32 to index
    %c0_95 = arith.constant 0 : index
    %c0_96 = arith.constant 0 : index
    %451 = vector.load %arg7[%450, %c0_95, %c0_96] : memref<8x2x128xf32, #tpu.memory_space<vmem>>, vector<1x2x128xf32>
    %452 = vector.shape_cast %451 : vector<1x2x128xf32> to vector<2x128xf32>
    %453 = vector.shape_cast %449 : vector<2x128xf32> to vector<1x2x128xf32>
    tpu.vector_store %arg7[%450, %c0_95, %c0_96], %453 {strides = array<i32>} : memref<8x2x128xf32, #tpu.memory_space<vmem>>, vector<1x2x128xf32>,
    %454 = arith.select %441, %436, %367 : vector<2x256xi1>, vector<2x256xf32>
    %455 = arith.select %441, %437, %368 : vector<2x256xi1>, vector<2x256xf32>
    %c5_i32 = arith.constant 5 : i32
    %c7_i32_97 = arith.constant 7 : i32
    %456 = arith.subi %c7_i32_97, %c5_i32 : i32
    %457 = arith.truncf %454 : vector<2x256xf32> to vector<2x256xbf16>
    %cst_98 = arith.constant dense<0.000000e+00> : vector<2x1024xf32>
    %458 = tpu.matmul %457, %3, %cst_98 {dimension_numbers = #tpu.dot_dimension_numbers<[1], [0], [0], [1], [0, 0, 1, 1], [], []>} : vector<2x256xbf16>, vector<256x1024xbf16>, vector<2x1024xf32> -> vector<2x1024xf32>
    %459 = arith.index_cast %c5_i32 : i32 to index
    %c0_99 = arith.constant 0 : index
    %c0_100 = arith.constant 0 : index
    %460 = vector.load %arg3[%459, %c0_99, %c0_100] : memref<8x2x512xbf16, #tpu.memory_space<vmem>>, vector<1x2x512xbf16>
    %461 = vector.shape_cast %460 : vector<1x2x512xbf16> to vector<2x512xbf16>
    %462 = arith.extf %461 : vector<2x512xbf16> to vector<2x512xf32>
    %463 = vector.extract_strided_slice %458 {offsets = [0, 0], sizes = [2, 512], strides = [1, 1]} : vector<2x1024xf32> to vector<2x512xf32>
    %464 = arith.addf %462, %463 : vector<2x512xf32>
    %465 = arith.index_cast %456 : i32 to index
    %c0_101 = arith.constant 0 : index
    %c0_102 = arith.constant 0 : index
    %466 = vector.load %arg4[%465, %c0_101, %c0_102] : memref<8x2x512xbf16, #tpu.memory_space<vmem>>, vector<1x2x512xbf16>
    %467 = vector.shape_cast %466 : vector<1x2x512xbf16> to vector<2x512xbf16>
    %468 = arith.extf %467 : vector<2x512xbf16> to vector<2x512xf32>
    %469 = vector.extract_strided_slice %458 {offsets = [0, 512], sizes = [2, 512], strides = [1, 1]} : vector<2x1024xf32> to vector<2x512xf32>
    %470 = arith.addf %468, %469 : vector<2x512xf32>
    %471 = vector.extract_strided_slice %455 {offsets = [0, 0], sizes = [2, 128], strides = [1, 1]} : vector<2x256xf32> to vector<2x128xf32>
    %472 = vector.extract_strided_slice %464 {offsets = [0, 0], sizes = [2, 128], strides = [1, 1]} : vector<2x512xf32> to vector<2x128xf32>
    %473 = arith.negf %472 : vector<2x128xf32>
    %474 = math.exp %473 : vector<2x128xf32>
    %cst_103 = arith.constant 1.000000e+00 : f32
    %475 = vector.broadcast %cst_103 : f32 to vector<2x128xf32>
    %476 = arith.addf %475, %474 : vector<2x128xf32>
    %477 = arith.divf %475, %476 : vector<2x128xf32>
    %478 = vector.extract_strided_slice %464 {offsets = [0, 128], sizes = [2, 128], strides = [1, 1]} : vector<2x512xf32> to vector<2x128xf32>
    %479 = arith.negf %478 : vector<2x128xf32>
    %480 = math.exp %479 : vector<2x128xf32>
    %cst_104 = arith.constant 1.000000e+00 : f32
    %481 = vector.broadcast %cst_104 : f32 to vector<2x128xf32>
    %482 = arith.addf %481, %480 : vector<2x128xf32>
    %483 = arith.divf %481, %482 : vector<2x128xf32>
    %484 = vector.extract_strided_slice %464 {offsets = [0, 256], sizes = [2, 128], strides = [1, 1]} : vector<2x512xf32> to vector<2x128xf32>
    %485 = math.tanh %484 : vector<2x128xf32>
    %486 = vector.extract_strided_slice %464 {offsets = [0, 384], sizes = [2, 128], strides = [1, 1]} : vector<2x512xf32> to vector<2x128xf32>
    %487 = arith.negf %486 : vector<2x128xf32>
    %488 = math.exp %487 : vector<2x128xf32>
    %cst_105 = arith.constant 1.000000e+00 : f32
    %489 = vector.broadcast %cst_105 : f32 to vector<2x128xf32>
    %490 = arith.addf %489, %488 : vector<2x128xf32>
    %491 = arith.divf %489, %490 : vector<2x128xf32>
    %492 = arith.mulf %483, %471 : vector<2x128xf32>
    %493 = arith.mulf %477, %485 : vector<2x128xf32>
    %494 = arith.addf %492, %493 : vector<2x128xf32>
    %495 = math.tanh %494 : vector<2x128xf32>
    %496 = arith.mulf %491, %495 : vector<2x128xf32>
    %497 = vector.extract_strided_slice %455 {offsets = [0, 128], sizes = [2, 128], strides = [1, 1]} : vector<2x256xf32> to vector<2x128xf32>
    %498 = vector.extract_strided_slice %470 {offsets = [0, 0], sizes = [2, 128], strides = [1, 1]} : vector<2x512xf32> to vector<2x128xf32>
    %499 = arith.negf %498 : vector<2x128xf32>
    %500 = math.exp %499 : vector<2x128xf32>
    %cst_106 = arith.constant 1.000000e+00 : f32
    %501 = vector.broadcast %cst_106 : f32 to vector<2x128xf32>
    %502 = arith.addf %501, %500 : vector<2x128xf32>
    %503 = arith.divf %501, %502 : vector<2x128xf32>
    %504 = vector.extract_strided_slice %470 {offsets = [0, 128], sizes = [2, 128], strides = [1, 1]} : vector<2x512xf32> to vector<2x128xf32>
    %505 = arith.negf %504 : vector<2x128xf32>
    %506 = math.exp %505 : vector<2x128xf32>
    %cst_107 = arith.constant 1.000000e+00 : f32
    %507 = vector.broadcast %cst_107 : f32 to vector<2x128xf32>
    %508 = arith.addf %507, %506 : vector<2x128xf32>
    %509 = arith.divf %507, %508 : vector<2x128xf32>
    %510 = vector.extract_strided_slice %470 {offsets = [0, 256], sizes = [2, 128], strides = [1, 1]} : vector<2x512xf32> to vector<2x128xf32>
    %511 = math.tanh %510 : vector<2x128xf32>
    %512 = vector.extract_strided_slice %470 {offsets = [0, 384], sizes = [2, 128], strides = [1, 1]} : vector<2x512xf32> to vector<2x128xf32>
    %513 = arith.negf %512 : vector<2x128xf32>
    %514 = math.exp %513 : vector<2x128xf32>
    %cst_108 = arith.constant 1.000000e+00 : f32
    %515 = vector.broadcast %cst_108 : f32 to vector<2x128xf32>
    %516 = arith.addf %515, %514 : vector<2x128xf32>
    %517 = arith.divf %515, %516 : vector<2x128xf32>
    %518 = arith.mulf %509, %497 : vector<2x128xf32>
    %519 = arith.mulf %503, %511 : vector<2x128xf32>
    %520 = arith.addf %518, %519 : vector<2x128xf32>
    %521 = math.tanh %520 : vector<2x128xf32>
    %522 = arith.mulf %517, %521 : vector<2x128xf32>
    %523 = tpu.concatenate %496, %522 in 1 : vector<2x128xf32>, vector<2x128xf32> -> vector<2x256xf32>
    %524 = tpu.concatenate %494, %520 in 1 : vector<2x128xf32>, vector<2x128xf32> -> vector<2x256xf32>
    %525 = vector.broadcast %c5_i32 : i32 to vector<2x256xi32>
    %526 = arith.muli %18, %525 : vector<2x256xi32>
    %527 = arith.addi %15, %526 : vector<2x256xi32>
    %528 = arith.cmpi slt, %527, %4 : vector<2x256xi32>
    %cst_109 = arith.constant 0.000000e+00 : f32
    %529 = vector.broadcast %cst_109 : f32 to vector<2x256xf32>
    %530 = arith.select %528, %523, %529 : vector<2x256xi1>, vector<2x256xf32>
    %531 = vector.extract_strided_slice %530 {offsets = [0, 0], sizes = [2, 128], strides = [1, 1]} : vector<2x256xf32> to vector<2x128xf32>
    %532 = arith.index_cast %c5_i32 : i32 to index
    %c0_110 = arith.constant 0 : index
    %c0_111 = arith.constant 0 : index
    %533 = vector.load %arg6[%532, %c0_110, %c0_111] : memref<8x2x128xf32, #tpu.memory_space<vmem>>, vector<1x2x128xf32>
    %534 = vector.shape_cast %533 : vector<1x2x128xf32> to vector<2x128xf32>
    %535 = vector.shape_cast %531 : vector<2x128xf32> to vector<1x2x128xf32>
    tpu.vector_store %arg6[%532, %c0_110, %c0_111], %535 {strides = array<i32>} : memref<8x2x128xf32, #tpu.memory_space<vmem>>, vector<1x2x128xf32>,
    %536 = vector.extract_strided_slice %530 {offsets = [0, 128], sizes = [2, 128], strides = [1, 1]} : vector<2x256xf32> to vector<2x128xf32>
    %537 = arith.index_cast %456 : i32 to index
    %c0_112 = arith.constant 0 : index
    %c0_113 = arith.constant 0 : index
    %538 = vector.load %arg7[%537, %c0_112, %c0_113] : memref<8x2x128xf32, #tpu.memory_space<vmem>>, vector<1x2x128xf32>
    %539 = vector.shape_cast %538 : vector<1x2x128xf32> to vector<2x128xf32>
    %540 = vector.shape_cast %536 : vector<2x128xf32> to vector<1x2x128xf32>
    tpu.vector_store %arg7[%537, %c0_112, %c0_113], %540 {strides = array<i32>} : memref<8x2x128xf32, #tpu.memory_space<vmem>>, vector<1x2x128xf32>,
    %541 = arith.select %528, %523, %454 : vector<2x256xi1>, vector<2x256xf32>
    %542 = arith.select %528, %524, %455 : vector<2x256xi1>, vector<2x256xf32>
    %c6_i32 = arith.constant 6 : i32
    %c7_i32_114 = arith.constant 7 : i32
    %543 = arith.subi %c7_i32_114, %c6_i32 : i32
    %544 = arith.truncf %541 : vector<2x256xf32> to vector<2x256xbf16>
    %cst_115 = arith.constant dense<0.000000e+00> : vector<2x1024xf32>
    %545 = tpu.matmul %544, %3, %cst_115 {dimension_numbers = #tpu.dot_dimension_numbers<[1], [0], [0], [1], [0, 0, 1, 1], [], []>} : vector<2x256xbf16>, vector<256x1024xbf16>, vector<2x1024xf32> -> vector<2x1024xf32>
    %546 = arith.index_cast %c6_i32 : i32 to index
    %c0_116 = arith.constant 0 : index
    %c0_117 = arith.constant 0 : index
    %547 = vector.load %arg3[%546, %c0_116, %c0_117] : memref<8x2x512xbf16, #tpu.memory_space<vmem>>, vector<1x2x512xbf16>
    %548 = vector.shape_cast %547 : vector<1x2x512xbf16> to vector<2x512xbf16>
    %549 = arith.extf %548 : vector<2x512xbf16> to vector<2x512xf32>
    %550 = vector.extract_strided_slice %545 {offsets = [0, 0], sizes = [2, 512], strides = [1, 1]} : vector<2x1024xf32> to vector<2x512xf32>
    %551 = arith.addf %549, %550 : vector<2x512xf32>
    %552 = arith.index_cast %543 : i32 to index
    %c0_118 = arith.constant 0 : index
    %c0_119 = arith.constant 0 : index
    %553 = vector.load %arg4[%552, %c0_118, %c0_119] : memref<8x2x512xbf16, #tpu.memory_space<vmem>>, vector<1x2x512xbf16>
    %554 = vector.shape_cast %553 : vector<1x2x512xbf16> to vector<2x512xbf16>
    %555 = arith.extf %554 : vector<2x512xbf16> to vector<2x512xf32>
    %556 = vector.extract_strided_slice %545 {offsets = [0, 512], sizes = [2, 512], strides = [1, 1]} : vector<2x1024xf32> to vector<2x512xf32>
    %557 = arith.addf %555, %556 : vector<2x512xf32>
    %558 = vector.extract_strided_slice %542 {offsets = [0, 0], sizes = [2, 128], strides = [1, 1]} : vector<2x256xf32> to vector<2x128xf32>
    %559 = vector.extract_strided_slice %551 {offsets = [0, 0], sizes = [2, 128], strides = [1, 1]} : vector<2x512xf32> to vector<2x128xf32>
    %560 = arith.negf %559 : vector<2x128xf32>
    %561 = math.exp %560 : vector<2x128xf32>
    %cst_120 = arith.constant 1.000000e+00 : f32
    %562 = vector.broadcast %cst_120 : f32 to vector<2x128xf32>
    %563 = arith.addf %562, %561 : vector<2x128xf32>
    %564 = arith.divf %562, %563 : vector<2x128xf32>
    %565 = vector.extract_strided_slice %551 {offsets = [0, 128], sizes = [2, 128], strides = [1, 1]} : vector<2x512xf32> to vector<2x128xf32>
    %566 = arith.negf %565 : vector<2x128xf32>
    %567 = math.exp %566 : vector<2x128xf32>
    %cst_121 = arith.constant 1.000000e+00 : f32
    %568 = vector.broadcast %cst_121 : f32 to vector<2x128xf32>
    %569 = arith.addf %568, %567 : vector<2x128xf32>
    %570 = arith.divf %568, %569 : vector<2x128xf32>
    %571 = vector.extract_strided_slice %551 {offsets = [0, 256], sizes = [2, 128], strides = [1, 1]} : vector<2x512xf32> to vector<2x128xf32>
    %572 = math.tanh %571 : vector<2x128xf32>
    %573 = vector.extract_strided_slice %551 {offsets = [0, 384], sizes = [2, 128], strides = [1, 1]} : vector<2x512xf32> to vector<2x128xf32>
    %574 = arith.negf %573 : vector<2x128xf32>
    %575 = math.exp %574 : vector<2x128xf32>
    %cst_122 = arith.constant 1.000000e+00 : f32
    %576 = vector.broadcast %cst_122 : f32 to vector<2x128xf32>
    %577 = arith.addf %576, %575 : vector<2x128xf32>
    %578 = arith.divf %576, %577 : vector<2x128xf32>
    %579 = arith.mulf %570, %558 : vector<2x128xf32>
    %580 = arith.mulf %564, %572 : vector<2x128xf32>
    %581 = arith.addf %579, %580 : vector<2x128xf32>
    %582 = math.tanh %581 : vector<2x128xf32>
    %583 = arith.mulf %578, %582 : vector<2x128xf32>
    %584 = vector.extract_strided_slice %542 {offsets = [0, 128], sizes = [2, 128], strides = [1, 1]} : vector<2x256xf32> to vector<2x128xf32>
    %585 = vector.extract_strided_slice %557 {offsets = [0, 0], sizes = [2, 128], strides = [1, 1]} : vector<2x512xf32> to vector<2x128xf32>
    %586 = arith.negf %585 : vector<2x128xf32>
    %587 = math.exp %586 : vector<2x128xf32>
    %cst_123 = arith.constant 1.000000e+00 : f32
    %588 = vector.broadcast %cst_123 : f32 to vector<2x128xf32>
    %589 = arith.addf %588, %587 : vector<2x128xf32>
    %590 = arith.divf %588, %589 : vector<2x128xf32>
    %591 = vector.extract_strided_slice %557 {offsets = [0, 128], sizes = [2, 128], strides = [1, 1]} : vector<2x512xf32> to vector<2x128xf32>
    %592 = arith.negf %591 : vector<2x128xf32>
    %593 = math.exp %592 : vector<2x128xf32>
    %cst_124 = arith.constant 1.000000e+00 : f32
    %594 = vector.broadcast %cst_124 : f32 to vector<2x128xf32>
    %595 = arith.addf %594, %593 : vector<2x128xf32>
    %596 = arith.divf %594, %595 : vector<2x128xf32>
    %597 = vector.extract_strided_slice %557 {offsets = [0, 256], sizes = [2, 128], strides = [1, 1]} : vector<2x512xf32> to vector<2x128xf32>
    %598 = math.tanh %597 : vector<2x128xf32>
    %599 = vector.extract_strided_slice %557 {offsets = [0, 384], sizes = [2, 128], strides = [1, 1]} : vector<2x512xf32> to vector<2x128xf32>
    %600 = arith.negf %599 : vector<2x128xf32>
    %601 = math.exp %600 : vector<2x128xf32>
    %cst_125 = arith.constant 1.000000e+00 : f32
    %602 = vector.broadcast %cst_125 : f32 to vector<2x128xf32>
    %603 = arith.addf %602, %601 : vector<2x128xf32>
    %604 = arith.divf %602, %603 : vector<2x128xf32>
    %605 = arith.mulf %596, %584 : vector<2x128xf32>
    %606 = arith.mulf %590, %598 : vector<2x128xf32>
    %607 = arith.addf %605, %606 : vector<2x128xf32>
    %608 = math.tanh %607 : vector<2x128xf32>
    %609 = arith.mulf %604, %608 : vector<2x128xf32>
    %610 = tpu.concatenate %583, %609 in 1 : vector<2x128xf32>, vector<2x128xf32> -> vector<2x256xf32>
    %611 = tpu.concatenate %581, %607 in 1 : vector<2x128xf32>, vector<2x128xf32> -> vector<2x256xf32>
    %612 = vector.broadcast %c6_i32 : i32 to vector<2x256xi32>
    %613 = arith.muli %18, %612 : vector<2x256xi32>
    %614 = arith.addi %15, %613 : vector<2x256xi32>
    %615 = arith.cmpi slt, %614, %4 : vector<2x256xi32>
    %cst_126 = arith.constant 0.000000e+00 : f32
    %616 = vector.broadcast %cst_126 : f32 to vector<2x256xf32>
    %617 = arith.select %615, %610, %616 : vector<2x256xi1>, vector<2x256xf32>
    %618 = vector.extract_strided_slice %617 {offsets = [0, 0], sizes = [2, 128], strides = [1, 1]} : vector<2x256xf32> to vector<2x128xf32>
    %619 = arith.index_cast %c6_i32 : i32 to index
    %c0_127 = arith.constant 0 : index
    %c0_128 = arith.constant 0 : index
    %620 = vector.load %arg6[%619, %c0_127, %c0_128] : memref<8x2x128xf32, #tpu.memory_space<vmem>>, vector<1x2x128xf32>
    %621 = vector.shape_cast %620 : vector<1x2x128xf32> to vector<2x128xf32>
    %622 = vector.shape_cast %618 : vector<2x128xf32> to vector<1x2x128xf32>
    tpu.vector_store %arg6[%619, %c0_127, %c0_128], %622 {strides = array<i32>} : memref<8x2x128xf32, #tpu.memory_space<vmem>>, vector<1x2x128xf32>,
    %623 = vector.extract_strided_slice %617 {offsets = [0, 128], sizes = [2, 128], strides = [1, 1]} : vector<2x256xf32> to vector<2x128xf32>
    %624 = arith.index_cast %543 : i32 to index
    %c0_129 = arith.constant 0 : index
    %c0_130 = arith.constant 0 : index
    %625 = vector.load %arg7[%624, %c0_129, %c0_130] : memref<8x2x128xf32, #tpu.memory_space<vmem>>, vector<1x2x128xf32>
    %626 = vector.shape_cast %625 : vector<1x2x128xf32> to vector<2x128xf32>
    %627 = vector.shape_cast %623 : vector<2x128xf32> to vector<1x2x128xf32>
    tpu.vector_store %arg7[%624, %c0_129, %c0_130], %627 {strides = array<i32>} : memref<8x2x128xf32, #tpu.memory_space<vmem>>, vector<1x2x128xf32>,
    %628 = arith.select %615, %610, %541 : vector<2x256xi1>, vector<2x256xf32>
    %629 = arith.select %615, %611, %542 : vector<2x256xi1>, vector<2x256xf32>
    %c7_i32_131 = arith.constant 7 : i32
    %c7_i32_132 = arith.constant 7 : i32
    %630 = arith.subi %c7_i32_132, %c7_i32_131 : i32
    %631 = arith.truncf %628 : vector<2x256xf32> to vector<2x256xbf16>
    %cst_133 = arith.constant dense<0.000000e+00> : vector<2x1024xf32>
    %632 = tpu.matmul %631, %3, %cst_133 {dimension_numbers = #tpu.dot_dimension_numbers<[1], [0], [0], [1], [0, 0, 1, 1], [], []>} : vector<2x256xbf16>, vector<256x1024xbf16>, vector<2x1024xf32> -> vector<2x1024xf32>
    %633 = arith.index_cast %c7_i32_131 : i32 to index
    %c0_134 = arith.constant 0 : index
    %c0_135 = arith.constant 0 : index
    %634 = vector.load %arg3[%633, %c0_134, %c0_135] : memref<8x2x512xbf16, #tpu.memory_space<vmem>>, vector<1x2x512xbf16>
    %635 = vector.shape_cast %634 : vector<1x2x512xbf16> to vector<2x512xbf16>
    %636 = arith.extf %635 : vector<2x512xbf16> to vector<2x512xf32>
    %637 = vector.extract_strided_slice %632 {offsets = [0, 0], sizes = [2, 512], strides = [1, 1]} : vector<2x1024xf32> to vector<2x512xf32>
    %638 = arith.addf %636, %637 : vector<2x512xf32>
    %639 = arith.index_cast %630 : i32 to index
    %c0_136 = arith.constant 0 : index
    %c0_137 = arith.constant 0 : index
    %640 = vector.load %arg4[%639, %c0_136, %c0_137] : memref<8x2x512xbf16, #tpu.memory_space<vmem>>, vector<1x2x512xbf16>
    %641 = vector.shape_cast %640 : vector<1x2x512xbf16> to vector<2x512xbf16>
    %642 = arith.extf %641 : vector<2x512xbf16> to vector<2x512xf32>
    %643 = vector.extract_strided_slice %632 {offsets = [0, 512], sizes = [2, 512], strides = [1, 1]} : vector<2x1024xf32> to vector<2x512xf32>
    %644 = arith.addf %642, %643 : vector<2x512xf32>
    %645 = vector.extract_strided_slice %629 {offsets = [0, 0], sizes = [2, 128], strides = [1, 1]} : vector<2x256xf32> to vector<2x128xf32>
    %646 = vector.extract_strided_slice %638 {offsets = [0, 0], sizes = [2, 128], strides = [1, 1]} : vector<2x512xf32> to vector<2x128xf32>
    %647 = arith.negf %646 : vector<2x128xf32>
    %648 = math.exp %647 : vector<2x128xf32>
    %cst_138 = arith.constant 1.000000e+00 : f32
    %649 = vector.broadcast %cst_138 : f32 to vector<2x128xf32>
    %650 = arith.addf %649, %648 : vector<2x128xf32>
    %651 = arith.divf %649, %650 : vector<2x128xf32>
    %652 = vector.extract_strided_slice %638 {offsets = [0, 128], sizes = [2, 128], strides = [1, 1]} : vector<2x512xf32> to vector<2x128xf32>
    %653 = arith.negf %652 : vector<2x128xf32>
    %654 = math.exp %653 : vector<2x128xf32>
    %cst_139 = arith.constant 1.000000e+00 : f32
    %655 = vector.broadcast %cst_139 : f32 to vector<2x128xf32>
    %656 = arith.addf %655, %654 : vector<2x128xf32>
    %657 = arith.divf %655, %656 : vector<2x128xf32>
    %658 = vector.extract_strided_slice %638 {offsets = [0, 256], sizes = [2, 128], strides = [1, 1]} : vector<2x512xf32> to vector<2x128xf32>
    %659 = math.tanh %658 : vector<2x128xf32>
    %660 = vector.extract_strided_slice %638 {offsets = [0, 384], sizes = [2, 128], strides = [1, 1]} : vector<2x512xf32> to vector<2x128xf32>
    %661 = arith.negf %660 : vector<2x128xf32>
    %662 = math.exp %661 : vector<2x128xf32>
    %cst_140 = arith.constant 1.000000e+00 : f32
    %663 = vector.broadcast %cst_140 : f32 to vector<2x128xf32>
    %664 = arith.addf %663, %662 : vector<2x128xf32>
    %665 = arith.divf %663, %664 : vector<2x128xf32>
    %666 = arith.mulf %657, %645 : vector<2x128xf32>
    %667 = arith.mulf %651, %659 : vector<2x128xf32>
    %668 = arith.addf %666, %667 : vector<2x128xf32>
    %669 = math.tanh %668 : vector<2x128xf32>
    %670 = arith.mulf %665, %669 : vector<2x128xf32>
    %671 = vector.extract_strided_slice %629 {offsets = [0, 128], sizes = [2, 128], strides = [1, 1]} : vector<2x256xf32> to vector<2x128xf32>
    %672 = vector.extract_strided_slice %644 {offsets = [0, 0], sizes = [2, 128], strides = [1, 1]} : vector<2x512xf32> to vector<2x128xf32>
    %673 = arith.negf %672 : vector<2x128xf32>
    %674 = math.exp %673 : vector<2x128xf32>
    %cst_141 = arith.constant 1.000000e+00 : f32
    %675 = vector.broadcast %cst_141 : f32 to vector<2x128xf32>
    %676 = arith.addf %675, %674 : vector<2x128xf32>
    %677 = arith.divf %675, %676 : vector<2x128xf32>
    %678 = vector.extract_strided_slice %644 {offsets = [0, 128], sizes = [2, 128], strides = [1, 1]} : vector<2x512xf32> to vector<2x128xf32>
    %679 = arith.negf %678 : vector<2x128xf32>
    %680 = math.exp %679 : vector<2x128xf32>
    %cst_142 = arith.constant 1.000000e+00 : f32
    %681 = vector.broadcast %cst_142 : f32 to vector<2x128xf32>
    %682 = arith.addf %681, %680 : vector<2x128xf32>
    %683 = arith.divf %681, %682 : vector<2x128xf32>
    %684 = vector.extract_strided_slice %644 {offsets = [0, 256], sizes = [2, 128], strides = [1, 1]} : vector<2x512xf32> to vector<2x128xf32>
    %685 = math.tanh %684 : vector<2x128xf32>
    %686 = vector.extract_strided_slice %644 {offsets = [0, 384], sizes = [2, 128], strides = [1, 1]} : vector<2x512xf32> to vector<2x128xf32>
    %687 = arith.negf %686 : vector<2x128xf32>
    %688 = math.exp %687 : vector<2x128xf32>
    %cst_143 = arith.constant 1.000000e+00 : f32
    %689 = vector.broadcast %cst_143 : f32 to vector<2x128xf32>
    %690 = arith.addf %689, %688 : vector<2x128xf32>
    %691 = arith.divf %689, %690 : vector<2x128xf32>
    %692 = arith.mulf %683, %671 : vector<2x128xf32>
    %693 = arith.mulf %677, %685 : vector<2x128xf32>
    %694 = arith.addf %692, %693 : vector<2x128xf32>
    %695 = math.tanh %694 : vector<2x128xf32>
    %696 = arith.mulf %691, %695 : vector<2x128xf32>
    %697 = tpu.concatenate %670, %696 in 1 : vector<2x128xf32>, vector<2x128xf32> -> vector<2x256xf32>
    %698 = tpu.concatenate %668, %694 in 1 : vector<2x128xf32>, vector<2x128xf32> -> vector<2x256xf32>
    %699 = vector.broadcast %c7_i32_131 : i32 to vector<2x256xi32>
    %700 = arith.muli %18, %699 : vector<2x256xi32>
    %701 = arith.addi %15, %700 : vector<2x256xi32>
    %702 = arith.cmpi slt, %701, %4 : vector<2x256xi32>
    %cst_144 = arith.constant 0.000000e+00 : f32
    %703 = vector.broadcast %cst_144 : f32 to vector<2x256xf32>
    %704 = arith.select %702, %697, %703 : vector<2x256xi1>, vector<2x256xf32>
    %705 = vector.extract_strided_slice %704 {offsets = [0, 0], sizes = [2, 128], strides = [1, 1]} : vector<2x256xf32> to vector<2x128xf32>
    %706 = arith.index_cast %c7_i32_131 : i32 to index
    %c0_145 = arith.constant 0 : index
    %c0_146 = arith.constant 0 : index
    %707 = vector.load %arg6[%706, %c0_145, %c0_146] : memref<8x2x128xf32, #tpu.memory_space<vmem>>, vector<1x2x128xf32>
    %708 = vector.shape_cast %707 : vector<1x2x128xf32> to vector<2x128xf32>
    %709 = vector.shape_cast %705 : vector<2x128xf32> to vector<1x2x128xf32>
    tpu.vector_store %arg6[%706, %c0_145, %c0_146], %709 {strides = array<i32>} : memref<8x2x128xf32, #tpu.memory_space<vmem>>, vector<1x2x128xf32>,
    %710 = vector.extract_strided_slice %704 {offsets = [0, 128], sizes = [2, 128], strides = [1, 1]} : vector<2x256xf32> to vector<2x128xf32>
    %711 = arith.index_cast %630 : i32 to index
    %c0_147 = arith.constant 0 : index
    %c0_148 = arith.constant 0 : index
    %712 = vector.load %arg7[%711, %c0_147, %c0_148] : memref<8x2x128xf32, #tpu.memory_space<vmem>>, vector<1x2x128xf32>
    %713 = vector.shape_cast %712 : vector<1x2x128xf32> to vector<2x128xf32>
    %714 = vector.shape_cast %710 : vector<2x128xf32> to vector<1x2x128xf32>
    tpu.vector_store %arg7[%711, %c0_147, %c0_148], %714 {strides = array<i32>} : memref<8x2x128xf32, #tpu.memory_space<vmem>>, vector<1x2x128xf32>,
    %715 = arith.select %702, %697, %628 : vector<2x256xi1>, vector<2x256xf32>
    %716 = arith.select %702, %698, %629 : vector<2x256xi1>, vector<2x256xf32>
    %c8_i32_149 = arith.constant 8 : i32
    %c0_150 = arith.constant 0 : index
    %c0_151 = arith.constant 0 : index
    %717 = vector.load %arg8[%c0_150, %c0_151] : memref<2x256xf32, #tpu.memory_space<vmem>>, vector<2x256xf32>
    tpu.vector_store %arg8[%c0_150, %c0_151], %715 {strides = array<i32>} : memref<2x256xf32, #tpu.memory_space<vmem>>, vector<2x256xf32>,
    %c0_152 = arith.constant 0 : index
    %c0_153 = arith.constant 0 : index
    %718 = vector.load %arg9[%c0_152, %c0_153] : memref<2x256xf32, #tpu.memory_space<vmem>>, vector<2x256xf32>
    tpu.vector_store %arg9[%c0_152, %c0_153], %716 {strides = array<i32>} : memref<2x256xf32, #tpu.memory_space<vmem>>, vector<2x256xf32>,
    return
  }
  func.func @transform_0(%arg0: i32, %arg1: i32) -> (i32, i32) {
    %c0_i32 = arith.constant 0 : i32
    %c0_i32_0 = arith.constant 0 : i32
    return %arg0, %c0_i32 : i32, i32
  }
  func.func @transform_1(%arg0: i32, %arg1: i32) -> (i32, i32, i32) {
    %c0_i32 = arith.constant 0 : i32
    %c0_i32_0 = arith.constant 0 : i32
    return %arg1, %arg0, %c0_i32 : i32, i32, i32
  }
  func.func @transform_2(%arg0: i32, %arg1: i32) -> (i32, i32, i32) {
    %c2_i32 = arith.constant 2 : i32
    %0 = arith.subi %c2_i32, %arg1 : i32
    %c1_i32 = arith.constant 1 : i32
    %c0_i32 = arith.constant 0 : i32
    return %0, %arg0, %c1_i32 : i32, i32, i32
  }
  func.func @transform_3(%arg0: i32, %arg1: i32) -> (i32, i32) {
    %c0_i32 = arith.constant 0 : i32
    %c0_i32_0 = arith.constant 0 : i32
    %c0_i32_1 = arith.constant 0 : i32
    return %c0_i32, %c0_i32_0 : i32, i32
  }
  func.func @transform_4(%arg0: i32, %arg1: i32) -> (i32, i32, i32) {
    %c0_i32 = arith.constant 0 : i32
    %c0_i32_0 = arith.constant 0 : i32
    return %arg1, %arg0, %c0_i32 : i32, i32, i32
  }
  func.func @transform_5(%arg0: i32, %arg1: i32) -> (i32, i32, i32) {
    %c2_i32 = arith.constant 2 : i32
    %0 = arith.subi %c2_i32, %arg1 : i32
    %c0_i32 = arith.constant 0 : i32
    %c0_i32_0 = arith.constant 0 : i32
    return %0, %arg0, %c0_i32 : i32, i32, i32
  }
  func.func @transform_6(%arg0: i32, %arg1: i32) -> (i32, i32) {
    %c0_i32 = arith.constant 0 : i32
    %c0_i32_0 = arith.constant 0 : i32
    return %arg0, %c0_i32 : i32, i32
  }
}

</mosaic_0001>

<llo_original>
// kernel: encoder_forward.1
$region0: #{encoder_forward.1}
  #allocation0 [shape = 'u32[]', space=smem, size = 0x4, offset = 0x4, fixed_abs, tag = 'smem constant byte address 0x4 - core index']
  #allocation1 [shape = 'u32[72,128]{1,0:T(1,128)}', space=vmem, size = 0x9000, scoped, tag = 'internal scratch']
  #allocation2 [shape = 'f32[2,256]{1,0:T(2,128)}', space=vmem, size = 0x800, scoped, tag = 'scratch operand']
  %s0 = inlined_call_operand.vmem [shape: s32[2,256], index: 0, kind: input, shape index: {}]
  %s1 = inlined_call_operand.vmem [shape: bf16[24,2,1024], index: 1, kind: input, shape index: {}, may-alias: {1,2}]
  %s2 = inlined_call_operand.vmem [shape: bf16[24,2,1024], index: 2, kind: input, shape index: {}, may-alias: {1,2}]
  %s3 = inlined_call_operand.vmem [shape: bf16[256,1024], index: 3, kind: input, shape index: {}]
  %s4 = inlined_call_operand.vmem [shape: f32[24,2,128], index: 4, kind: output, shape index: {0}]
  %s5 = inlined_call_operand.vmem [shape: f32[24,2,128], index: 5, kind: output, shape index: {1}]
  %s6 = inlined_call_operand.hbm [shape: f32[2,256], index: 6, kind: output, shape index: {2}]
  %7 = xla_tuple %s4, %s5, %s6
  %s8 = sld [smem:[#allocation0]]
  $region151: #{encoder_forward.1} parent=0
    _
  %s10 = ssub.s32 1, %s8
  %s11 = scalar_select 0, %s10, %s8
  $region1: #{encoder_forward.1} parent=0
    #allocation3 [shape = 'u8[32768]{0}', space=vmem, size = 0x8000, scoped, tag = 'input window, operand 1']
    #allocation4 [shape = 'u8[32768]{0}', space=vmem, size = 0x8000, scoped, tag = 'input window, operand 2']
    #allocation5 [shape = 'u8[2048]{0}', space=vmem, size = 0x800, scoped, tag = 'output window, operand 2, single buffered']
    #allocation6 [shape = 's32[2]{0}', space=sflag, size = 0x8, scoped, tag = 'scoped memory for encoder_forward.1']
    %12 = vsyncpa [#allocation6], 0
    loop: start=0, step=1, limit=5
    $region2: #{encoder_forward.1} parent=1 // loop_pre_header
      _
    $region3: #{encoder_forward.1} parent=1 // loop_header
      %s14 = sphi 0, %s18
      %p15 = scmp.ge.s32.totalorder %s14, 5
      %s21 = sphi 0, %s33
      %s22 = sphi 0, %s29
      %s23 = sphi 0, %s21
      %s24 = sphi 0, %s22
      %s25 = sphi 0, %s23
      %s26 = sphi 0, %s24
      %s36 = sphi 0, %s38
      %s39 = sphi 0, %s36
      %s40 = sphi 0, %s39
      %s56 = sphi 0, %s40
      %s64 = sphi 0, %s66
      %s67 = sphi 0, %s64
      %s68 = sphi 0, %s67
      %s84 = sphi 0, %s68
      %s94 = sphi 0, %s96
      %s97 = sphi 0, %s94
      %s98 = sphi 0, %s97
      %s114 = sphi 0, %s98
      %s118 = sphi 0, %s118
      %s120 = sphi 0, %s118
      %s121 = sphi 0, %s120
      %s135 = sphi 0, %s121
      %s143 = sphi 0, %s145
      %s146 = sphi 0, %s143
      %s147 = sphi 0, %s146
      %s163 = sphi 0, %s147
      %s173 = sphi 0, %s175
      %s176 = sphi 0, %s173
      %s177 = sphi 0, %s176
      %s193 = sphi 0, %s177
      %s199 = sphi 0, %s201
      %s202 = sphi 0, %s199
      %s203 = sphi 0, %s202
      %s219 = sphi 0, %s203
    $region4: #{encoder_forward.1} parent=1 // loop_header_branch
      %17 = sbr.rel (%p15) target = $region8
    $region5: #{encoder_forward.1} parent=1 // loop_body
      %s19 = ssub.s32 %s14, 1
      %s20 = ssub.s32 %s14, 2
      %s27 = sadd.s32 1, %s22
      %p28 = scmp.ge.s32.totalorder %s27, 3
      %s29 = scalar_select %p28, 0, %s27
      %s30 = sadd.s32 1, %s21
      %s31 = scalar_select %p28, %s30, %s21
      %p32 = scmp.ge.s32.totalorder %s31, 1
      %s33 = scalar_select %p32, 0, %s31
      %s34 = ssub.s32 %s21, %s33
      %p35 = scmp.eq.s32.totalorder %s34, 0
      %s37 = sadd.s32 %s36, 1
      %s38 = scalar_select %p35, %s36, %s37
      %p41 = pneg %p35
      %p42 = scmp.eq.s32.totalorder %s14, 2
      %p43 = por %p41, %p42
      %p44 = scmp.ne.s32.totalorder %s36, %s39
      %p45 = scmp.eq.s32.totalorder %s14, 0
      %p46 = por %p44, %p45
      %p47 = scmp.ne.s32.totalorder %s36, %s39
      %p48 = scmp.eq.s32.totalorder %s19, 2
      %p49 = por %p47, %p48
      %p50 = scmp.ne.s32.totalorder %s39, %s40
      %p51 = scmp.eq.s32.totalorder %s19, 0
      %p52 = por %p50, %p51
      %p53 = scmp.ne.s32.totalorder %s39, %s40
      %p54 = scmp.eq.s32.totalorder %s20, 2
      %p55 = por %p53, %p54
      %p57 = scmp.ne.s32.totalorder %s40, %s56
      %p58 = scmp.eq.s32.totalorder %s20, 0
      %p59 = por %p57, %p58
      %s60 = ssub.s32 %s22, %s29
      %s61 = ssub.s32 %s21, %s33
      %s62 = sor.u32 %s60, %s61
      %p63 = scmp.eq.s32.totalorder %s62, 0
      %s65 = sadd.s32 %s64, 1
      %s66 = scalar_select %p63, %s64, %s65
      %p69 = pneg %p63
      %p70 = scmp.eq.s32.totalorder %s14, 2
      %p71 = por %p69, %p70
      %p72 = scmp.ne.s32.totalorder %s64, %s67
      %p73 = scmp.eq.s32.totalorder %s14, 0
      %p74 = por %p72, %p73
      %p75 = scmp.ne.s32.totalorder %s64, %s67
      %p76 = scmp.eq.s32.totalorder %s19, 2
      %p77 = por %p75, %p76
      %p78 = scmp.ne.s32.totalorder %s67, %s68
      %p79 = scmp.eq.s32.totalorder %s19, 0
      %p80 = por %p78, %p79
      %p81 = scmp.ne.s32.totalorder %s67, %s68
      %p82 = scmp.eq.s32.totalorder %s20, 2
      %p83 = por %p81, %p82
      %p85 = scmp.ne.s32.totalorder %s68, %s84
      %p86 = scmp.eq.s32.totalorder %s20, 0
      %p87 = por %p85, %p86
      %s88 = ssub.s32 2, %s22
      %s89 = ssub.s32 2, %s29
      %s90 = ssub.s32 %s88, %s89
      %s91 = ssub.s32 %s21, %s33
      %s92 = sor.u32 %s90, %s91
      %p93 = scmp.eq.s32.totalorder %s92, 0
      %s95 = sadd.s32 %s94, 1
      %s96 = scalar_select %p93, %s94, %s95
      %p99 = pneg %p93
      %p100 = scmp.eq.s32.totalorder %s14, 2
      %p101 = por %p99, %p100
      %p102 = scmp.ne.s32.totalorder %s94, %s97
      %p103 = scmp.eq.s32.totalorder %s14, 0
      %p104 = por %p102, %p103
      %p105 = scmp.ne.s32.totalorder %s94, %s97
      %p106 = scmp.eq.s32.totalorder %s19, 2
      %p107 = por %p105, %p106
      %p108 = scmp.ne.s32.totalorder %s97, %s98
      %p109 = scmp.eq.s32.totalorder %s19, 0
      %p110 = por %p108, %p109
      %p111 = scmp.ne.s32.totalorder %s97, %s98
      %p112 = scmp.eq.s32.totalorder %s20, 2
      %p113 = por %p111, %p112
      %p115 = scmp.ne.s32.totalorder %s98, %s114
      %p116 = scmp.eq.s32.totalorder %s20, 0
      %p117 = por %p115, %p116
      %s119 = sadd.s32 %s118, 1
      %p122 = scmp.eq.s32.totalorder %s14, 2
      %p123 = scmp.ne.s32.totalorder %s118, %s120
      %p124 = scmp.eq.s32.totalorder %s14, 0
      %p125 = por %p123, %p124
      %p126 = scmp.ne.s32.totalorder %s118, %s120
      %p127 = scmp.eq.s32.totalorder %s19, 2
      %p128 = por %p126, %p127
      %p129 = scmp.ne.s32.totalorder %s120, %s121
      %p130 = scmp.eq.s32.totalorder %s19, 0
      %p131 = por %p129, %p130
      %p132 = scmp.ne.s32.totalorder %s120, %s121
      %p133 = scmp.eq.s32.totalorder %s20, 2
      %p134 = por %p132, %p133
      %p136 = scmp.ne.s32.totalorder %s121, %s135
      %p137 = scmp.eq.s32.totalorder %s20, 0
      %p138 = por %p136, %p137
      %s139 = ssub.s32 %s22, %s29
      %s140 = ssub.s32 %s21, %s33
      %s141 = sor.u32 %s139, %s140
      %p142 = scmp.eq.s32.totalorder %s141, 0
      %s144 = sadd.s32 %s143, 1
      %s145 = scalar_select %p142, %s143, %s144
      %p148 = pneg %p142
      %p149 = scmp.eq.s32.totalorder %s14, 2
      %p150 = por %p148, %p149
      %p151 = scmp.ne.s32.totalorder %s143, %s146
      %p152 = scmp.eq.s32.totalorder %s14, 0
      %p153 = por %p151, %p152
      %p154 = scmp.ne.s32.totalorder %s143, %s146
      %p155 = scmp.eq.s32.totalorder %s19, 2
      %p156 = por %p154, %p155
      %p157 = scmp.ne.s32.totalorder %s146, %s147
      %p158 = scmp.eq.s32.totalorder %s19, 0
      %p159 = por %p157, %p158
      %p160 = scmp.ne.s32.totalorder %s146, %s147
      %p161 = scmp.eq.s32.totalorder %s20, 2
      %p162 = por %p160, %p161
      %p164 = scmp.ne.s32.totalorder %s147, %s163
      %p165 = scmp.eq.s32.totalorder %s20, 0
      %p166 = por %p164, %p165
      %s167 = ssub.s32 2, %s22
      %s168 = ssub.s32 2, %s29
      %s169 = ssub.s32 %s167, %s168
      %s170 = ssub.s32 %s21, %s33
      %s171 = sor.u32 %s169, %s170
      %p172 = scmp.eq.s32.totalorder %s171, 0
      %s174 = sadd.s32 %s173, 1
      %s175 = scalar_select %p172, %s173, %s174
      %p178 = pneg %p172
      %p179 = scmp.eq.s32.totalorder %s14, 2
      %p180 = por %p178, %p179
      %p181 = scmp.ne.s32.totalorder %s173, %s176
      %p182 = scmp.eq.s32.totalorder %s14, 0
      %p183 = por %p181, %p182
      %p184 = scmp.ne.s32.totalorder %s173, %s176
      %p185 = scmp.eq.s32.totalorder %s19, 2
      %p186 = por %p184, %p185
      %p187 = scmp.ne.s32.totalorder %s176, %s177
      %p188 = scmp.eq.s32.totalorder %s19, 0
      %p189 = por %p187, %p188
      %p190 = scmp.ne.s32.totalorder %s176, %s177
      %p191 = scmp.eq.s32.totalorder %s20, 2
      %p192 = por %p190, %p191
      %p194 = scmp.ne.s32.totalorder %s177, %s193
      %p195 = scmp.eq.s32.totalorder %s20, 0
      %p196 = por %p194, %p195
      %s197 = ssub.s32 %s21, %s33
      %p198 = scmp.eq.s32.totalorder %s197, 0
      %s200 = sadd.s32 %s199, 1
      %s201 = scalar_select %p198, %s199, %s200
      %p204 = pneg %p198
      %p205 = scmp.eq.s32.totalorder %s14, 2
      %p206 = por %p204, %p205
      %p207 = scmp.ne.s32.totalorder %s199, %s202
      %p208 = scmp.eq.s32.totalorder %s14, 0
      %p209 = por %p207, %p208
      %p210 = scmp.ne.s32.totalorder %s199, %s202
      %p211 = scmp.eq.s32.totalorder %s19, 2
      %p212 = por %p210, %p211
      %p213 = scmp.ne.s32.totalorder %s202, %s203
      %p214 = scmp.eq.s32.totalorder %s19, 0
      %p215 = por %p213, %p214
      %p216 = scmp.ne.s32.totalorder %s202, %s203
      %p217 = scmp.eq.s32.totalorder %s20, 2
      %p218 = por %p216, %p217
      %p220 = scmp.ne.s32.totalorder %s203, %s219
      %p221 = scmp.eq.s32.totalorder %s20, 0
      %p222 = por %p220, %p221
      %p223 = scmp.le.s32.totalorder 1, %s14
      %p224 = scmp.lt.s32.totalorder %s14, 4
      %p225 = pnand %p223, %p224
      %p226 = pneg %p225
      // Predicated region
      $region9: #{encoder_forward.1} parent=5 // pred_check
        _
      $region10: #{encoder_forward.1} parent=5 // pred_check_branch
        %228 = sbr.rel (%p225) target = $region12
      $region11: #{encoder_forward.1} parent=5 // pred_region
        %s229 = ssub.s32 %s14, 1
        // Predicated region
        $region13: #{encoder_forward.1} parent=11 // pred_check
          %p230 = pneg %p52
        $region14: #{encoder_forward.1} parent=11 // pred_check_branch
          %232 = sbr.rel (%p230) target = $region16
        $region15: #{encoder_forward.1} parent=11 // pred_region
          %p233 = scmp.lt.s32.totalorder %s23, 0
          %s234 = scalar_select %p233, %s23, 0
          %s235 = smul.addr %s234, 2
          %s236 = smul.addr %s235, 2
          %s237 = scalar_lea.vmem %s0, %s236
        $region16: #{encoder_forward.1} parent=11 // pred_fallthru
          _
        // Predicated region
        $region17: #{encoder_forward.1} parent=11 // pred_check
          %p238 = pneg %p131
        $region18: #{encoder_forward.1} parent=11 // pred_check_branch
          %240 = sbr.rel (%p238) target = $region20
        $region19: #{encoder_forward.1} parent=11 // pred_region
          _
        $region20: #{encoder_forward.1} parent=11 // pred_fallthru
          _
      $region12: #{encoder_forward.1} parent=5 // pred_fallthru
        _
      %p241 = scmp.lt.s32.totalorder %s14, 3
      // Predicated region
      $region21: #{encoder_forward.1} parent=5 // pred_check
        %p242 = pneg %p241
      $region22: #{encoder_forward.1} parent=5 // pred_check_branch
        %244 = sbr.rel (%p242) target = $region24
      $region23: #{encoder_forward.1} parent=5 // pred_region
        // Predicated region
        $region25: #{encoder_forward.1} parent=23 // pred_check
          %p245 = pneg %p74
        $region26: #{encoder_forward.1} parent=23 // pred_check_branch
          %247 = sbr.rel (%p245) target = $region28
        $region27: #{encoder_forward.1} parent=23 // pred_region
          %s248 = sand.u32 %s64, 1
          %s249 = sand.u32 %s64, 1
          %s250 = smul.addr %s249, 32
          %s251 = scalar_lea.vmem [#allocation3], %s250
          %s252 = smul.u32 8, %s22
          %s253 = smul.addr %s21, 8
          %s254 = smul.addr %s252, 8
          %s255 = sadd.s32 %s253, %s254
          %s256 = scalar_lea.vmem %s1, %s255
          // Predicated region
          $region29: #{encoder_forward.1} parent=27 // pred_check
            _
          $region30: #{encoder_forward.1} parent=27 // pred_check_branch
            %258 = sbr.rel (0) target = $region32
          $region31: #{encoder_forward.1} parent=27 // pred_region
            // Predicated region
            $region33: #{encoder_forward.1} parent=31 // pred_check
              _
            $region34: #{encoder_forward.1} parent=31 // pred_check_branch
              %260 = sbr.rel target = $region36
            $region35: #{encoder_forward.1} parent=31 // pred_region
              // Predicated region
              $region48: #{encoder_forward.1} parent=35 // pred_check
                _
              $region49: #{encoder_forward.1} parent=35 // pred_check_branch
                %290 = sbr.rel (0) target = $region51
              $region50: #{encoder_forward.1} parent=35 // pred_region
                loop: start=0, step=1, limit=1
                $region52: #{encoder_forward.1} parent=50 // loop_pre_header
                  _
                $region53: #{encoder_forward.1} parent=50 // loop_header
                  %s292 = sphi 0, %s296
                  %p293 = scmp.ge.s32.totalorder %s292, 1
                  %s297 = sphi %s256, %s256
                  %s298 = sphi %s251, %s251
                $region54: #{encoder_forward.1} parent=50 // loop_header_branch
                  %295 = sbr.rel (%p293) target = $region58
                $region55: #{encoder_forward.1} parent=50 // loop_body
                  _
                $region56: #{encoder_forward.1} parent=50 // loop_footer
                  %s296 = sadd.s32 1, %s292
                $region57: #{encoder_forward.1} parent=50 // loop_footer_branch
                  %291 = sbr.rel target = $region53
                $region58: #{encoder_forward.1} parent=50 // loop_exit
                  _
                %s300 = ssub.s32 16, 1
                loop: start=0, step=1, limit=1
                $region59: #{encoder_forward.1} parent=50 // loop_pre_header
                  _
                $region60: #{encoder_forward.1} parent=50 // loop_header
                  %s302 = sphi 0, %s306
                  %p303 = scmp.ge.s32.totalorder %s302, 1
                  %s307 = sphi %s256, %s256
                  %s308 = sphi %s251, %s251
                $region61: #{encoder_forward.1} parent=50 // loop_header_branch
                  %305 = sbr.rel (%p303) target = $region65
                $region62: #{encoder_forward.1} parent=50 // loop_body
                  %v309 = vld [vmem:[%s307] sm:%s300]
                  %310 = vst [vmem:[%s308] sm:%s300] %v309
                  %v311 = vld [vmem:[%s307 + $0x8] sm:%s300]
                  %312 = vst [vmem:[%s308 + $0x4] sm:%s300] %v311
                  %v313 = vld [vmem:[%s307 + $0x10] sm:%s300]
                  %314 = vst [vmem:[%s308 + $0x8] sm:%s300] %v313
                  %v315 = vld [vmem:[%s307 + $0x18] sm:%s300]
                  %316 = vst [vmem:[%s308 + $0xc] sm:%s300] %v315
                  %v317 = vld [vmem:[%s307 + $0x20] sm:%s300]
                  %318 = vst [vmem:[%s308 + $0x10] sm:%s300] %v317
                  %v319 = vld [vmem:[%s307 + $0x28] sm:%s300]
                  %320 = vst [vmem:[%s308 + $0x14] sm:%s300] %v319
                  %v321 = vld [vmem:[%s307 + $0x30] sm:%s300]
                  %322 = vst [vmem:[%s308 + $0x18] sm:%s300] %v321
                  %v323 = vld [vmem:[%s307 + $0x38] sm:%s300]
                  %324 = vst [vmem:[%s308 + $0x1c] sm:%s300] %v323
                $region63: #{encoder_forward.1} parent=50 // loop_footer
                  %s306 = sadd.s32 1, %s302
                $region64: #{encoder_forward.1} parent=50 // loop_footer_branch
                  %301 = sbr.rel target = $region60
                $region65: #{encoder_forward.1} parent=50 // loop_exit
                  _
              $region51: #{encoder_forward.1} parent=35 // pred_fallthru
                _
            $region36: #{encoder_forward.1} parent=31 // pred_fallthru
              _
            // Predicated region
            $region37: #{encoder_forward.1} parent=31 // pred_check
              _
            $region38: #{encoder_forward.1} parent=31 // pred_check_branch
              %262 = sbr.rel (0) target = $region40
            $region39: #{encoder_forward.1} parent=31 // pred_region
              %s264 = ssub.s32 16, 1
              loop: start=0, step=1, limit=1
              $region41: #{encoder_forward.1} parent=39 // loop_pre_header
                _
              $region42: #{encoder_forward.1} parent=39 // loop_header
                %s266 = sphi 0, %s270
                %p267 = scmp.ge.s32.totalorder %s266, 1
                %s271 = sphi %s256, %s256
                %s272 = sphi %s251, %s251
              $region43: #{encoder_forward.1} parent=39 // loop_header_branch
                %269 = sbr.rel (%p267) target = $region47
              $region44: #{encoder_forward.1} parent=39 // loop_body
                %v273 = vld [vmem:[%s271] sm:%s264]
                %274 = vst [vmem:[%s272] sm:%s264] %v273
                %v275 = vld [vmem:[%s271 + $0x8] sm:%s264]
                %276 = vst [vmem:[%s272 + $0x4] sm:%s264] %v275
                %v277 = vld [vmem:[%s271 + $0x10] sm:%s264]
                %278 = vst [vmem:[%s272 + $0x8] sm:%s264] %v277
                %v279 = vld [vmem:[%s271 + $0x18] sm:%s264]
                %280 = vst [vmem:[%s272 + $0xc] sm:%s264] %v279
                %v281 = vld [vmem:[%s271 + $0x20] sm:%s264]
                %282 = vst [vmem:[%s272 + $0x10] sm:%s264] %v281
                %v283 = vld [vmem:[%s271 + $0x28] sm:%s264]
                %284 = vst [vmem:[%s272 + $0x14] sm:%s264] %v283
                %v285 = vld [vmem:[%s271 + $0x30] sm:%s264]
                %286 = vst [vmem:[%s272 + $0x18] sm:%s264] %v285
                %v287 = vld [vmem:[%s271 + $0x38] sm:%s264]
                %288 = vst [vmem:[%s272 + $0x1c] sm:%s264] %v287
              $region45: #{encoder_forward.1} parent=39 // loop_footer
                %s270 = sadd.s32 1, %s266
              $region46: #{encoder_forward.1} parent=39 // loop_footer_branch
                %265 = sbr.rel target = $region42
              $region47: #{encoder_forward.1} parent=39 // loop_exit
                _
            $region40: #{encoder_forward.1} parent=31 // pred_fallthru
              _
          $region32: #{encoder_forward.1} parent=27 // pred_fallthru
            _
          %325 = vnop
        $region28: #{encoder_forward.1} parent=23 // pred_fallthru
          _
        // Predicated region
        $region66: #{encoder_forward.1} parent=23 // pred_check
          %p326 = pneg %p104
        $region67: #{encoder_forward.1} parent=23 // pred_check_branch
          %328 = sbr.rel (%p326) target = $region69
        $region68: #{encoder_forward.1} parent=23 // pred_region
          %s329 = sand.u32 %s94, 1
          %s330 = sand.u32 %s94, 1
          %s331 = smul.addr %s330, 32
          %s332 = scalar_lea.vmem [#allocation4], %s331
          %s333 = ssub.s32 2, %s22
          %s334 = smul.u32 8, %s333
          %s335 = smul.addr %s21, 8
          %s336 = sadd.s32 4, %s335
          %s337 = smul.addr %s334, 8
          %s338 = sadd.s32 %s336, %s337
          %s339 = scalar_lea.vmem %s2, %s338
          // Predicated region
          $region70: #{encoder_forward.1} parent=68 // pred_check
            _
          $region71: #{encoder_forward.1} parent=68 // pred_check_branch
            %341 = sbr.rel (0) target = $region73
          $region72: #{encoder_forward.1} parent=68 // pred_region
            // Predicated region
            $region74: #{encoder_forward.1} parent=72 // pred_check
              _
            $region75: #{encoder_forward.1} parent=72 // pred_check_branch
              %343 = sbr.rel target = $region77
            $region76: #{encoder_forward.1} parent=72 // pred_region
              // Predicated region
              $region89: #{encoder_forward.1} parent=76 // pred_check
                _
              $region90: #{encoder_forward.1} parent=76 // pred_check_branch
                %373 = sbr.rel (0) target = $region92
              $region91: #{encoder_forward.1} parent=76 // pred_region
                loop: start=0, step=1, limit=1
                $region93: #{encoder_forward.1} parent=91 // loop_pre_header
                  _
                $region94: #{encoder_forward.1} parent=91 // loop_header
                  %s375 = sphi 0, %s379
                  %p376 = scmp.ge.s32.totalorder %s375, 1
                  %s380 = sphi %s339, %s339
                  %s381 = sphi %s332, %s332
                $region95: #{encoder_forward.1} parent=91 // loop_header_branch
                  %378 = sbr.rel (%p376) target = $region99
                $region96: #{encoder_forward.1} parent=91 // loop_body
                  _
                $region97: #{encoder_forward.1} parent=91 // loop_footer
                  %s379 = sadd.s32 1, %s375
                $region98: #{encoder_forward.1} parent=91 // loop_footer_branch
                  %374 = sbr.rel target = $region94
                $region99: #{encoder_forward.1} parent=91 // loop_exit
                  _
                %s383 = ssub.s32 16, 1
                loop: start=0, step=1, limit=1
                $region100: #{encoder_forward.1} parent=91 // loop_pre_header
                  _
                $region101: #{encoder_forward.1} parent=91 // loop_header
                  %s385 = sphi 0, %s389
                  %p386 = scmp.ge.s32.totalorder %s385, 1
                  %s390 = sphi %s339, %s339
                  %s391 = sphi %s332, %s332
                $region102: #{encoder_forward.1} parent=91 // loop_header_branch
                  %388 = sbr.rel (%p386) target = $region106
                $region103: #{encoder_forward.1} parent=91 // loop_body
                  %v392 = vld [vmem:[%s390] sm:%s383]
                  %393 = vst [vmem:[%s391] sm:%s383] %v392
                  %v394 = vld [vmem:[%s390 + $0x8] sm:%s383]
                  %395 = vst [vmem:[%s391 + $0x4] sm:%s383] %v394
                  %v396 = vld [vmem:[%s390 + $0x10] sm:%s383]
                  %397 = vst [vmem:[%s391 + $0x8] sm:%s383] %v396
                  %v398 = vld [vmem:[%s390 + $0x18] sm:%s383]
                  %399 = vst [vmem:[%s391 + $0xc] sm:%s383] %v398
                  %v400 = vld [vmem:[%s390 + $0x20] sm:%s383]
                  %401 = vst [vmem:[%s391 + $0x10] sm:%s383] %v400
                  %v402 = vld [vmem:[%s390 + $0x28] sm:%s383]
                  %403 = vst [vmem:[%s391 + $0x14] sm:%s383] %v402
                  %v404 = vld [vmem:[%s390 + $0x30] sm:%s383]
                  %405 = vst [vmem:[%s391 + $0x18] sm:%s383] %v404
                  %v406 = vld [vmem:[%s390 + $0x38] sm:%s383]
                  %407 = vst [vmem:[%s391 + $0x1c] sm:%s383] %v406
                $region104: #{encoder_forward.1} parent=91 // loop_footer
                  %s389 = sadd.s32 1, %s385
                $region105: #{encoder_forward.1} parent=91 // loop_footer_branch
                  %384 = sbr.rel target = $region101
                $region106: #{encoder_forward.1} parent=91 // loop_exit
                  _
              $region92: #{encoder_forward.1} parent=76 // pred_fallthru
                _
            $region77: #{encoder_forward.1} parent=72 // pred_fallthru
              _
            // Predicated region
            $region78: #{encoder_forward.1} parent=72 // pred_check
              _
            $region79: #{encoder_forward.1} parent=72 // pred_check_branch
              %345 = sbr.rel (0) target = $region81
            $region80: #{encoder_forward.1} parent=72 // pred_region
              %s347 = ssub.s32 16, 1
              loop: start=0, step=1, limit=1
              $region82: #{encoder_forward.1} parent=80 // loop_pre_header
                _
              $region83: #{encoder_forward.1} parent=80 // loop_header
                %s349 = sphi 0, %s353
                %p350 = scmp.ge.s32.totalorder %s349, 1
                %s354 = sphi %s339, %s339
                %s355 = sphi %s332, %s332
              $region84: #{encoder_forward.1} parent=80 // loop_header_branch
                %352 = sbr.rel (%p350) target = $region88
              $region85: #{encoder_forward.1} parent=80 // loop_body
                %v356 = vld [vmem:[%s354] sm:%s347]
                %357 = vst [vmem:[%s355] sm:%s347] %v356
                %v358 = vld [vmem:[%s354 + $0x8] sm:%s347]
                %359 = vst [vmem:[%s355 + $0x4] sm:%s347] %v358
                %v360 = vld [vmem:[%s354 + $0x10] sm:%s347]
                %361 = vst [vmem:[%s355 + $0x8] sm:%s347] %v360
                %v362 = vld [vmem:[%s354 + $0x18] sm:%s347]
                %363 = vst [vmem:[%s355 + $0xc] sm:%s347] %v362
                %v364 = vld [vmem:[%s354 + $0x20] sm:%s347]
                %365 = vst [vmem:[%s355 + $0x10] sm:%s347] %v364
                %v366 = vld [vmem:[%s354 + $0x28] sm:%s347]
                %367 = vst [vmem:[%s355 + $0x14] sm:%s347] %v366
                %v368 = vld [vmem:[%s354 + $0x30] sm:%s347]
                %369 = vst [vmem:[%s355 + $0x18] sm:%s347] %v368
                %v370 = vld [vmem:[%s354 + $0x38] sm:%s347]
                %371 = vst [vmem:[%s355 + $0x1c] sm:%s347] %v370
              $region86: #{encoder_forward.1} parent=80 // loop_footer
                %s353 = sadd.s32 1, %s349
              $region87: #{encoder_forward.1} parent=80 // loop_footer_branch
                %348 = sbr.rel target = $region83
              $region88: #{encoder_forward.1} parent=80 // loop_exit
                _
            $region81: #{encoder_forward.1} parent=72 // pred_fallthru
              _
          $region73: #{encoder_forward.1} parent=68 // pred_fallthru
            _
          %408 = vnop
        $region69: #{encoder_forward.1} parent=23 // pred_fallthru
          _
      $region24: #{encoder_forward.1} parent=5 // pred_fallthru
        _
      %p409 = scmp.le.s32.totalorder 1, %s14
      %p410 = scmp.lt.s32.totalorder %s14, 4
      %p411 = pnand %p409, %p410
      %p412 = pneg %p411
      // Predicated region
      $region107: #{encoder_forward.1} parent=5 // pred_check
        _
      $region108: #{encoder_forward.1} parent=5 // pred_check_branch
        %414 = sbr.rel (%p411) target = $region110
      $region109: #{encoder_forward.1} parent=5 // pred_region
        %s415 = ssub.s32 %s14, 1
        %s416 = sand.u32 %s67, 1
        %s417 = sand.u32 %s67, 1
        %s418 = smul.addr %s417, 32
        %s419 = scalar_lea.vmem [#allocation3], %s418
        // Predicated region
        $region111: #{encoder_forward.1} parent=109 // pred_check
          %p420 = pneg %p80
        $region112: #{encoder_forward.1} parent=109 // pred_check_branch
          %422 = sbr.rel (%p420) target = $region114
        $region113: #{encoder_forward.1} parent=109 // pred_region
          _
        $region114: #{encoder_forward.1} parent=109 // pred_fallthru
          _
        %s423 = sand.u32 %s97, 1
        %s424 = sand.u32 %s97, 1
        %s425 = smul.addr %s424, 32
        %s426 = scalar_lea.vmem [#allocation4], %s425
        // Predicated region
        $region115: #{encoder_forward.1} parent=109 // pred_check
          %p427 = pneg %p110
        $region116: #{encoder_forward.1} parent=109 // pred_check_branch
          %429 = sbr.rel (%p427) target = $region118
        $region117: #{encoder_forward.1} parent=109 // pred_region
          _
        $region118: #{encoder_forward.1} parent=109 // pred_fallthru
          _
        %p430 = scmp.lt.s32.totalorder %s23, 0
        %s431 = scalar_select %p430, %s23, 0
        %s432 = smul.addr %s431, 2
        %s433 = smul.addr %s432, 2
        %s434 = scalar_lea.vmem %s0, %s433
        %p435 = pneg %p52
        %p436 = pneg %p49
        %s437 = sand.u32 %s67, 1
        %s438 = sand.u32 %s67, 1
        %s439 = smul.addr %s438, 32
        %s440 = scalar_lea.vmem [#allocation3], %s439
        %p441 = pneg %p80
        %p442 = pneg %p77
        %s443 = sand.u32 %s97, 1
        %s444 = sand.u32 %s97, 1
        %s445 = smul.addr %s444, 32
        %s446 = scalar_lea.vmem [#allocation4], %s445
        %p447 = pneg %p110
        %p448 = pneg %p107
        %p449 = pneg %p131
        %p450 = pneg %p128
        %p451 = pneg %p159
        %p452 = pneg %p156
        %s453 = smul.u32 8, %s24
        %p454 = scmp.lt.s32.totalorder %s453, 23
        %s455 = scalar_select %p454, %s453, 23
        %p456 = scmp.lt.s32.totalorder %s23, 0
        %s457 = scalar_select %p456, %s23, 0
        %s458 = sadd.s32 %s457, %s455
        %s459 = smul.addr %s458, 2
        %s460 = scalar_lea.vmem %s4, %s459
        %p461 = pneg %p189
        %p462 = pneg %p186
        %s463 = ssub.s32 2, %s24
        %s464 = smul.u32 8, %s463
        %p465 = scmp.lt.s32.totalorder %s464, 23
        %s466 = scalar_select %p465, %s464, 23
        %p467 = scmp.lt.s32.totalorder %s23, 0
        %s468 = scalar_select %p467, %s23, 0
        %s469 = sadd.s32 %s468, %s466
        %s470 = smul.addr %s469, 2
        %s471 = scalar_lea.vmem %s5, %s470
        %p472 = pneg %p215
        %p473 = pneg %p212
        %p474 = scmp.lt.s32.totalorder %s23, 0
        %s475 = scalar_select %p474, %s23, 0
        %s476 = smul.addr %s475, 2
        %s477 = smul.addr %s476, 2
        %s478 = scalar_lea.vmem %s0, %s477
        %s479 = smul.u32 8, %s24
        %s480 = ssub.s32 2, %s24
        %s481 = smul.u32 8, %s480
        %s482 = smul.u32 8, %s24
        %p483 = scmp.lt.s32.totalorder %s482, 23
        %s484 = scalar_select %p483, %s482, 23
        %p485 = scmp.lt.s32.totalorder %s23, 0
        %s486 = scalar_select %p485, %s23, 0
        %s487 = sadd.s32 %s486, %s484
        %s488 = smul.addr %s487, 2
        %s489 = scalar_lea.vmem %s4, %s488
        %s490 = smul.u32 8, %s24
        %s491 = ssub.s32 2, %s24
        %s492 = smul.u32 8, %s491
        %p493 = scmp.lt.s32.totalorder %s492, 23
        %s494 = scalar_select %p493, %s492, 23
        %p495 = scmp.lt.s32.totalorder %s23, 0
        %s496 = scalar_select %p495, %s23, 0
        %s497 = sadd.s32 %s496, %s494
        %s498 = smul.addr %s497, 2
        %s499 = scalar_lea.vmem %s5, %s498
        %s500 = ssub.s32 2, %s24
        %s501 = smul.u32 8, %s500
        %p502 = scmp.eq.s32.totalorder %s24, 0
        // Predicated region
        $region119: #{encoder_forward.1} parent=109 // pred_check
          %p503 = pneg %p502
        $region120: #{encoder_forward.1} parent=109 // pred_check_branch
          %505 = sbr.rel (%p503) target = $region122
        $region121: #{encoder_forward.1} parent=109 // pred_region
          %506 = vst [vmem:[#allocation5] sm:$0xf] 0.0
          %507 = vst [vmem:[#allocation2] sm:$0xf] 0.0
        $region122: #{encoder_forward.1} parent=109 // pred_fallthru
          _
        %v508 = vld [vmem:[%s3] sm:$0xff]
        %v509 = vld [vmem:[%s3 + $0x8] sm:$0xff]
        %v510 = vld [vmem:[%s3 + $0x10] sm:$0xff]
        %v511 = vld [vmem:[%s3 + $0x18] sm:$0xff]
        %v512 = vld [vmem:[%s3 + $0x20] sm:$0xff]
        %v513 = vld [vmem:[%s3 + $0x28] sm:$0xff]
        %v514 = vld [vmem:[%s3 + $0x30] sm:$0xff]
        %v515 = vld [vmem:[%s3 + $0x38] sm:$0xff]
        %v516 = vld [vmem:[%s3 + $0x40] sm:$0xff]
        %v517 = vld [vmem:[%s3 + $0x48] sm:$0xff]
        %v518 = vld [vmem:[%s3 + $0x50] sm:$0xff]
        %v519 = vld [vmem:[%s3 + $0x58] sm:$0xff]
        %v520 = vld [vmem:[%s3 + $0x60] sm:$0xff]
        %v521 = vld [vmem:[%s3 + $0x68] sm:$0xff]
        %v522 = vld [vmem:[%s3 + $0x70] sm:$0xff]
        %v523 = vld [vmem:[%s3 + $0x78] sm:$0xff]
        %v524 = vld [vmem:[%s3 + $0x80] sm:$0xff]
        %v525 = vld [vmem:[%s3 + $0x88] sm:$0xff]
        %v526 = vld [vmem:[%s3 + $0x90] sm:$0xff]
        %v527 = vld [vmem:[%s3 + $0x98] sm:$0xff]
        %v528 = vld [vmem:[%s3 + $0xa0] sm:$0xff]
        %v529 = vld [vmem:[%s3 + $0xa8] sm:$0xff]
        %v530 = vld [vmem:[%s3 + $0xb0] sm:$0xff]
        %v531 = vld [vmem:[%s3 + $0xb8] sm:$0xff]
        %v532 = vld [vmem:[%s3 + $0xc0] sm:$0xff]
        %v533 = vld [vmem:[%s3 + $0xc8] sm:$0xff]
        %v534 = vld [vmem:[%s3 + $0xd0] sm:$0xff]
        %v535 = vld [vmem:[%s3 + $0xd8] sm:$0xff]
        %v536 = vld [vmem:[%s3 + $0xe0] sm:$0xff]
        %v537 = vld [vmem:[%s3 + $0xe8] sm:$0xff]
        %v538 = vld [vmem:[%s3 + $0xf0] sm:$0xff]
        %v539 = vld [vmem:[%s3 + $0xf8] sm:$0xff]
        %v540 = vld [vmem:[%s3 + $0x100] sm:$0xff]
        %v541 = vld [vmem:[%s3 + $0x108] sm:$0xff]
        %v542 = vld [vmem:[%s3 + $0x110] sm:$0xff]
        %v543 = vld [vmem:[%s3 + $0x118] sm:$0xff]
        %v544 = vld [vmem:[%s3 + $0x120] sm:$0xff]
        %v545 = vld [vmem:[%s3 + $0x128] sm:$0xff]
        %v546 = vld [vmem:[%s3 + $0x130] sm:$0xff]
        %v547 = vld [vmem:[%s3 + $0x138] sm:$0xff]
        %v548 = vld [vmem:[%s3 + $0x140] sm:$0xff]
        %v549 = vld [vmem:[%s3 + $0x148] sm:$0xff]
        %v550 = vld [vmem:[%s3 + $0x150] sm:$0xff]
        %v551 = vld [vmem:[%s3 + $0x158] sm:$0xff]
        %v552 = vld [vmem:[%s3 + $0x160] sm:$0xff]
        %v553 = vld [vmem:[%s3 + $0x168] sm:$0xff]
        %v554 = vld [vmem:[%s3 + $0x170] sm:$0xff]
        %v555 = vld [vmem:[%s3 + $0x178] sm:$0xff]
        %v556 = vld [vmem:[%s3 + $0x180] sm:$0xff]
        %v557 = vld [vmem:[%s3 + $0x188] sm:$0xff]
        %v558 = vld [vmem:[%s3 + $0x190] sm:$0xff]
        %v559 = vld [vmem:[%s3 + $0x198] sm:$0xff]
        %v560 = vld [vmem:[%s3 + $0x1a0] sm:$0xff]
        %v561 = vld [vmem:[%s3 + $0x1a8] sm:$0xff]
        %v562 = vld [vmem:[%s3 + $0x1b0] sm:$0xff]
        %v563 = vld [vmem:[%s3 + $0x1b8] sm:$0xff]
        %v564 = vld [vmem:[%s3 + $0x1c0] sm:$0xff]
        %v565 = vld [vmem:[%s3 + $0x1c8] sm:$0xff]
        %v566 = vld [vmem:[%s3 + $0x1d0] sm:$0xff]
        %v567 = vld [vmem:[%s3 + $0x1d8] sm:$0xff]
        %v568 = vld [vmem:[%s3 + $0x1e0] sm:$0xff]
        %v569 = vld [vmem:[%s3 + $0x1e8] sm:$0xff]
        %v570 = vld [vmem:[%s3 + $0x1f0] sm:$0xff]
        %v571 = vld [vmem:[%s3 + $0x1f8] sm:$0xff]
        %v572 = vld [vmem:[%s3 + $0x200] sm:$0xff]
        %v573 = vld [vmem:[%s3 + $0x208] sm:$0xff]
        %v574 = vld [vmem:[%s3 + $0x210] sm:$0xff]
        %v575 = vld [vmem:[%s3 + $0x218] sm:$0xff]
        %v576 = vld [vmem:[%s3 + $0x220] sm:$0xff]
        %v577 = vld [vmem:[%s3 + $0x228] sm:$0xff]
        %v578 = vld [vmem:[%s3 + $0x230] sm:$0xff]
        %v579 = vld [vmem:[%s3 + $0x238] sm:$0xff]
        %v580 = vld [vmem:[%s3 + $0x240] sm:$0xff]
        %v581 = vld [vmem:[%s3 + $0x248] sm:$0xff]
        %v582 = vld [vmem:[%s3 + $0x250] sm:$0xff]
        %v583 = vld [vmem:[%s3 + $0x258] sm:$0xff]
        %v584 = vld [vmem:[%s3 + $0x260] sm:$0xff]
        %v585 = vld [vmem:[%s3 + $0x268] sm:$0xff]
        %v586 = vld [vmem:[%s3 + $0x270] sm:$0xff]
        %v587 = vld [vmem:[%s3 + $0x278] sm:$0xff]
        %v588 = vld [vmem:[%s3 + $0x280] sm:$0xff]
        %v589 = vld [vmem:[%s3 + $0x288] sm:$0xff]
        %v590 = vld [vmem:[%s3 + $0x290] sm:$0xff]
        %v591 = vld [vmem:[%s3 + $0x298] sm:$0xff]
        %v592 = vld [vmem:[%s3 + $0x2a0] sm:$0xff]
        %v593 = vld [vmem:[%s3 + $0x2a8] sm:$0xff]
        %v594 = vld [vmem:[%s3 + $0x2b0] sm:$0xff]
        %v595 = vld [vmem:[%s3 + $0x2b8] sm:$0xff]
        %v596 = vld [vmem:[%s3 + $0x2c0] sm:$0xff]
        %v597 = vld [vmem:[%s3 + $0x2c8] sm:$0xff]
        %v598 = vld [vmem:[%s3 + $0x2d0] sm:$0xff]
        %v599 = vld [vmem:[%s3 + $0x2d8] sm:$0xff]
        %v600 = vld [vmem:[%s3 + $0x2e0] sm:$0xff]
        %v601 = vld [vmem:[%s3 + $0x2e8] sm:$0xff]
        %v602 = vld [vmem:[%s3 + $0x2f0] sm:$0xff]
        %v603 = vld [vmem:[%s3 + $0x2f8] sm:$0xff]
        %v604 = vld [vmem:[%s3 + $0x300] sm:$0xff]
        %v605 = vld [vmem:[%s3 + $0x308] sm:$0xff]
        %v606 = vld [vmem:[%s3 + $0x310] sm:$0xff]
        %v607 = vld [vmem:[%s3 + $0x318] sm:$0xff]
        %v608 = vld [vmem:[%s3 + $0x320] sm:$0xff]
        %v609 = vld [vmem:[%s3 + $0x328] sm:$0xff]
        %v610 = vld [vmem:[%s3 + $0x330] sm:$0xff]
        %v611 = vld [vmem:[%s3 + $0x338] sm:$0xff]
        %v612 = vld [vmem:[%s3 + $0x340] sm:$0xff]
        %v613 = vld [vmem:[%s3 + $0x348] sm:$0xff]
        %v614 = vld [vmem:[%s3 + $0x350] sm:$0xff]
        %v615 = vld [vmem:[%s3 + $0x358] sm:$0xff]
        %v616 = vld [vmem:[%s3 + $0x360] sm:$0xff]
        %v617 = vld [vmem:[%s3 + $0x368] sm:$0xff]
        %v618 = vld [vmem:[%s3 + $0x370] sm:$0xff]
        %v619 = vld [vmem:[%s3 + $0x378] sm:$0xff]
        %v620 = vld [vmem:[%s3 + $0x380] sm:$0xff]
        %v621 = vld [vmem:[%s3 + $0x388] sm:$0xff]
        %v622 = vld [vmem:[%s3 + $0x390] sm:$0xff]
        %v623 = vld [vmem:[%s3 + $0x398] sm:$0xff]
        %v624 = vld [vmem:[%s3 + $0x3a0] sm:$0xff]
        %v625 = vld [vmem:[%s3 + $0x3a8] sm:$0xff]
        %v626 = vld [vmem:[%s3 + $0x3b0] sm:$0xff]
        %v627 = vld [vmem:[%s3 + $0x3b8] sm:$0xff]
        %v628 = vld [vmem:[%s3 + $0x3c0] sm:$0xff]
        %v629 = vld [vmem:[%s3 + $0x3c8] sm:$0xff]
        %v630 = vld [vmem:[%s3 + $0x3d0] sm:$0xff]
        %v631 = vld [vmem:[%s3 + $0x3d8] sm:$0xff]
        %v632 = vld [vmem:[%s3 + $0x3e0] sm:$0xff]
        %v633 = vld [vmem:[%s3 + $0x3e8] sm:$0xff]
        %v634 = vld [vmem:[%s3 + $0x3f0] sm:$0xff]
        %v635 = vld [vmem:[%s3 + $0x3f8] sm:$0xff]
        %v636 = vld [vmem:[%s478] sm:$0xf]
        %v637 = vlaneseq
        %v638 = vand.u32 %v637, 127
        %v639 = vadd.s32 %v638, 128
        %vm640 = vcmp.lt.s32.totalorder %v638, 128
        %vm641 = vcmp.lt.s32.totalorder %v639, 128
        %s642 = smul.u32 %s24, 8
        %s643 = ssub.s32 2, %s24
        %s644 = smul.u32 %s643, 8
        %s645 = sadd.s32 %s644, 7
        %v646 = vstv %s642
        %v647 = vstv %s645
        %v648 = vsel %vm640, %v646, %v647
        %v649 = vsel %vm641, %v646, %v647
        %v650 = vsel %vm640, 1, 4294967295
        %v651 = vsel %vm641, 1, 4294967295
        %v652 = vld [vmem:[#allocation5] sm:$0xf]
        %v653 = vld [vmem:[#allocation2] sm:$0xf]
        %655 = vst [vmem:[#allocation1] ss:$4 sm:$0xff] %v652
        %v656 = vld.sshfl [vmem:[#allocation1] sm:$0xff pattern:$0x73625140]
        %v657 = vld.sshfl [vmem:[#allocation1 + $0x8] sm:$0xff pattern:$0x73625140]
        %v660 = vpack.c.bf16 %v656, %v656
        %v661 = vpack.c.bf16 %v657, %v657
        %v790 = vunpack.c.l.b16 %v508
        %v791 = vunpack.c.h.b16 %v508
        %v792 = vunpack.c.l.b16 %v509
        %v793 = vunpack.c.h.b16 %v509
        %v794 = vunpack.c.l.b16 %v510
        %v795 = vunpack.c.h.b16 %v510
        %v796 = vunpack.c.l.b16 %v511
        %v797 = vunpack.c.h.b16 %v511
        %v798 = vunpack.c.l.b16 %v512
        %v799 = vunpack.c.h.b16 %v512
        %v800 = vunpack.c.l.b16 %v513
        %v801 = vunpack.c.h.b16 %v513
        %v802 = vunpack.c.l.b16 %v514
        %v803 = vunpack.c.h.b16 %v514
        %v804 = vunpack.c.l.b16 %v515
        %v805 = vunpack.c.h.b16 %v515
        %v806 = vunpack.c.l.b16 %v516
        %v807 = vunpack.c.h.b16 %v516
        %v808 = vunpack.c.l.b16 %v517
        %v809 = vunpack.c.h.b16 %v517
        %v810 = vunpack.c.l.b16 %v518
        %v811 = vunpack.c.h.b16 %v518
        %v812 = vunpack.c.l.b16 %v519
        %v813 = vunpack.c.h.b16 %v519
        %v814 = vunpack.c.l.b16 %v520
        %v815 = vunpack.c.h.b16 %v520
        %v816 = vunpack.c.l.b16 %v521
        %v817 = vunpack.c.h.b16 %v521
        %v818 = vunpack.c.l.b16 %v522
        %v819 = vunpack.c.h.b16 %v522
        %v820 = vunpack.c.l.b16 %v523
        %v821 = vunpack.c.h.b16 %v523
        %v822 = vunpack.c.l.b16 %v524
        %v823 = vunpack.c.h.b16 %v524
        %v824 = vunpack.c.l.b16 %v525
        %v825 = vunpack.c.h.b16 %v525
        %v826 = vunpack.c.l.b16 %v526
        %v827 = vunpack.c.h.b16 %v526
        %v828 = vunpack.c.l.b16 %v527
        %v829 = vunpack.c.h.b16 %v527
        %v830 = vunpack.c.l.b16 %v528
        %v831 = vunpack.c.h.b16 %v528
        %v832 = vunpack.c.l.b16 %v529
        %v833 = vunpack.c.h.b16 %v529
        %v834 = vunpack.c.l.b16 %v530
        %v835 = vunpack.c.h.b16 %v530
        %v836 = vunpack.c.l.b16 %v531
        %v837 = vunpack.c.h.b16 %v531
        %v838 = vunpack.c.l.b16 %v532
        %v839 = vunpack.c.h.b16 %v532
        %v840 = vunpack.c.l.b16 %v533
        %v841 = vunpack.c.h.b16 %v533
        %v842 = vunpack.c.l.b16 %v534
        %v843 = vunpack.c.h.b16 %v534
        %v844 = vunpack.c.l.b16 %v535
        %v845 = vunpack.c.h.b16 %v535
        %v846 = vunpack.c.l.b16 %v536
        %v847 = vunpack.c.h.b16 %v536
        %v848 = vunpack.c.l.b16 %v537
        %v849 = vunpack.c.h.b16 %v537
        %v850 = vunpack.c.l.b16 %v538
        %v851 = vunpack.c.h.b16 %v538
        %v852 = vunpack.c.l.b16 %v539
        %v853 = vunpack.c.h.b16 %v539
        %v854 = vunpack.c.l.b16 %v540
        %v855 = vunpack.c.h.b16 %v540
        %v856 = vunpack.c.l.b16 %v541
        %v857 = vunpack.c.h.b16 %v541
        %v858 = vunpack.c.l.b16 %v542
        %v859 = vunpack.c.h.b16 %v542
        %v860 = vunpack.c.l.b16 %v543
        %v861 = vunpack.c.h.b16 %v543
        %v862 = vunpack.c.l.b16 %v544
        %v863 = vunpack.c.h.b16 %v544
        %v864 = vunpack.c.l.b16 %v545
        %v865 = vunpack.c.h.b16 %v545
        %v866 = vunpack.c.l.b16 %v546
        %v867 = vunpack.c.h.b16 %v546
        %v868 = vunpack.c.l.b16 %v547
        %v869 = vunpack.c.h.b16 %v547
        %v870 = vunpack.c.l.b16 %v548
        %v871 = vunpack.c.h.b16 %v548
        %v872 = vunpack.c.l.b16 %v549
        %v873 = vunpack.c.h.b16 %v549
        %v874 = vunpack.c.l.b16 %v550
        %v875 = vunpack.c.h.b16 %v550
        %v876 = vunpack.c.l.b16 %v551
        %v877 = vunpack.c.h.b16 %v551
        %v878 = vunpack.c.l.b16 %v552
        %v879 = vunpack.c.h.b16 %v552
        %v880 = vunpack.c.l.b16 %v553
        %v881 = vunpack.c.h.b16 %v553
        %v882 = vunpack.c.l.b16 %v554
        %v883 = vunpack.c.h.b16 %v554
        %v884 = vunpack.c.l.b16 %v555
        %v885 = vunpack.c.h.b16 %v555
        %v886 = vunpack.c.l.b16 %v556
        %v887 = vunpack.c.h.b16 %v556
        %v888 = vunpack.c.l.b16 %v557
        %v889 = vunpack.c.h.b16 %v557
        %v890 = vunpack.c.l.b16 %v558
        %v891 = vunpack.c.h.b16 %v558
        %v892 = vunpack.c.l.b16 %v559
        %v893 = vunpack.c.h.b16 %v559
        %v894 = vunpack.c.l.b16 %v560
        %v895 = vunpack.c.h.b16 %v560
        %v896 = vunpack.c.l.b16 %v561
        %v897 = vunpack.c.h.b16 %v561
        %v898 = vunpack.c.l.b16 %v562
        %v899 = vunpack.c.h.b16 %v562
        %v900 = vunpack.c.l.b16 %v563
        %v901 = vunpack.c.h.b16 %v563
        %v902 = vunpack.c.l.b16 %v564
        %v903 = vunpack.c.h.b16 %v564
        %v904 = vunpack.c.l.b16 %v565
        %v905 = vunpack.c.h.b16 %v565
        %v906 = vunpack.c.l.b16 %v566
        %v907 = vunpack.c.h.b16 %v566
        %v908 = vunpack.c.l.b16 %v567
        %v909 = vunpack.c.h.b16 %v567
        %v910 = vunpack.c.l.b16 %v568
        %v911 = vunpack.c.h.b16 %v568
        %v912 = vunpack.c.l.b16 %v569
        %v913 = vunpack.c.h.b16 %v569
        %v914 = vunpack.c.l.b16 %v570
        %v915 = vunpack.c.h.b16 %v570
        %v916 = vunpack.c.l.b16 %v571
        %v917 = vunpack.c.h.b16 %v571
        %v918 = vunpack.c.l.b16 %v572
        %v919 = vunpack.c.h.b16 %v572
        %v920 = vunpack.c.l.b16 %v573
        %v921 = vunpack.c.h.b16 %v573
        %v922 = vunpack.c.l.b16 %v574
        %v923 = vunpack.c.h.b16 %v574
        %v924 = vunpack.c.l.b16 %v575
        %v925 = vunpack.c.h.b16 %v575
        %v926 = vunpack.c.l.b16 %v576
        %v927 = vunpack.c.h.b16 %v576
        %v928 = vunpack.c.l.b16 %v577
        %v929 = vunpack.c.h.b16 %v577
        %v930 = vunpack.c.l.b16 %v578
        %v931 = vunpack.c.h.b16 %v578
        %v932 = vunpack.c.l.b16 %v579
        %v933 = vunpack.c.h.b16 %v579
        %v934 = vunpack.c.l.b16 %v580
        %v935 = vunpack.c.h.b16 %v580
        %v936 = vunpack.c.l.b16 %v581
        %v937 = vunpack.c.h.b16 %v581
        %v938 = vunpack.c.l.b16 %v582
        %v939 = vunpack.c.h.b16 %v582
        %v940 = vunpack.c.l.b16 %v583
        %v941 = vunpack.c.h.b16 %v583
        %v942 = vunpack.c.l.b16 %v584
        %v943 = vunpack.c.h.b16 %v584
        %v944 = vunpack.c.l.b16 %v585
        %v945 = vunpack.c.h.b16 %v585
        %v946 = vunpack.c.l.b16 %v586
        %v947 = vunpack.c.h.b16 %v586
        %v948 = vunpack.c.l.b16 %v587
        %v949 = vunpack.c.h.b16 %v587
        %v950 = vunpack.c.l.b16 %v588
        %v951 = vunpack.c.h.b16 %v588
        %v952 = vunpack.c.l.b16 %v589
        %v953 = vunpack.c.h.b16 %v589
        %v954 = vunpack.c.l.b16 %v590
        %v955 = vunpack.c.h.b16 %v590
        %v956 = vunpack.c.l.b16 %v591
        %v957 = vunpack.c.h.b16 %v591
        %v958 = vunpack.c.l.b16 %v592
        %v959 = vunpack.c.h.b16 %v592
        %v960 = vunpack.c.l.b16 %v593
        %v961 = vunpack.c.h.b16 %v593
        %v962 = vunpack.c.l.b16 %v594
        %v963 = vunpack.c.h.b16 %v594
        %v964 = vunpack.c.l.b16 %v595
        %v965 = vunpack.c.h.b16 %v595
        %v966 = vunpack.c.l.b16 %v596
        %v967 = vunpack.c.h.b16 %v596
        %v968 = vunpack.c.l.b16 %v597
        %v969 = vunpack.c.h.b16 %v597
        %v970 = vunpack.c.l.b16 %v598
        %v971 = vunpack.c.h.b16 %v598
        %v972 = vunpack.c.l.b16 %v599
        %v973 = vunpack.c.h.b16 %v599
        %v974 = vunpack.c.l.b16 %v600
        %v975 = vunpack.c.h.b16 %v600
        %v976 = vunpack.c.l.b16 %v601
        %v977 = vunpack.c.h.b16 %v601
        %v978 = vunpack.c.l.b16 %v602
        %v979 = vunpack.c.h.b16 %v602
        %v980 = vunpack.c.l.b16 %v603
        %v981 = vunpack.c.h.b16 %v603
        %v982 = vunpack.c.l.b16 %v604
        %v983 = vunpack.c.h.b16 %v604
        %v984 = vunpack.c.l.b16 %v605
        %v985 = vunpack.c.h.b16 %v605
        %v986 = vunpack.c.l.b16 %v606
        %v987 = vunpack.c.h.b16 %v606
        %v988 = vunpack.c.l.b16 %v607
        %v989 = vunpack.c.h.b16 %v607
        %v990 = vunpack.c.l.b16 %v608
        %v991 = vunpack.c.h.b16 %v608
        %v992 = vunpack.c.l.b16 %v609
        %v993 = vunpack.c.h.b16 %v609
        %v994 = vunpack.c.l.b16 %v610
        %v995 = vunpack.c.h.b16 %v610
        %v996 = vunpack.c.l.b16 %v611
        %v997 = vunpack.c.h.b16 %v611
        %v998 = vunpack.c.l.b16 %v612
        %v999 = vunpack.c.h.b16 %v612
        %v1000 = vunpack.c.l.b16 %v613
        %v1001 = vunpack.c.h.b16 %v613
        %v1002 = vunpack.c.l.b16 %v614
        %v1003 = vunpack.c.h.b16 %v614
        %v1004 = vunpack.c.l.b16 %v615
        %v1005 = vunpack.c.h.b16 %v615
        %v1006 = vunpack.c.l.b16 %v616
        %v1007 = vunpack.c.h.b16 %v616
        %v1008 = vunpack.c.l.b16 %v617
        %v1009 = vunpack.c.h.b16 %v617
        %v1010 = vunpack.c.l.b16 %v618
        %v1011 = vunpack.c.h.b16 %v618
        %v1012 = vunpack.c.l.b16 %v619
        %v1013 = vunpack.c.h.b16 %v619
        %v1014 = vunpack.c.l.b16 %v620
        %v1015 = vunpack.c.h.b16 %v620
        %v1016 = vunpack.c.l.b16 %v621
        %v1017 = vunpack.c.h.b16 %v621
        %v1018 = vunpack.c.l.b16 %v622
        %v1019 = vunpack.c.h.b16 %v622
        %v1020 = vunpack.c.l.b16 %v623
        %v1021 = vunpack.c.h.b16 %v623
        %v1022 = vunpack.c.l.b16 %v624
        %v1023 = vunpack.c.h.b16 %v624
        %v1024 = vunpack.c.l.b16 %v625
        %v1025 = vunpack.c.h.b16 %v625
        %v1026 = vunpack.c.l.b16 %v626
        %v1027 = vunpack.c.h.b16 %v626
        %v1028 = vunpack.c.l.b16 %v627
        %v1029 = vunpack.c.h.b16 %v627
        %v1030 = vunpack.c.l.b16 %v628
        %v1031 = vunpack.c.h.b16 %v628
        %v1032 = vunpack.c.l.b16 %v629
        %v1033 = vunpack.c.h.b16 %v629
        %v1034 = vunpack.c.l.b16 %v630
        %v1035 = vunpack.c.h.b16 %v630
        %v1036 = vunpack.c.l.b16 %v631
        %v1037 = vunpack.c.h.b16 %v631
        %v1038 = vunpack.c.l.b16 %v632
        %v1039 = vunpack.c.h.b16 %v632
        %v1040 = vunpack.c.l.b16 %v633
        %v1041 = vunpack.c.h.b16 %v633
        %v1042 = vunpack.c.l.b16 %v634
        %v1043 = vunpack.c.h.b16 %v634
        %v1044 = vunpack.c.l.b16 %v635
        %v1045 = vunpack.c.h.b16 %v635
        %v1046 = vpack.c.b16 %v798, %v790
        %v1047 = vpack.c.b16 %v799, %v791
        %v1048 = vpack.c.b16 %v800, %v792
        %v1049 = vpack.c.b16 %v801, %v793
        %v1050 = vpack.c.b16 %v802, %v794
        %v1051 = vpack.c.b16 %v803, %v795
        %v1052 = vpack.c.b16 %v804, %v796
        %v1053 = vpack.c.b16 %v805, %v797
        %v1054 = vpack.c.b16 %v814, %v806
        %v1055 = vpack.c.b16 %v815, %v807
        %v1056 = vpack.c.b16 %v816, %v808
        %v1057 = vpack.c.b16 %v817, %v809
        %v1058 = vpack.c.b16 %v818, %v810
        %v1059 = vpack.c.b16 %v819, %v811
        %v1060 = vpack.c.b16 %v820, %v812
        %v1061 = vpack.c.b16 %v821, %v813
        %v1062 = vpack.c.b16 %v830, %v822
        %v1063 = vpack.c.b16 %v831, %v823
        %v1064 = vpack.c.b16 %v832, %v824
        %v1065 = vpack.c.b16 %v833, %v825
        %v1066 = vpack.c.b16 %v834, %v826
        %v1067 = vpack.c.b16 %v835, %v827
        %v1068 = vpack.c.b16 %v836, %v828
        %v1069 = vpack.c.b16 %v837, %v829
        %v1070 = vpack.c.b16 %v846, %v838
        %v1071 = vpack.c.b16 %v847, %v839
        %v1072 = vpack.c.b16 %v848, %v840
        %v1073 = vpack.c.b16 %v849, %v841
        %v1074 = vpack.c.b16 %v850, %v842
        %v1075 = vpack.c.b16 %v851, %v843
        %v1076 = vpack.c.b16 %v852, %v844
        %v1077 = vpack.c.b16 %v853, %v845
        %v1078 = vpack.c.b16 %v862, %v854
        %v1079 = vpack.c.b16 %v863, %v855
        %v1080 = vpack.c.b16 %v864, %v856
        %v1081 = vpack.c.b16 %v865, %v857
        %v1082 = vpack.c.b16 %v866, %v858
        %v1083 = vpack.c.b16 %v867, %v859
        %v1084 = vpack.c.b16 %v868, %v860
        %v1085 = vpack.c.b16 %v869, %v861
        %v1086 = vpack.c.b16 %v878, %v870
        %v1087 = vpack.c.b16 %v879, %v871
        %v1088 = vpack.c.b16 %v880, %v872
        %v1089 = vpack.c.b16 %v881, %v873
        %v1090 = vpack.c.b16 %v882, %v874
        %v1091 = vpack.c.b16 %v883, %v875
        %v1092 = vpack.c.b16 %v884, %v876
        %v1093 = vpack.c.b16 %v885, %v877
        %v1094 = vpack.c.b16 %v894, %v886
        %v1095 = vpack.c.b16 %v895, %v887
        %v1096 = vpack.c.b16 %v896, %v888
        %v1097 = vpack.c.b16 %v897, %v889
        %v1098 = vpack.c.b16 %v898, %v890
        %v1099 = vpack.c.b16 %v899, %v891
        %v1100 = vpack.c.b16 %v900, %v892
        %v1101 = vpack.c.b16 %v901, %v893
        %v1102 = vpack.c.b16 %v910, %v902
        %v1103 = vpack.c.b16 %v911, %v903
        %v1104 = vpack.c.b16 %v912, %v904
        %v1105 = vpack.c.b16 %v913, %v905
        %v1106 = vpack.c.b16 %v914, %v906
        %v1107 = vpack.c.b16 %v915, %v907
        %v1108 = vpack.c.b16 %v916, %v908
        %v1109 = vpack.c.b16 %v917, %v909
        %v1110 = vpack.c.b16 %v926, %v918
        %v1111 = vpack.c.b16 %v927, %v919
        %v1112 = vpack.c.b16 %v928, %v920
        %v1113 = vpack.c.b16 %v929, %v921
        %v1114 = vpack.c.b16 %v930, %v922
        %v1115 = vpack.c.b16 %v931, %v923
        %v1116 = vpack.c.b16 %v932, %v924
        %v1117 = vpack.c.b16 %v933, %v925
        %v1118 = vpack.c.b16 %v942, %v934
        %v1119 = vpack.c.b16 %v943, %v935
        %v1120 = vpack.c.b16 %v944, %v936
        %v1121 = vpack.c.b16 %v945, %v937
        %v1122 = vpack.c.b16 %v946, %v938
        %v1123 = vpack.c.b16 %v947, %v939
        %v1124 = vpack.c.b16 %v948, %v940
        %v1125 = vpack.c.b16 %v949, %v941
        %v1126 = vpack.c.b16 %v958, %v950
        %v1127 = vpack.c.b16 %v959, %v951
        %v1128 = vpack.c.b16 %v960, %v952
        %v1129 = vpack.c.b16 %v961, %v953
        %v1130 = vpack.c.b16 %v962, %v954
        %v1131 = vpack.c.b16 %v963, %v955
        %v1132 = vpack.c.b16 %v964, %v956
        %v1133 = vpack.c.b16 %v965, %v957
        %v1134 = vpack.c.b16 %v974, %v966
        %v1135 = vpack.c.b16 %v975, %v967
        %v1136 = vpack.c.b16 %v976, %v968
        %v1137 = vpack.c.b16 %v977, %v969
        %v1138 = vpack.c.b16 %v978, %v970
        %v1139 = vpack.c.b16 %v979, %v971
        %v1140 = vpack.c.b16 %v980, %v972
        %v1141 = vpack.c.b16 %v981, %v973
        %v1142 = vpack.c.b16 %v990, %v982
        %v1143 = vpack.c.b16 %v991, %v983
        %v1144 = vpack.c.b16 %v992, %v984
        %v1145 = vpack.c.b16 %v993, %v985
        %v1146 = vpack.c.b16 %v994, %v986
        %v1147 = vpack.c.b16 %v995, %v987
        %v1148 = vpack.c.b16 %v996, %v988
        %v1149 = vpack.c.b16 %v997, %v989
        %v1150 = vpack.c.b16 %v1006, %v998
        %v1151 = vpack.c.b16 %v1007, %v999
        %v1152 = vpack.c.b16 %v1008, %v1000
        %v1153 = vpack.c.b16 %v1009, %v1001
        %v1154 = vpack.c.b16 %v1010, %v1002
        %v1155 = vpack.c.b16 %v1011, %v1003
        %v1156 = vpack.c.b16 %v1012, %v1004
        %v1157 = vpack.c.b16 %v1013, %v1005
        %v1158 = vpack.c.b16 %v1022, %v1014
        %v1159 = vpack.c.b16 %v1023, %v1015
        %v1160 = vpack.c.b16 %v1024, %v1016
        %v1161 = vpack.c.b16 %v1025, %v1017
        %v1162 = vpack.c.b16 %v1026, %v1018
        %v1163 = vpack.c.b16 %v1027, %v1019
        %v1164 = vpack.c.b16 %v1028, %v1020
        %v1165 = vpack.c.b16 %v1029, %v1021
        %v1166 = vpack.c.b16 %v1038, %v1030
        %v1167 = vpack.c.b16 %v1039, %v1031
        %v1168 = vpack.c.b16 %v1040, %v1032
        %v1169 = vpack.c.b16 %v1041, %v1033
        %v1170 = vpack.c.b16 %v1042, %v1034
        %v1171 = vpack.c.b16 %v1043, %v1035
        %v1172 = vpack.c.b16 %v1044, %v1036
        %v1173 = vpack.c.b16 %v1045, %v1037
        %1302 = vmatpush.bf16.msra.mxu0 %v1102
        %1303 = vmatpush.bf16.msra.mxu0 %v1094
        %1304 = vmatpush.bf16.msra.mxu0 %v1086
        %1305 = vmatpush.bf16.msra.mxu0 %v1078
        %1306 = vmatpush.bf16.msra.mxu0 %v1070
        %1307 = vmatpush.bf16.msra.mxu0 %v1062
        %1308 = vmatpush.bf16.msra.mxu0 %v1054
        %1309 = vmatpush.bf16.msra.mxu0 %v1046
        %1310 = vmatmul.bf16.gmra.mxu0 %v660
        %v1311 = vpop.f32.mrf.mxu0
        %v1312 = vadd.f32 0.0, %v1311
        %v1313 = vpop.f32.mrf.mxu0
        %1314 = vdwg.mxu0
        %1315 = vmatpush.bf16.msra.mxu0 %v1166
        %1316 = vmatpush.bf16.msra.mxu0 %v1158
        %1317 = vmatpush.bf16.msra.mxu0 %v1150
        %1318 = vmatpush.bf16.msra.mxu0 %v1142
        %1319 = vmatpush.bf16.msra.mxu0 %v1134
        %1320 = vmatpush.bf16.msra.mxu0 %v1126
        %1321 = vmatpush.bf16.msra.mxu0 %v1118
        %1322 = vmatpush.bf16.msra.mxu0 %v1110
        %1323 = vmatmul.bf16.gmra.mxu0 %v661
        %v1324 = vpop.f32.mrf.mxu0
        %v1325 = vadd.f32 %v1312, %v1324
        %v1326 = vpop.f32.mrf.mxu0
        %1327 = vdwg.mxu0
        %1328 = vmatpush.bf16.msra.mxu0 %v1103
        %1329 = vmatpush.bf16.msra.mxu0 %v1095
        %1330 = vmatpush.bf16.msra.mxu0 %v1087
        %1331 = vmatpush.bf16.msra.mxu0 %v1079
        %1332 = vmatpush.bf16.msra.mxu0 %v1071
        %1333 = vmatpush.bf16.msra.mxu0 %v1063
        %1334 = vmatpush.bf16.msra.mxu0 %v1055
        %1335 = vmatpush.bf16.msra.mxu0 %v1047
        %1336 = vmatmul.bf16.gmra.mxu0 %v660
        %v1337 = vpop.f32.mrf.mxu0
        %v1338 = vadd.f32 0.0, %v1337
        %v1339 = vpop.f32.mrf.mxu0
        %1340 = vdwg.mxu0
        %1341 = vmatpush.bf16.msra.mxu0 %v1167
        %1342 = vmatpush.bf16.msra.mxu0 %v1159
        %1343 = vmatpush.bf16.msra.mxu0 %v1151
        %1344 = vmatpush.bf16.msra.mxu0 %v1143
        %1345 = vmatpush.bf16.msra.mxu0 %v1135
        %1346 = vmatpush.bf16.msra.mxu0 %v1127
        %1347 = vmatpush.bf16.msra.mxu0 %v1119
        %1348 = vmatpush.bf16.msra.mxu0 %v1111
        %1349 = vmatmul.bf16.gmra.mxu0 %v661
        %v1350 = vpop.f32.mrf.mxu0
        %v1351 = vadd.f32 %v1338, %v1350
        %v1352 = vpop.f32.mrf.mxu0
        %1353 = vdwg.mxu0
        %1354 = vmatpush.bf16.msra.mxu0 %v1104
        %1355 = vmatpush.bf16.msra.mxu0 %v1096
        %1356 = vmatpush.bf16.msra.mxu0 %v1088
        %1357 = vmatpush.bf16.msra.mxu0 %v1080
        %1358 = vmatpush.bf16.msra.mxu0 %v1072
        %1359 = vmatpush.bf16.msra.mxu0 %v1064
        %1360 = vmatpush.bf16.msra.mxu0 %v1056
        %1361 = vmatpush.bf16.msra.mxu0 %v1048
        %1362 = vmatmul.bf16.gmra.mxu0 %v660
        %v1363 = vpop.f32.mrf.mxu0
        %v1364 = vadd.f32 0.0, %v1363
        %v1365 = vpop.f32.mrf.mxu0
        %1366 = vdwg.mxu0
        %1367 = vmatpush.bf16.msra.mxu0 %v1168
        %1368 = vmatpush.bf16.msra.mxu0 %v1160
        %1369 = vmatpush.bf16.msra.mxu0 %v1152
        %1370 = vmatpush.bf16.msra.mxu0 %v1144
        %1371 = vmatpush.bf16.msra.mxu0 %v1136
        %1372 = vmatpush.bf16.msra.mxu0 %v1128
        %1373 = vmatpush.bf16.msra.mxu0 %v1120
        %1374 = vmatpush.bf16.msra.mxu0 %v1112
        %1375 = vmatmul.bf16.gmra.mxu0 %v661
        %v1376 = vpop.f32.mrf.mxu0
        %v1377 = vadd.f32 %v1364, %v1376
        %v1378 = vpop.f32.mrf.mxu0
        %1379 = vdwg.mxu0
        %1380 = vmatpush.bf16.msra.mxu0 %v1105
        %1381 = vmatpush.bf16.msra.mxu0 %v1097
        %1382 = vmatpush.bf16.msra.mxu0 %v1089
        %1383 = vmatpush.bf16.msra.mxu0 %v1081
        %1384 = vmatpush.bf16.msra.mxu0 %v1073
        %1385 = vmatpush.bf16.msra.mxu0 %v1065
        %1386 = vmatpush.bf16.msra.mxu0 %v1057
        %1387 = vmatpush.bf16.msra.mxu0 %v1049
        %1388 = vmatmul.bf16.gmra.mxu0 %v660
        %v1389 = vpop.f32.mrf.mxu0
        %v1390 = vadd.f32 0.0, %v1389
        %v1391 = vpop.f32.mrf.mxu0
        %1392 = vdwg.mxu0
        %1393 = vmatpush.bf16.msra.mxu0 %v1169
        %1394 = vmatpush.bf16.msra.mxu0 %v1161
        %1395 = vmatpush.bf16.msra.mxu0 %v1153
        %1396 = vmatpush.bf16.msra.mxu0 %v1145
        %1397 = vmatpush.bf16.msra.mxu0 %v1137
        %1398 = vmatpush.bf16.msra.mxu0 %v1129
        %1399 = vmatpush.bf16.msra.mxu0 %v1121
        %1400 = vmatpush.bf16.msra.mxu0 %v1113
        %1401 = vmatmul.bf16.gmra.mxu0 %v661
        %v1402 = vpop.f32.mrf.mxu0
        %v1403 = vadd.f32 %v1390, %v1402
        %v1404 = vpop.f32.mrf.mxu0
        %1405 = vdwg.mxu0
        %1406 = vmatpush.bf16.msra.mxu0 %v1106
        %1407 = vmatpush.bf16.msra.mxu0 %v1098
        %1408 = vmatpush.bf16.msra.mxu0 %v1090
        %1409 = vmatpush.bf16.msra.mxu0 %v1082
        %1410 = vmatpush.bf16.msra.mxu0 %v1074
        %1411 = vmatpush.bf16.msra.mxu0 %v1066
        %1412 = vmatpush.bf16.msra.mxu0 %v1058
        %1413 = vmatpush.bf16.msra.mxu0 %v1050
        %1414 = vmatmul.bf16.gmra.mxu0 %v660
        %v1415 = vpop.f32.mrf.mxu0
        %v1416 = vadd.f32 0.0, %v1415
        %v1417 = vpop.f32.mrf.mxu0
        %1418 = vdwg.mxu0
        %1419 = vmatpush.bf16.msra.mxu0 %v1170
        %1420 = vmatpush.bf16.msra.mxu0 %v1162
        %1421 = vmatpush.bf16.msra.mxu0 %v1154
        %1422 = vmatpush.bf16.msra.mxu0 %v1146
        %1423 = vmatpush.bf16.msra.mxu0 %v1138
        %1424 = vmatpush.bf16.msra.mxu0 %v1130
        %1425 = vmatpush.bf16.msra.mxu0 %v1122
        %1426 = vmatpush.bf16.msra.mxu0 %v1114
        %1427 = vmatmul.bf16.gmra.mxu0 %v661
        %v1428 = vpop.f32.mrf.mxu0
        %v1429 = vadd.f32 %v1416, %v1428
        %v1430 = vpop.f32.mrf.mxu0
        %1431 = vdwg.mxu0
        %1432 = vmatpush.bf16.msra.mxu0 %v1107
        %1433 = vmatpush.bf16.msra.mxu0 %v1099
        %1434 = vmatpush.bf16.msra.mxu0 %v1091
        %1435 = vmatpush.bf16.msra.mxu0 %v1083
        %1436 = vmatpush.bf16.msra.mxu0 %v1075
        %1437 = vmatpush.bf16.msra.mxu0 %v1067
        %1438 = vmatpush.bf16.msra.mxu0 %v1059
        %1439 = vmatpush.bf16.msra.mxu0 %v1051
        %1440 = vmatmul.bf16.gmra.mxu0 %v660
        %v1441 = vpop.f32.mrf.mxu0
        %v1442 = vadd.f32 0.0, %v1441
        %v1443 = vpop.f32.mrf.mxu0
        %1444 = vdwg.mxu0
        %1445 = vmatpush.bf16.msra.mxu0 %v1171
        %1446 = vmatpush.bf16.msra.mxu0 %v1163
        %1447 = vmatpush.bf16.msra.mxu0 %v1155
        %1448 = vmatpush.bf16.msra.mxu0 %v1147
        %1449 = vmatpush.bf16.msra.mxu0 %v1139
        %1450 = vmatpush.bf16.msra.mxu0 %v1131
        %1451 = vmatpush.bf16.msra.mxu0 %v1123
        %1452 = vmatpush.bf16.msra.mxu0 %v1115
        %1453 = vmatmul.bf16.gmra.mxu0 %v661
        %v1454 = vpop.f32.mrf.mxu0
        %v1455 = vadd.f32 %v1442, %v1454
        %v1456 = vpop.f32.mrf.mxu0
        %1457 = vdwg.mxu0
        %1458 = vmatpush.bf16.msra.mxu0 %v1108
        %1459 = vmatpush.bf16.msra.mxu0 %v1100
        %1460 = vmatpush.bf16.msra.mxu0 %v1092
        %1461 = vmatpush.bf16.msra.mxu0 %v1084
        %1462 = vmatpush.bf16.msra.mxu0 %v1076
        %1463 = vmatpush.bf16.msra.mxu0 %v1068
        %1464 = vmatpush.bf16.msra.mxu0 %v1060
        %1465 = vmatpush.bf16.msra.mxu0 %v1052
        %1466 = vmatmul.bf16.gmra.mxu0 %v660
        %v1467 = vpop.f32.mrf.mxu0
        %v1468 = vadd.f32 0.0, %v1467
        %v1469 = vpop.f32.mrf.mxu0
        %1470 = vdwg.mxu0
        %1471 = vmatpush.bf16.msra.mxu0 %v1172
        %1472 = vmatpush.bf16.msra.mxu0 %v1164
        %1473 = vmatpush.bf16.msra.mxu0 %v1156
        %1474 = vmatpush.bf16.msra.mxu0 %v1148
        %1475 = vmatpush.bf16.msra.mxu0 %v1140
        %1476 = vmatpush.bf16.msra.mxu0 %v1132
        %1477 = vmatpush.bf16.msra.mxu0 %v1124
        %1478 = vmatpush.bf16.msra.mxu0 %v1116
        %1479 = vmatmul.bf16.gmra.mxu0 %v661
        %v1480 = vpop.f32.mrf.mxu0
        %v1481 = vadd.f32 %v1468, %v1480
        %v1482 = vpop.f32.mrf.mxu0
        %1483 = vdwg.mxu0
        %1484 = vmatpush.bf16.msra.mxu0 %v1109
        %1485 = vmatpush.bf16.msra.mxu0 %v1101
        %1486 = vmatpush.bf16.msra.mxu0 %v1093
        %1487 = vmatpush.bf16.msra.mxu0 %v1085
        %1488 = vmatpush.bf16.msra.mxu0 %v1077
        %1489 = vmatpush.bf16.msra.mxu0 %v1069
        %1490 = vmatpush.bf16.msra.mxu0 %v1061
        %1491 = vmatpush.bf16.msra.mxu0 %v1053
        %1492 = vmatmul.bf16.gmra.mxu0 %v660
        %v1493 = vpop.f32.mrf.mxu0
        %v1494 = vadd.f32 0.0, %v1493
        %v1495 = vpop.f32.mrf.mxu0
        %1496 = vdwg.mxu0
        %1497 = vmatpush.bf16.msra.mxu0 %v1173
        %1498 = vmatpush.bf16.msra.mxu0 %v1165
        %1499 = vmatpush.bf16.msra.mxu0 %v1157
        %1500 = vmatpush.bf16.msra.mxu0 %v1149
        %1501 = vmatpush.bf16.msra.mxu0 %v1141
        %1502 = vmatpush.bf16.msra.mxu0 %v1133
        %1503 = vmatpush.bf16.msra.mxu0 %v1125
        %1504 = vmatpush.bf16.msra.mxu0 %v1117
        %1505 = vmatmul.bf16.gmra.mxu0 %v661
        %v1506 = vpop.f32.mrf.mxu0
        %v1507 = vadd.f32 %v1494, %v1506
        %v1508 = vpop.f32.mrf.mxu0
        %1509 = vdwg.mxu0
        %v1510 = vld [vmem:[%s419] sm:$0xf]
        %v1511 = vunpack.c.l.bf16 %v1510
        %v1516 = vrot.slane %v1351, 6
        %v1517 = vrot.slane %v1377, 4
        %v1518 = vrot.slane %v1403, 2
        %vm1519 = vcmask 1041408
        %v1520 = vsel %vm1519, %v1325, %v1516
        %vm1521 = vcmask 1045508
        %v1522 = vsel %vm1521, %v1517, %v1518
        %vm1523 = vcmask 1043456
        %v1524 = vsel %vm1523, %v1520, %v1522
        %v1526 = vadd.f32 %v1511, %v1524
        %s1527 = scalar_lea.vmem %s426, 28 [#allocation4]
        %v1528 = vld [vmem:[%s1527] sm:$0xf]
        %v1529 = vunpack.c.l.bf16 %v1528
        %v1534 = vrot.slane %v1455, 6
        %v1535 = vrot.slane %v1481, 4
        %v1536 = vrot.slane %v1507, 2
        %v1537 = vsel %vm1519, %v1429, %v1534
        %v1538 = vsel %vm1521, %v1535, %v1536
        %v1539 = vsel %vm1523, %v1537, %v1538
        %v1541 = vadd.f32 %v1529, %v1539
        %v1542 = vxor.u32 %v1526, 2147483648
        %v1543 = vmul.f32 %v1542, 1.442695
        %v1544 = vpow.pop %v1543
        %v1545 = vadd.f32 %v1544, 1.0
        %v1546 = vrcp.pop %v1545
        %v1547 = vmul.f32 %v1545, %v1546
        %v1548 = vsub.f32 1.0, %v1547
        %v1549 = vmul.f32 %v1546, %v1548
        %v1550 = vadd.f32 %v1546, %v1549
        %vm1551 = vweird.f32 %v1545
        %vm1552 = vweird.f32 %v1546
        %vm1553 = vmor %vm1551, %vm1552
        %v1554 = vsel %vm1553, %v1546, %v1550
        %v1555 = vand.u32 2147483647, %v1545
        %vm1556 = vcmp.eq.f32.partialorder %v1555, 8.507059e+37
        %v1557 = vand.u32 %v1545, 2147483648
        %v1558 = vor.u32 1.1754944e-38, %v1557
        %v1559 = vsel %vm1556, %v1558, %v1554
        %v1560 = vmul.f32 1.0, %v1559
        %v1562 = vrot.slane %v1526, 2
        %v1564 = vxor.u32 %v1562, 2147483648
        %v1565 = vmul.f32 %v1564, 1.442695
        %v1566 = vpow.pop %v1565
        %v1567 = vadd.f32 %v1566, 1.0
        %v1568 = vrcp.pop %v1567
        %v1569 = vmul.f32 %v1567, %v1568
        %v1570 = vsub.f32 1.0, %v1569
        %v1571 = vmul.f32 %v1568, %v1570
        %v1572 = vadd.f32 %v1568, %v1571
        %vm1573 = vweird.f32 %v1567
        %vm1574 = vweird.f32 %v1568
        %vm1575 = vmor %vm1573, %vm1574
        %v1576 = vsel %vm1575, %v1568, %v1572
        %v1577 = vand.u32 2147483647, %v1567
        %vm1578 = vcmp.eq.f32.partialorder %v1577, 8.507059e+37
        %v1579 = vand.u32 %v1567, 2147483648
        %v1580 = vor.u32 1.1754944e-38, %v1579
        %v1581 = vsel %vm1578, %v1580, %v1576
        %v1582 = vmul.f32 1.0, %v1581
        %v1583 = vrot.slane %v1526, 4
        %v1585 = vtanh.pop %v1583
        %v1586 = vrot.slane %v1526, 6
        %v1588 = vxor.u32 %v1586, 2147483648
        %v1589 = vmul.f32 %v1588, 1.442695
        %v1590 = vpow.pop %v1589
        %v1591 = vadd.f32 %v1590, 1.0
        %v1592 = vrcp.pop %v1591
        %v1593 = vmul.f32 %v1591, %v1592
        %v1594 = vsub.f32 1.0, %v1593
        %v1595 = vmul.f32 %v1592, %v1594
        %v1596 = vadd.f32 %v1592, %v1595
        %vm1597 = vweird.f32 %v1591
        %vm1598 = vweird.f32 %v1592
        %vm1599 = vmor %vm1597, %vm1598
        %v1600 = vsel %vm1599, %v1592, %v1596
        %v1601 = vand.u32 2147483647, %v1591
        %vm1602 = vcmp.eq.f32.partialorder %v1601, 8.507059e+37
        %v1603 = vand.u32 %v1591, 2147483648
        %v1604 = vor.u32 1.1754944e-38, %v1603
        %v1605 = vsel %vm1602, %v1604, %v1600
        %v1606 = vmul.f32 1.0, %v1605
        %v1607 = vmul.f32 %v1582, %v653
        %v1608 = vmul.f32 %v1560, %v1585
        %v1609 = vadd.f32 %v1607, %v1608
        %v1610 = vtanh.pop %v1609
        %v1611 = vmul.f32 %v1606, %v1610
        %v1612 = vxor.u32 %v1541, 2147483648
        %v1613 = vmul.f32 %v1612, 1.442695
        %v1614 = vpow.pop %v1613
        %v1615 = vadd.f32 %v1614, 1.0
        %v1616 = vrcp.pop %v1615
        %v1617 = vmul.f32 %v1615, %v1616
        %v1618 = vsub.f32 1.0, %v1617
        %v1619 = vmul.f32 %v1616, %v1618
        %v1620 = vadd.f32 %v1616, %v1619
        %vm1621 = vweird.f32 %v1615
        %vm1622 = vweird.f32 %v1616
        %vm1623 = vmor %vm1621, %vm1622
        %v1624 = vsel %vm1623, %v1616, %v1620
        %v1625 = vand.u32 2147483647, %v1615
        %vm1626 = vcmp.eq.f32.partialorder %v1625, 8.507059e+37
        %v1627 = vand.u32 %v1615, 2147483648
        %v1628 = vor.u32 1.1754944e-38, %v1627
        %v1629 = vsel %vm1626, %v1628, %v1624
        %v1630 = vmul.f32 1.0, %v1629
        %v1632 = vrot.slane %v1541, 2
        %v1634 = vxor.u32 %v1632, 2147483648
        %v1635 = vmul.f32 %v1634, 1.442695
        %v1636 = vpow.pop %v1635
        %v1637 = vadd.f32 %v1636, 1.0
        %v1638 = vrcp.pop %v1637
        %v1639 = vmul.f32 %v1637, %v1638
        %v1640 = vsub.f32 1.0, %v1639
        %v1641 = vmul.f32 %v1638, %v1640
        %v1642 = vadd.f32 %v1638, %v1641
        %vm1643 = vweird.f32 %v1637
        %vm1644 = vweird.f32 %v1638
        %vm1645 = vmor %vm1643, %vm1644
        %v1646 = vsel %vm1645, %v1638, %v1642
        %v1647 = vand.u32 2147483647, %v1637
        %vm1648 = vcmp.eq.f32.partialorder %v1647, 8.507059e+37
        %v1649 = vand.u32 %v1637, 2147483648
        %v1650 = vor.u32 1.1754944e-38, %v1649
        %v1651 = vsel %vm1648, %v1650, %v1646
        %v1652 = vmul.f32 1.0, %v1651
        %v1653 = vrot.slane %v1541, 4
        %v1655 = vtanh.pop %v1653
        %v1656 = vrot.slane %v1541, 6
        %v1658 = vxor.u32 %v1656, 2147483648
        %v1659 = vmul.f32 %v1658, 1.442695
        %v1660 = vpow.pop %v1659
        %v1661 = vadd.f32 %v1660, 1.0
        %v1662 = vrcp.pop %v1661
        %v1663 = vmul.f32 %v1661, %v1662
        %v1664 = vsub.f32 1.0, %v1663
        %v1665 = vmul.f32 %v1662, %v1664
        %v1666 = vadd.f32 %v1662, %v1665
        %vm1667 = vweird.f32 %v1661
        %vm1668 = vweird.f32 %v1662
        %vm1669 = vmor %vm1667, %vm1668
        %v1670 = vsel %vm1669, %v1662, %v1666
        %v1671 = vand.u32 2147483647, %v1661
        %vm1672 = vcmp.eq.f32.partialorder %v1671, 8.507059e+37
        %v1673 = vand.u32 %v1661, 2147483648
        %v1674 = vor.u32 1.1754944e-38, %v1673
        %v1675 = vsel %vm1672, %v1674, %v1670
        %v1676 = vmul.f32 1.0, %v1675
        %v1678 = vrot.slane %v653, 2
        %v1680 = vmul.f32 %v1652, %v1678
        %v1681 = vmul.f32 %v1630, %v1655
        %v1682 = vadd.f32 %v1680, %v1681
        %v1683 = vtanh.pop %v1682
        %v1684 = vmul.f32 %v1676, %v1683
        %1685 = vst [vmem:[#allocation1] ss:$4 sm:$0xff] %v636
        %v1686 = vld.sshfl [vmem:[#allocation1] sm:$0xff pattern:$0x73625140]
        %v1687 = vld.sshfl [vmem:[#allocation1 + $0x8] sm:$0xff pattern:$0x73625140]
        %vm1688 = vcmp.lt.s32.totalorder %v648, %v1686
        %vm1689 = vcmp.lt.s32.totalorder %v649, %v1687
        %v1690 = vsel %vm1688, %v1611, 0.0
        %v1691 = vsel %vm1689, %v1684, 0.0
        %1692 = vst [vmem:[%s489] sm:$0x3] %v1690
        %s1693 = scalar_lea.vmem %s499, 14
        %1694 = vst [vmem:[%s1693] sm:$0x3] %v1691
        %1695 = vst [vmem:[#allocation1] ss:$4 sm:$0xff] %v652
        %v1696 = vld.sshfl [vmem:[#allocation1] sm:$0xff pattern:$0x73625140]
        %v1697 = vld.sshfl [vmem:[#allocation1 + $0x8] sm:$0xff pattern:$0x73625140]
        %v1700 = vsel %vm1688, %v1611, %v1696
        %v1701 = vsel %vm1689, %v1684, %v1697
        %1702 = vst [vmem:[#allocation1] ss:$4 sm:$0xff] %v653
        %v1703 = vld.sshfl [vmem:[#allocation1] sm:$0xff pattern:$0x73625140]
        %v1704 = vld.sshfl [vmem:[#allocation1 + $0x8] sm:$0xff pattern:$0x73625140]
        %v1707 = vsel %vm1688, %v1609, %v1703
        %v1708 = vsel %vm1689, %v1682, %v1704
        %v1709 = vpack.c.bf16 %v1700, %v1700
        %v1710 = vpack.c.bf16 %v1701, %v1701
        %1711 = vmatpush.bf16.msra.mxu0 %v1102
        %1712 = vmatpush.bf16.msra.mxu0 %v1094
        %1713 = vmatpush.bf16.msra.mxu0 %v1086
        %1714 = vmatpush.bf16.msra.mxu0 %v1078
        %1715 = vmatpush.bf16.msra.mxu0 %v1070
        %1716 = vmatpush.bf16.msra.mxu0 %v1062
        %1717 = vmatpush.bf16.msra.mxu0 %v1054
        %1718 = vmatpush.bf16.msra.mxu0 %v1046
        %1719 = vmatmul.bf16.gmra.mxu0 %v1709
        %v1720 = vpop.f32.mrf.mxu0
        %v1721 = vadd.f32 0.0, %v1720
        %v1722 = vpop.f32.mrf.mxu0
        %1723 = vdwg.mxu0
        %1724 = vmatpush.bf16.msra.mxu0 %v1166
        %1725 = vmatpush.bf16.msra.mxu0 %v1158
        %1726 = vmatpush.bf16.msra.mxu0 %v1150
        %1727 = vmatpush.bf16.msra.mxu0 %v1142
        %1728 = vmatpush.bf16.msra.mxu0 %v1134
        %1729 = vmatpush.bf16.msra.mxu0 %v1126
        %1730 = vmatpush.bf16.msra.mxu0 %v1118
        %1731 = vmatpush.bf16.msra.mxu0 %v1110
        %1732 = vmatmul.bf16.gmra.mxu0 %v1710
        %v1733 = vpop.f32.mrf.mxu0
        %v1734 = vadd.f32 %v1721, %v1733
        %v1735 = vpop.f32.mrf.mxu0
        %1736 = vdwg.mxu0
        %1737 = vmatpush.bf16.msra.mxu0 %v1103
        %1738 = vmatpush.bf16.msra.mxu0 %v1095
        %1739 = vmatpush.bf16.msra.mxu0 %v1087
        %1740 = vmatpush.bf16.msra.mxu0 %v1079
        %1741 = vmatpush.bf16.msra.mxu0 %v1071
        %1742 = vmatpush.bf16.msra.mxu0 %v1063
        %1743 = vmatpush.bf16.msra.mxu0 %v1055
        %1744 = vmatpush.bf16.msra.mxu0 %v1047
        %1745 = vmatmul.bf16.gmra.mxu0 %v1709
        %v1746 = vpop.f32.mrf.mxu0
        %v1747 = vadd.f32 0.0, %v1746
        %v1748 = vpop.f32.mrf.mxu0
        %1749 = vdwg.mxu0
        %1750 = vmatpush.bf16.msra.mxu0 %v1167
        %1751 = vmatpush.bf16.msra.mxu0 %v1159
        %1752 = vmatpush.bf16.msra.mxu0 %v1151
        %1753 = vmatpush.bf16.msra.mxu0 %v1143
        %1754 = vmatpush.bf16.msra.mxu0 %v1135
        %1755 = vmatpush.bf16.msra.mxu0 %v1127
        %1756 = vmatpush.bf16.msra.mxu0 %v1119
        %1757 = vmatpush.bf16.msra.mxu0 %v1111
        %1758 = vmatmul.bf16.gmra.mxu0 %v1710
        %v1759 = vpop.f32.mrf.mxu0
        %v1760 = vadd.f32 %v1747, %v1759
        %v1761 = vpop.f32.mrf.mxu0
        %1762 = vdwg.mxu0
        %1763 = vmatpush.bf16.msra.mxu0 %v1104
        %1764 = vmatpush.bf16.msra.mxu0 %v1096
        %1765 = vmatpush.bf16.msra.mxu0 %v1088
        %1766 = vmatpush.bf16.msra.mxu0 %v1080
        %1767 = vmatpush.bf16.msra.mxu0 %v1072
        %1768 = vmatpush.bf16.msra.mxu0 %v1064
        %1769 = vmatpush.bf16.msra.mxu0 %v1056
        %1770 = vmatpush.bf16.msra.mxu0 %v1048
        %1771 = vmatmul.bf16.gmra.mxu0 %v1709
        %v1772 = vpop.f32.mrf.mxu0
        %v1773 = vadd.f32 0.0, %v1772
        %v1774 = vpop.f32.mrf.mxu0
        %1775 = vdwg.mxu0
        %1776 = vmatpush.bf16.msra.mxu0 %v1168
        %1777 = vmatpush.bf16.msra.mxu0 %v1160
        %1778 = vmatpush.bf16.msra.mxu0 %v1152
        %1779 = vmatpush.bf16.msra.mxu0 %v1144
        %1780 = vmatpush.bf16.msra.mxu0 %v1136
        %1781 = vmatpush.bf16.msra.mxu0 %v1128
        %1782 = vmatpush.bf16.msra.mxu0 %v1120
        %1783 = vmatpush.bf16.msra.mxu0 %v1112
        %1784 = vmatmul.bf16.gmra.mxu0 %v1710
        %v1785 = vpop.f32.mrf.mxu0
        %v1786 = vadd.f32 %v1773, %v1785
        %v1787 = vpop.f32.mrf.mxu0
        %1788 = vdwg.mxu0
        %1789 = vmatpush.bf16.msra.mxu0 %v1105
        %1790 = vmatpush.bf16.msra.mxu0 %v1097
        %1791 = vmatpush.bf16.msra.mxu0 %v1089
        %1792 = vmatpush.bf16.msra.mxu0 %v1081
        %1793 = vmatpush.bf16.msra.mxu0 %v1073
        %1794 = vmatpush.bf16.msra.mxu0 %v1065
        %1795 = vmatpush.bf16.msra.mxu0 %v1057
        %1796 = vmatpush.bf16.msra.mxu0 %v1049
        %1797 = vmatmul.bf16.gmra.mxu0 %v1709
        %v1798 = vpop.f32.mrf.mxu0
        %v1799 = vadd.f32 0.0, %v1798
        %v1800 = vpop.f32.mrf.mxu0
        %1801 = vdwg.mxu0
        %1802 = vmatpush.bf16.msra.mxu0 %v1169
        %1803 = vmatpush.bf16.msra.mxu0 %v1161
        %1804 = vmatpush.bf16.msra.mxu0 %v1153
        %1805 = vmatpush.bf16.msra.mxu0 %v1145
        %1806 = vmatpush.bf16.msra.mxu0 %v1137
        %1807 = vmatpush.bf16.msra.mxu0 %v1129
        %1808 = vmatpush.bf16.msra.mxu0 %v1121
        %1809 = vmatpush.bf16.msra.mxu0 %v1113
        %1810 = vmatmul.bf16.gmra.mxu0 %v1710
        %v1811 = vpop.f32.mrf.mxu0
        %v1812 = vadd.f32 %v1799, %v1811
        %v1813 = vpop.f32.mrf.mxu0
        %1814 = vdwg.mxu0
        %1815 = vmatpush.bf16.msra.mxu0 %v1106
        %1816 = vmatpush.bf16.msra.mxu0 %v1098
        %1817 = vmatpush.bf16.msra.mxu0 %v1090
        %1818 = vmatpush.bf16.msra.mxu0 %v1082
        %1819 = vmatpush.bf16.msra.mxu0 %v1074
        %1820 = vmatpush.bf16.msra.mxu0 %v1066
        %1821 = vmatpush.bf16.msra.mxu0 %v1058
        %1822 = vmatpush.bf16.msra.mxu0 %v1050
        %1823 = vmatmul.bf16.gmra.mxu0 %v1709
        %v1824 = vpop.f32.mrf.mxu0
        %v1825 = vadd.f32 0.0, %v1824
        %v1826 = vpop.f32.mrf.mxu0
        %1827 = vdwg.mxu0
        %1828 = vmatpush.bf16.msra.mxu0 %v1170
        %1829 = vmatpush.bf16.msra.mxu0 %v1162
        %1830 = vmatpush.bf16.msra.mxu0 %v1154
        %1831 = vmatpush.bf16.msra.mxu0 %v1146
        %1832 = vmatpush.bf16.msra.mxu0 %v1138
        %1833 = vmatpush.bf16.msra.mxu0 %v1130
        %1834 = vmatpush.bf16.msra.mxu0 %v1122
        %1835 = vmatpush.bf16.msra.mxu0 %v1114
        %1836 = vmatmul.bf16.gmra.mxu0 %v1710
        %v1837 = vpop.f32.mrf.mxu0
        %v1838 = vadd.f32 %v1825, %v1837
        %v1839 = vpop.f32.mrf.mxu0
        %1840 = vdwg.mxu0
        %1841 = vmatpush.bf16.msra.mxu0 %v1107
        %1842 = vmatpush.bf16.msra.mxu0 %v1099
        %1843 = vmatpush.bf16.msra.mxu0 %v1091
        %1844 = vmatpush.bf16.msra.mxu0 %v1083
        %1845 = vmatpush.bf16.msra.mxu0 %v1075
        %1846 = vmatpush.bf16.msra.mxu0 %v1067
        %1847 = vmatpush.bf16.msra.mxu0 %v1059
        %1848 = vmatpush.bf16.msra.mxu0 %v1051
        %1849 = vmatmul.bf16.gmra.mxu0 %v1709
        %v1850 = vpop.f32.mrf.mxu0
        %v1851 = vadd.f32 0.0, %v1850
        %v1852 = vpop.f32.mrf.mxu0
        %1853 = vdwg.mxu0
        %1854 = vmatpush.bf16.msra.mxu0 %v1171
        %1855 = vmatpush.bf16.msra.mxu0 %v1163
        %1856 = vmatpush.bf16.msra.mxu0 %v1155
        %1857 = vmatpush.bf16.msra.mxu0 %v1147
        %1858 = vmatpush.bf16.msra.mxu0 %v1139
        %1859 = vmatpush.bf16.msra.mxu0 %v1131
        %1860 = vmatpush.bf16.msra.mxu0 %v1123
        %1861 = vmatpush.bf16.msra.mxu0 %v1115
        %1862 = vmatmul.bf16.gmra.mxu0 %v1710
        %v1863 = vpop.f32.mrf.mxu0
        %v1864 = vadd.f32 %v1851, %v1863
        %v1865 = vpop.f32.mrf.mxu0
        %1866 = vdwg.mxu0
        %1867 = vmatpush.bf16.msra.mxu0 %v1108
        %1868 = vmatpush.bf16.msra.mxu0 %v1100
        %1869 = vmatpush.bf16.msra.mxu0 %v1092
        %1870 = vmatpush.bf16.msra.mxu0 %v1084
        %1871 = vmatpush.bf16.msra.mxu0 %v1076
        %1872 = vmatpush.bf16.msra.mxu0 %v1068
        %1873 = vmatpush.bf16.msra.mxu0 %v1060
        %1874 = vmatpush.bf16.msra.mxu0 %v1052
        %1875 = vmatmul.bf16.gmra.mxu0 %v1709
        %v1876 = vpop.f32.mrf.mxu0
        %v1877 = vadd.f32 0.0, %v1876
        %v1878 = vpop.f32.mrf.mxu0
        %1879 = vdwg.mxu0
        %1880 = vmatpush.bf16.msra.mxu0 %v1172
        %1881 = vmatpush.bf16.msra.mxu0 %v1164
        %1882 = vmatpush.bf16.msra.mxu0 %v1156
        %1883 = vmatpush.bf16.msra.mxu0 %v1148
        %1884 = vmatpush.bf16.msra.mxu0 %v1140
        %1885 = vmatpush.bf16.msra.mxu0 %v1132
        %1886 = vmatpush.bf16.msra.mxu0 %v1124
        %1887 = vmatpush.bf16.msra.mxu0 %v1116
        %1888 = vmatmul.bf16.gmra.mxu0 %v1710
        %v1889 = vpop.f32.mrf.mxu0
        %v1890 = vadd.f32 %v1877, %v1889
        %v1891 = vpop.f32.mrf.mxu0
        %1892 = vdwg.mxu0
        %1893 = vmatpush.bf16.msra.mxu0 %v1109
        %1894 = vmatpush.bf16.msra.mxu0 %v1101
        %1895 = vmatpush.bf16.msra.mxu0 %v1093
        %1896 = vmatpush.bf16.msra.mxu0 %v1085
        %1897 = vmatpush.bf16.msra.mxu0 %v1077
        %1898 = vmatpush.bf16.msra.mxu0 %v1069
        %1899 = vmatpush.bf16.msra.mxu0 %v1061
        %1900 = vmatpush.bf16.msra.mxu0 %v1053
        %1901 = vmatmul.bf16.gmra.mxu0 %v1709
        %v1902 = vpop.f32.mrf.mxu0
        %v1903 = vadd.f32 0.0, %v1902
        %v1904 = vpop.f32.mrf.mxu0
        %1905 = vdwg.mxu0
        %1906 = vmatpush.bf16.msra.mxu0 %v1173
        %1907 = vmatpush.bf16.msra.mxu0 %v1165
        %1908 = vmatpush.bf16.msra.mxu0 %v1157
        %1909 = vmatpush.bf16.msra.mxu0 %v1149
        %1910 = vmatpush.bf16.msra.mxu0 %v1141
        %1911 = vmatpush.bf16.msra.mxu0 %v1133
        %1912 = vmatpush.bf16.msra.mxu0 %v1125
        %1913 = vmatpush.bf16.msra.mxu0 %v1117
        %1914 = vmatmul.bf16.gmra.mxu0 %v1710
        %v1915 = vpop.f32.mrf.mxu0
        %v1916 = vadd.f32 %v1903, %v1915
        %v1917 = vpop.f32.mrf.mxu0
        %1918 = vdwg.mxu0
        %s1919 = scalar_lea.vmem %s419, 4 [#allocation3]
        %v1920 = vld [vmem:[%s1919] sm:$0xf]
        %v1921 = vunpack.c.l.bf16 %v1920
        %v1926 = vrot.slane %v1760, 6
        %v1927 = vrot.slane %v1786, 4
        %v1928 = vrot.slane %v1812, 2
        %v1929 = vsel %vm1519, %v1734, %v1926
        %v1930 = vsel %vm1521, %v1927, %v1928
        %v1931 = vsel %vm1523, %v1929, %v1930
        %v1933 = vadd.f32 %v1921, %v1931
        %s1934 = scalar_lea.vmem %s426, 24 [#allocation4]
        %v1935 = vld [vmem:[%s1934] sm:$0xf]
        %v1936 = vunpack.c.l.bf16 %v1935
        %v1941 = vrot.slane %v1864, 6
        %v1942 = vrot.slane %v1890, 4
        %v1943 = vrot.slane %v1916, 2
        %v1944 = vsel %vm1519, %v1838, %v1941
        %v1945 = vsel %vm1521, %v1942, %v1943
        %v1946 = vsel %vm1523, %v1944, %v1945
        %v1948 = vadd.f32 %v1936, %v1946
        %v1949 = vxor.u32 %v1933, 2147483648
        %v1950 = vmul.f32 %v1949, 1.442695
        %v1951 = vpow.pop %v1950
        %v1952 = vadd.f32 %v1951, 1.0
        %v1953 = vrcp.pop %v1952
        %v1954 = vmul.f32 %v1952, %v1953
        %v1955 = vsub.f32 1.0, %v1954
        %v1956 = vmul.f32 %v1953, %v1955
        %v1957 = vadd.f32 %v1953, %v1956
        %vm1958 = vweird.f32 %v1952
        %vm1959 = vweird.f32 %v1953
        %vm1960 = vmor %vm1958, %vm1959
        %v1961 = vsel %vm1960, %v1953, %v1957
        %v1962 = vand.u32 2147483647, %v1952
        %vm1963 = vcmp.eq.f32.partialorder %v1962, 8.507059e+37
        %v1964 = vand.u32 %v1952, 2147483648
        %v1965 = vor.u32 1.1754944e-38, %v1964
        %v1966 = vsel %vm1963, %v1965, %v1961
        %v1967 = vmul.f32 1.0, %v1966
        %v1969 = vrot.slane %v1933, 2
        %v1971 = vxor.u32 %v1969, 2147483648
        %v1972 = vmul.f32 %v1971, 1.442695
        %v1973 = vpow.pop %v1972
        %v1974 = vadd.f32 %v1973, 1.0
        %v1975 = vrcp.pop %v1974
        %v1976 = vmul.f32 %v1974, %v1975
        %v1977 = vsub.f32 1.0, %v1976
        %v1978 = vmul.f32 %v1975, %v1977
        %v1979 = vadd.f32 %v1975, %v1978
        %vm1980 = vweird.f32 %v1974
        %vm1981 = vweird.f32 %v1975
        %vm1982 = vmor %vm1980, %vm1981
        %v1983 = vsel %vm1982, %v1975, %v1979
        %v1984 = vand.u32 2147483647, %v1974
        %vm1985 = vcmp.eq.f32.partialorder %v1984, 8.507059e+37
        %v1986 = vand.u32 %v1974, 2147483648
        %v1987 = vor.u32 1.1754944e-38, %v1986
        %v1988 = vsel %vm1985, %v1987, %v1983
        %v1989 = vmul.f32 1.0, %v1988
        %v1990 = vrot.slane %v1933, 4
        %v1992 = vtanh.pop %v1990
        %v1993 = vrot.slane %v1933, 6
        %v1995 = vxor.u32 %v1993, 2147483648
        %v1996 = vmul.f32 %v1995, 1.442695
        %v1997 = vpow.pop %v1996
        %v1998 = vadd.f32 %v1997, 1.0
        %v1999 = vrcp.pop %v1998
        %v2000 = vmul.f32 %v1998, %v1999
        %v2001 = vsub.f32 1.0, %v2000
        %v2002 = vmul.f32 %v1999, %v2001
        %v2003 = vadd.f32 %v1999, %v2002
        %vm2004 = vweird.f32 %v1998
        %vm2005 = vweird.f32 %v1999
        %vm2006 = vmor %vm2004, %vm2005
        %v2007 = vsel %vm2006, %v1999, %v2003
        %v2008 = vand.u32 2147483647, %v1998
        %vm2009 = vcmp.eq.f32.partialorder %v2008, 8.507059e+37
        %v2010 = vand.u32 %v1998, 2147483648
        %v2011 = vor.u32 1.1754944e-38, %v2010
        %v2012 = vsel %vm2009, %v2011, %v2007
        %v2013 = vmul.f32 1.0, %v2012
        %v2014 = vmul.f32 %v1989, %v1707
        %v2015 = vmul.f32 %v1967, %v1992
        %v2016 = vadd.f32 %v2014, %v2015
        %v2017 = vtanh.pop %v2016
        %v2018 = vmul.f32 %v2013, %v2017
        %v2019 = vxor.u32 %v1948, 2147483648
        %v2020 = vmul.f32 %v2019, 1.442695
        %v2021 = vpow.pop %v2020
        %v2022 = vadd.f32 %v2021, 1.0
        %v2023 = vrcp.pop %v2022
        %v2024 = vmul.f32 %v2022, %v2023
        %v2025 = vsub.f32 1.0, %v2024
        %v2026 = vmul.f32 %v2023, %v2025
        %v2027 = vadd.f32 %v2023, %v2026
        %vm2028 = vweird.f32 %v2022
        %vm2029 = vweird.f32 %v2023
        %vm2030 = vmor %vm2028, %vm2029
        %v2031 = vsel %vm2030, %v2023, %v2027
        %v2032 = vand.u32 2147483647, %v2022
        %vm2033 = vcmp.eq.f32.partialorder %v2032, 8.507059e+37
        %v2034 = vand.u32 %v2022, 2147483648
        %v2035 = vor.u32 1.1754944e-38, %v2034
        %v2036 = vsel %vm2033, %v2035, %v2031
        %v2037 = vmul.f32 1.0, %v2036
        %v2039 = vrot.slane %v1948, 2
        %v2041 = vxor.u32 %v2039, 2147483648
        %v2042 = vmul.f32 %v2041, 1.442695
        %v2043 = vpow.pop %v2042
        %v2044 = vadd.f32 %v2043, 1.0
        %v2045 = vrcp.pop %v2044
        %v2046 = vmul.f32 %v2044, %v2045
        %v2047 = vsub.f32 1.0, %v2046
        %v2048 = vmul.f32 %v2045, %v2047
        %v2049 = vadd.f32 %v2045, %v2048
        %vm2050 = vweird.f32 %v2044
        %vm2051 = vweird.f32 %v2045
        %vm2052 = vmor %vm2050, %vm2051
        %v2053 = vsel %vm2052, %v2045, %v2049
        %v2054 = vand.u32 2147483647, %v2044
        %vm2055 = vcmp.eq.f32.partialorder %v2054, 8.507059e+37
        %v2056 = vand.u32 %v2044, 2147483648
        %v2057 = vor.u32 1.1754944e-38, %v2056
        %v2058 = vsel %vm2055, %v2057, %v2053
        %v2059 = vmul.f32 1.0, %v2058
        %v2060 = vrot.slane %v1948, 4
        %v2062 = vtanh.pop %v2060
        %v2063 = vrot.slane %v1948, 6
        %v2065 = vxor.u32 %v2063, 2147483648
        %v2066 = vmul.f32 %v2065, 1.442695
        %v2067 = vpow.pop %v2066
        %v2068 = vadd.f32 %v2067, 1.0
        %v2069 = vrcp.pop %v2068
        %v2070 = vmul.f32 %v2068, %v2069
        %v2071 = vsub.f32 1.0, %v2070
        %v2072 = vmul.f32 %v2069, %v2071
        %v2073 = vadd.f32 %v2069, %v2072
        %vm2074 = vweird.f32 %v2068
        %vm2075 = vweird.f32 %v2069
        %vm2076 = vmor %vm2074, %vm2075
        %v2077 = vsel %vm2076, %v2069, %v2073
        %v2078 = vand.u32 2147483647, %v2068
        %vm2079 = vcmp.eq.f32.partialorder %v2078, 8.507059e+37
        %v2080 = vand.u32 %v2068, 2147483648
        %v2081 = vor.u32 1.1754944e-38, %v2080
        %v2082 = vsel %vm2079, %v2081, %v2077
        %v2083 = vmul.f32 1.0, %v2082
        %v2084 = vmul.f32 %v2059, %v1708
        %v2085 = vmul.f32 %v2037, %v2062
        %v2086 = vadd.f32 %v2084, %v2085
        %v2087 = vtanh.pop %v2086
        %v2088 = vmul.f32 %v2083, %v2087
        %v2089 = vadd.s32 %v648, %v650
        %v2090 = vadd.s32 %v649, %v651
        %2091 = vst [vmem:[#allocation1] ss:$4 sm:$0xff] %v636
        %v2092 = vld.sshfl [vmem:[#allocation1] sm:$0xff pattern:$0x73625140]
        %v2093 = vld.sshfl [vmem:[#allocation1 + $0x8] sm:$0xff pattern:$0x73625140]
        %vm2094 = vcmp.lt.s32.totalorder %v2089, %v2092
        %vm2095 = vcmp.lt.s32.totalorder %v2090, %v2093
        %v2096 = vsel %vm2094, %v2018, 0.0
        %v2097 = vsel %vm2095, %v2088, 0.0
        %s2098 = scalar_lea.vmem %s489, 2
        %2099 = vst [vmem:[%s2098] sm:$0x3] %v2096
        %s2100 = scalar_lea.vmem %s499, 12
        %2101 = vst [vmem:[%s2100] sm:$0x3] %v2097
        %v2102 = vsel %vm2094, %v2018, %v1700
        %v2103 = vsel %vm2095, %v2088, %v1701
        %v2104 = vsel %vm2094, %v2016, %v1707
        %v2105 = vsel %vm2095, %v2086, %v1708
        %v2106 = vpack.c.bf16 %v2102, %v2102
        %v2107 = vpack.c.bf16 %v2103, %v2103
        %2108 = vmatpush.bf16.msra.mxu0 %v1102
        %2109 = vmatpush.bf16.msra.mxu0 %v1094
        %2110 = vmatpush.bf16.msra.mxu0 %v1086
        %2111 = vmatpush.bf16.msra.mxu0 %v1078
        %2112 = vmatpush.bf16.msra.mxu0 %v1070
        %2113 = vmatpush.bf16.msra.mxu0 %v1062
        %2114 = vmatpush.bf16.msra.mxu0 %v1054
        %2115 = vmatpush.bf16.msra.mxu0 %v1046
        %2116 = vmatmul.bf16.gmra.mxu0 %v2106
        %v2117 = vpop.f32.mrf.mxu0
        %v2118 = vadd.f32 0.0, %v2117
        %v2119 = vpop.f32.mrf.mxu0
        %2120 = vdwg.mxu0
        %2121 = vmatpush.bf16.msra.mxu0 %v1166
        %2122 = vmatpush.bf16.msra.mxu0 %v1158
        %2123 = vmatpush.bf16.msra.mxu0 %v1150
        %2124 = vmatpush.bf16.msra.mxu0 %v1142
        %2125 = vmatpush.bf16.msra.mxu0 %v1134
        %2126 = vmatpush.bf16.msra.mxu0 %v1126
        %2127 = vmatpush.bf16.msra.mxu0 %v1118
        %2128 = vmatpush.bf16.msra.mxu0 %v1110
        %2129 = vmatmul.bf16.gmra.mxu0 %v2107
        %v2130 = vpop.f32.mrf.mxu0
        %v2131 = vadd.f32 %v2118, %v2130
        %v2132 = vpop.f32.mrf.mxu0
        %2133 = vdwg.mxu0
        %2134 = vmatpush.bf16.msra.mxu0 %v1103
        %2135 = vmatpush.bf16.msra.mxu0 %v1095
        %2136 = vmatpush.bf16.msra.mxu0 %v1087
        %2137 = vmatpush.bf16.msra.mxu0 %v1079
        %2138 = vmatpush.bf16.msra.mxu0 %v1071
        %2139 = vmatpush.bf16.msra.mxu0 %v1063
        %2140 = vmatpush.bf16.msra.mxu0 %v1055
        %2141 = vmatpush.bf16.msra.mxu0 %v1047
        %2142 = vmatmul.bf16.gmra.mxu0 %v2106
        %v2143 = vpop.f32.mrf.mxu0
        %v2144 = vadd.f32 0.0, %v2143
        %v2145 = vpop.f32.mrf.mxu0
        %2146 = vdwg.mxu0
        %2147 = vmatpush.bf16.msra.mxu0 %v1167
        %2148 = vmatpush.bf16.msra.mxu0 %v1159
        %2149 = vmatpush.bf16.msra.mxu0 %v1151
        %2150 = vmatpush.bf16.msra.mxu0 %v1143
        %2151 = vmatpush.bf16.msra.mxu0 %v1135
        %2152 = vmatpush.bf16.msra.mxu0 %v1127
        %2153 = vmatpush.bf16.msra.mxu0 %v1119
        %2154 = vmatpush.bf16.msra.mxu0 %v1111
        %2155 = vmatmul.bf16.gmra.mxu0 %v2107
        %v2156 = vpop.f32.mrf.mxu0
        %v2157 = vadd.f32 %v2144, %v2156
        %v2158 = vpop.f32.mrf.mxu0
        %2159 = vdwg.mxu0
        %2160 = vmatpush.bf16.msra.mxu0 %v1104
        %2161 = vmatpush.bf16.msra.mxu0 %v1096
        %2162 = vmatpush.bf16.msra.mxu0 %v1088
        %2163 = vmatpush.bf16.msra.mxu0 %v1080
        %2164 = vmatpush.bf16.msra.mxu0 %v1072
        %2165 = vmatpush.bf16.msra.mxu0 %v1064
        %2166 = vmatpush.bf16.msra.mxu0 %v1056
        %2167 = vmatpush.bf16.msra.mxu0 %v1048
        %2168 = vmatmul.bf16.gmra.mxu0 %v2106
        %v2169 = vpop.f32.mrf.mxu0
        %v2170 = vadd.f32 0.0, %v2169
        %v2171 = vpop.f32.mrf.mxu0
        %2172 = vdwg.mxu0
        %2173 = vmatpush.bf16.msra.mxu0 %v1168
        %2174 = vmatpush.bf16.msra.mxu0 %v1160
        %2175 = vmatpush.bf16.msra.mxu0 %v1152
        %2176 = vmatpush.bf16.msra.mxu0 %v1144
        %2177 = vmatpush.bf16.msra.mxu0 %v1136
        %2178 = vmatpush.bf16.msra.mxu0 %v1128
        %2179 = vmatpush.bf16.msra.mxu0 %v1120
        %2180 = vmatpush.bf16.msra.mxu0 %v1112
        %2181 = vmatmul.bf16.gmra.mxu0 %v2107
        %v2182 = vpop.f32.mrf.mxu0
        %v2183 = vadd.f32 %v2170, %v2182
        %v2184 = vpop.f32.mrf.mxu0
        %2185 = vdwg.mxu0
        %2186 = vmatpush.bf16.msra.mxu0 %v1105
        %2187 = vmatpush.bf16.msra.mxu0 %v1097
        %2188 = vmatpush.bf16.msra.mxu0 %v1089
        %2189 = vmatpush.bf16.msra.mxu0 %v1081
        %2190 = vmatpush.bf16.msra.mxu0 %v1073
        %2191 = vmatpush.bf16.msra.mxu0 %v1065
        %2192 = vmatpush.bf16.msra.mxu0 %v1057
        %2193 = vmatpush.bf16.msra.mxu0 %v1049
        %2194 = vmatmul.bf16.gmra.mxu0 %v2106
        %v2195 = vpop.f32.mrf.mxu0
        %v2196 = vadd.f32 0.0, %v2195
        %v2197 = vpop.f32.mrf.mxu0
        %2198 = vdwg.mxu0
        %2199 = vmatpush.bf16.msra.mxu0 %v1169
        %2200 = vmatpush.bf16.msra.mxu0 %v1161
        %2201 = vmatpush.bf16.msra.mxu0 %v1153
        %2202 = vmatpush.bf16.msra.mxu0 %v1145
        %2203 = vmatpush.bf16.msra.mxu0 %v1137
        %2204 = vmatpush.bf16.msra.mxu0 %v1129
        %2205 = vmatpush.bf16.msra.mxu0 %v1121
        %2206 = vmatpush.bf16.msra.mxu0 %v1113
        %2207 = vmatmul.bf16.gmra.mxu0 %v2107
        %v2208 = vpop.f32.mrf.mxu0
        %v2209 = vadd.f32 %v2196, %v2208
        %v2210 = vpop.f32.mrf.mxu0
        %2211 = vdwg.mxu0
        %2212 = vmatpush.bf16.msra.mxu0 %v1106
        %2213 = vmatpush.bf16.msra.mxu0 %v1098
        %2214 = vmatpush.bf16.msra.mxu0 %v1090
        %2215 = vmatpush.bf16.msra.mxu0 %v1082
        %2216 = vmatpush.bf16.msra.mxu0 %v1074
        %2217 = vmatpush.bf16.msra.mxu0 %v1066
        %2218 = vmatpush.bf16.msra.mxu0 %v1058
        %2219 = vmatpush.bf16.msra.mxu0 %v1050
        %2220 = vmatmul.bf16.gmra.mxu0 %v2106
        %v2221 = vpop.f32.mrf.mxu0
        %v2222 = vadd.f32 0.0, %v2221
        %v2223 = vpop.f32.mrf.mxu0
        %2224 = vdwg.mxu0
        %2225 = vmatpush.bf16.msra.mxu0 %v1170
        %2226 = vmatpush.bf16.msra.mxu0 %v1162
        %2227 = vmatpush.bf16.msra.mxu0 %v1154
        %2228 = vmatpush.bf16.msra.mxu0 %v1146
        %2229 = vmatpush.bf16.msra.mxu0 %v1138
        %2230 = vmatpush.bf16.msra.mxu0 %v1130
        %2231 = vmatpush.bf16.msra.mxu0 %v1122
        %2232 = vmatpush.bf16.msra.mxu0 %v1114
        %2233 = vmatmul.bf16.gmra.mxu0 %v2107
        %v2234 = vpop.f32.mrf.mxu0
        %v2235 = vadd.f32 %v2222, %v2234
        %v2236 = vpop.f32.mrf.mxu0
        %2237 = vdwg.mxu0
        %2238 = vmatpush.bf16.msra.mxu0 %v1107
        %2239 = vmatpush.bf16.msra.mxu0 %v1099
        %2240 = vmatpush.bf16.msra.mxu0 %v1091
        %2241 = vmatpush.bf16.msra.mxu0 %v1083
        %2242 = vmatpush.bf16.msra.mxu0 %v1075
        %2243 = vmatpush.bf16.msra.mxu0 %v1067
        %2244 = vmatpush.bf16.msra.mxu0 %v1059
        %2245 = vmatpush.bf16.msra.mxu0 %v1051
        %2246 = vmatmul.bf16.gmra.mxu0 %v2106
        %v2247 = vpop.f32.mrf.mxu0
        %v2248 = vadd.f32 0.0, %v2247
        %v2249 = vpop.f32.mrf.mxu0
        %2250 = vdwg.mxu0
        %2251 = vmatpush.bf16.msra.mxu0 %v1171
        %2252 = vmatpush.bf16.msra.mxu0 %v1163
        %2253 = vmatpush.bf16.msra.mxu0 %v1155
        %2254 = vmatpush.bf16.msra.mxu0 %v1147
        %2255 = vmatpush.bf16.msra.mxu0 %v1139
        %2256 = vmatpush.bf16.msra.mxu0 %v1131
        %2257 = vmatpush.bf16.msra.mxu0 %v1123
        %2258 = vmatpush.bf16.msra.mxu0 %v1115
        %2259 = vmatmul.bf16.gmra.mxu0 %v2107
        %v2260 = vpop.f32.mrf.mxu0
        %v2261 = vadd.f32 %v2248, %v2260
        %v2262 = vpop.f32.mrf.mxu0
        %2263 = vdwg.mxu0
        %2264 = vmatpush.bf16.msra.mxu0 %v1108
        %2265 = vmatpush.bf16.msra.mxu0 %v1100
        %2266 = vmatpush.bf16.msra.mxu0 %v1092
        %2267 = vmatpush.bf16.msra.mxu0 %v1084
        %2268 = vmatpush.bf16.msra.mxu0 %v1076
        %2269 = vmatpush.bf16.msra.mxu0 %v1068
        %2270 = vmatpush.bf16.msra.mxu0 %v1060
        %2271 = vmatpush.bf16.msra.mxu0 %v1052
        %2272 = vmatmul.bf16.gmra.mxu0 %v2106
        %v2273 = vpop.f32.mrf.mxu0
        %v2274 = vadd.f32 0.0, %v2273
        %v2275 = vpop.f32.mrf.mxu0
        %2276 = vdwg.mxu0
        %2277 = vmatpush.bf16.msra.mxu0 %v1172
        %2278 = vmatpush.bf16.msra.mxu0 %v1164
        %2279 = vmatpush.bf16.msra.mxu0 %v1156
        %2280 = vmatpush.bf16.msra.mxu0 %v1148
        %2281 = vmatpush.bf16.msra.mxu0 %v1140
        %2282 = vmatpush.bf16.msra.mxu0 %v1132
        %2283 = vmatpush.bf16.msra.mxu0 %v1124
        %2284 = vmatpush.bf16.msra.mxu0 %v1116
        %2285 = vmatmul.bf16.gmra.mxu0 %v2107
        %v2286 = vpop.f32.mrf.mxu0
        %v2287 = vadd.f32 %v2274, %v2286
        %v2288 = vpop.f32.mrf.mxu0
        %2289 = vdwg.mxu0
        %2290 = vmatpush.bf16.msra.mxu0 %v1109
        %2291 = vmatpush.bf16.msra.mxu0 %v1101
        %2292 = vmatpush.bf16.msra.mxu0 %v1093
        %2293 = vmatpush.bf16.msra.mxu0 %v1085
        %2294 = vmatpush.bf16.msra.mxu0 %v1077
        %2295 = vmatpush.bf16.msra.mxu0 %v1069
        %2296 = vmatpush.bf16.msra.mxu0 %v1061
        %2297 = vmatpush.bf16.msra.mxu0 %v1053
        %2298 = vmatmul.bf16.gmra.mxu0 %v2106
        %v2299 = vpop.f32.mrf.mxu0
        %v2300 = vadd.f32 0.0, %v2299
        %v2301 = vpop.f32.mrf.mxu0
        %2302 = vdwg.mxu0
        %2303 = vmatpush.bf16.msra.mxu0 %v1173
        %2304 = vmatpush.bf16.msra.mxu0 %v1165
        %2305 = vmatpush.bf16.msra.mxu0 %v1157
        %2306 = vmatpush.bf16.msra.mxu0 %v1149
        %2307 = vmatpush.bf16.msra.mxu0 %v1141
        %2308 = vmatpush.bf16.msra.mxu0 %v1133
        %2309 = vmatpush.bf16.msra.mxu0 %v1125
        %2310 = vmatpush.bf16.msra.mxu0 %v1117
        %2311 = vmatmul.bf16.gmra.mxu0 %v2107
        %v2312 = vpop.f32.mrf.mxu0
        %v2313 = vadd.f32 %v2300, %v2312
        %v2314 = vpop.f32.mrf.mxu0
        %2315 = vdwg.mxu0
        %s2316 = scalar_lea.vmem %s419, 8 [#allocation3]
        %v2317 = vld [vmem:[%s2316] sm:$0xf]
        %v2318 = vunpack.c.l.bf16 %v2317
        %v2323 = vrot.slane %v2157, 6
        %v2324 = vrot.slane %v2183, 4
        %v2325 = vrot.slane %v2209, 2
        %v2326 = vsel %vm1519, %v2131, %v2323
        %v2327 = vsel %vm1521, %v2324, %v2325
        %v2328 = vsel %vm1523, %v2326, %v2327
        %v2330 = vadd.f32 %v2318, %v2328
        %s2331 = scalar_lea.vmem %s426, 20 [#allocation4]
        %v2332 = vld [vmem:[%s2331] sm:$0xf]
        %v2333 = vunpack.c.l.bf16 %v2332
        %v2338 = vrot.slane %v2261, 6
        %v2339 = vrot.slane %v2287, 4
        %v2340 = vrot.slane %v2313, 2
        %v2341 = vsel %vm1519, %v2235, %v2338
        %v2342 = vsel %vm1521, %v2339, %v2340
        %v2343 = vsel %vm1523, %v2341, %v2342
        %v2345 = vadd.f32 %v2333, %v2343
        %v2346 = vxor.u32 %v2330, 2147483648
        %v2347 = vmul.f32 %v2346, 1.442695
        %v2348 = vpow.pop %v2347
        %v2349 = vadd.f32 %v2348, 1.0
        %v2350 = vrcp.pop %v2349
        %v2351 = vmul.f32 %v2349, %v2350
        %v2352 = vsub.f32 1.0, %v2351
        %v2353 = vmul.f32 %v2350, %v2352
        %v2354 = vadd.f32 %v2350, %v2353
        %vm2355 = vweird.f32 %v2349
        %vm2356 = vweird.f32 %v2350
        %vm2357 = vmor %vm2355, %vm2356
        %v2358 = vsel %vm2357, %v2350, %v2354
        %v2359 = vand.u32 2147483647, %v2349
        %vm2360 = vcmp.eq.f32.partialorder %v2359, 8.507059e+37
        %v2361 = vand.u32 %v2349, 2147483648
        %v2362 = vor.u32 1.1754944e-38, %v2361
        %v2363 = vsel %vm2360, %v2362, %v2358
        %v2364 = vmul.f32 1.0, %v2363
        %v2366 = vrot.slane %v2330, 2
        %v2368 = vxor.u32 %v2366, 2147483648
        %v2369 = vmul.f32 %v2368, 1.442695
        %v2370 = vpow.pop %v2369
        %v2371 = vadd.f32 %v2370, 1.0
        %v2372 = vrcp.pop %v2371
        %v2373 = vmul.f32 %v2371, %v2372
        %v2374 = vsub.f32 1.0, %v2373
        %v2375 = vmul.f32 %v2372, %v2374
        %v2376 = vadd.f32 %v2372, %v2375
        %vm2377 = vweird.f32 %v2371
        %vm2378 = vweird.f32 %v2372
        %vm2379 = vmor %vm2377, %vm2378
        %v2380 = vsel %vm2379, %v2372, %v2376
        %v2381 = vand.u32 2147483647, %v2371
        %vm2382 = vcmp.eq.f32.partialorder %v2381, 8.507059e+37
        %v2383 = vand.u32 %v2371, 2147483648
        %v2384 = vor.u32 1.1754944e-38, %v2383
        %v2385 = vsel %vm2382, %v2384, %v2380
        %v2386 = vmul.f32 1.0, %v2385
        %v2387 = vrot.slane %v2330, 4
        %v2389 = vtanh.pop %v2387
        %v2390 = vrot.slane %v2330, 6
        %v2392 = vxor.u32 %v2390, 2147483648
        %v2393 = vmul.f32 %v2392, 1.442695
        %v2394 = vpow.pop %v2393
        %v2395 = vadd.f32 %v2394, 1.0
        %v2396 = vrcp.pop %v2395
        %v2397 = vmul.f32 %v2395, %v2396
        %v2398 = vsub.f32 1.0, %v2397
        %v2399 = vmul.f32 %v2396, %v2398
        %v2400 = vadd.f32 %v2396, %v2399
        %vm2401 = vweird.f32 %v2395
        %vm2402 = vweird.f32 %v2396
        %vm2403 = vmor %vm2401, %vm2402
        %v2404 = vsel %vm2403, %v2396, %v2400
        %v2405 = vand.u32 2147483647, %v2395
        %vm2406 = vcmp.eq.f32.partialorder %v2405, 8.507059e+37
        %v2407 = vand.u32 %v2395, 2147483648
        %v2408 = vor.u32 1.1754944e-38, %v2407
        %v2409 = vsel %vm2406, %v2408, %v2404
        %v2410 = vmul.f32 1.0, %v2409
        %v2411 = vmul.f32 %v2386, %v2104
        %v2412 = vmul.f32 %v2364, %v2389
        %v2413 = vadd.f32 %v2411, %v2412
        %v2414 = vtanh.pop %v2413
        %v2415 = vmul.f32 %v2410, %v2414
        %v2416 = vxor.u32 %v2345, 2147483648
        %v2417 = vmul.f32 %v2416, 1.442695
        %v2418 = vpow.pop %v2417
        %v2419 = vadd.f32 %v2418, 1.0
        %v2420 = vrcp.pop %v2419
        %v2421 = vmul.f32 %v2419, %v2420
        %v2422 = vsub.f32 1.0, %v2421
        %v2423 = vmul.f32 %v2420, %v2422
        %v2424 = vadd.f32 %v2420, %v2423
        %vm2425 = vweird.f32 %v2419
        %vm2426 = vweird.f32 %v2420
        %vm2427 = vmor %vm2425, %vm2426
        %v2428 = vsel %vm2427, %v2420, %v2424
        %v2429 = vand.u32 2147483647, %v2419
        %vm2430 = vcmp.eq.f32.partialorder %v2429, 8.507059e+37
        %v2431 = vand.u32 %v2419, 2147483648
        %v2432 = vor.u32 1.1754944e-38, %v2431
        %v2433 = vsel %vm2430, %v2432, %v2428
        %v2434 = vmul.f32 1.0, %v2433
        %v2436 = vrot.slane %v2345, 2
        %v2438 = vxor.u32 %v2436, 2147483648
        %v2439 = vmul.f32 %v2438, 1.442695
        %v2440 = vpow.pop %v2439
        %v2441 = vadd.f32 %v2440, 1.0
        %v2442 = vrcp.pop %v2441
        %v2443 = vmul.f32 %v2441, %v2442
        %v2444 = vsub.f32 1.0, %v2443
        %v2445 = vmul.f32 %v2442, %v2444
        %v2446 = vadd.f32 %v2442, %v2445
        %vm2447 = vweird.f32 %v2441
        %vm2448 = vweird.f32 %v2442
        %vm2449 = vmor %vm2447, %vm2448
        %v2450 = vsel %vm2449, %v2442, %v2446
        %v2451 = vand.u32 2147483647, %v2441
        %vm2452 = vcmp.eq.f32.partialorder %v2451, 8.507059e+37
        %v2453 = vand.u32 %v2441, 2147483648
        %v2454 = vor.u32 1.1754944e-38, %v2453
        %v2455 = vsel %vm2452, %v2454, %v2450
        %v2456 = vmul.f32 1.0, %v2455
        %v2457 = vrot.slane %v2345, 4
        %v2459 = vtanh.pop %v2457
        %v2460 = vrot.slane %v2345, 6
        %v2462 = vxor.u32 %v2460, 2147483648
        %v2463 = vmul.f32 %v2462, 1.442695
        %v2464 = vpow.pop %v2463
        %v2465 = vadd.f32 %v2464, 1.0
        %v2466 = vrcp.pop %v2465
        %v2467 = vmul.f32 %v2465, %v2466
        %v2468 = vsub.f32 1.0, %v2467
        %v2469 = vmul.f32 %v2466, %v2468
        %v2470 = vadd.f32 %v2466, %v2469
        %vm2471 = vweird.f32 %v2465
        %vm2472 = vweird.f32 %v2466
        %vm2473 = vmor %vm2471, %vm2472
        %v2474 = vsel %vm2473, %v2466, %v2470
        %v2475 = vand.u32 2147483647, %v2465
        %vm2476 = vcmp.eq.f32.partialorder %v2475, 8.507059e+37
        %v2477 = vand.u32 %v2465, 2147483648
        %v2478 = vor.u32 1.1754944e-38, %v2477
        %v2479 = vsel %vm2476, %v2478, %v2474
        %v2480 = vmul.f32 1.0, %v2479
        %v2481 = vmul.f32 %v2456, %v2105
        %v2482 = vmul.f32 %v2434, %v2459
        %v2483 = vadd.f32 %v2481, %v2482
        %v2484 = vtanh.pop %v2483
        %v2485 = vmul.f32 %v2480, %v2484
        %v2486 = vmul.u32 %v650, 2
        %v2487 = vmul.u32 %v651, 2
        %v2488 = vadd.s32 %v648, %v2486
        %v2489 = vadd.s32 %v649, %v2487
        %2490 = vst [vmem:[#allocation1] ss:$4 sm:$0xff] %v636
        %v2491 = vld.sshfl [vmem:[#allocation1] sm:$0xff pattern:$0x73625140]
        %v2492 = vld.sshfl [vmem:[#allocation1 + $0x8] sm:$0xff pattern:$0x73625140]
        %vm2493 = vcmp.lt.s32.totalorder %v2488, %v2491
        %vm2494 = vcmp.lt.s32.totalorder %v2489, %v2492
        %v2495 = vsel %vm2493, %v2415, 0.0
        %v2496 = vsel %vm2494, %v2485, 0.0
        %s2497 = scalar_lea.vmem %s489, 4
        %2498 = vst [vmem:[%s2497] sm:$0x3] %v2495
        %s2499 = scalar_lea.vmem %s499, 10
        %2500 = vst [vmem:[%s2499] sm:$0x3] %v2496
        %v2501 = vsel %vm2493, %v2415, %v2102
        %v2502 = vsel %vm2494, %v2485, %v2103
        %v2503 = vsel %vm2493, %v2413, %v2104
        %v2504 = vsel %vm2494, %v2483, %v2105
        %v2505 = vpack.c.bf16 %v2501, %v2501
        %v2506 = vpack.c.bf16 %v2502, %v2502
        %2507 = vmatpush.bf16.msra.mxu0 %v1102
        %2508 = vmatpush.bf16.msra.mxu0 %v1094
        %2509 = vmatpush.bf16.msra.mxu0 %v1086
        %2510 = vmatpush.bf16.msra.mxu0 %v1078
        %2511 = vmatpush.bf16.msra.mxu0 %v1070
        %2512 = vmatpush.bf16.msra.mxu0 %v1062
        %2513 = vmatpush.bf16.msra.mxu0 %v1054
        %2514 = vmatpush.bf16.msra.mxu0 %v1046
        %2515 = vmatmul.bf16.gmra.mxu0 %v2505
        %v2516 = vpop.f32.mrf.mxu0
        %v2517 = vadd.f32 0.0, %v2516
        %v2518 = vpop.f32.mrf.mxu0
        %2519 = vdwg.mxu0
        %2520 = vmatpush.bf16.msra.mxu0 %v1166
        %2521 = vmatpush.bf16.msra.mxu0 %v1158
        %2522 = vmatpush.bf16.msra.mxu0 %v1150
        %2523 = vmatpush.bf16.msra.mxu0 %v1142
        %2524 = vmatpush.bf16.msra.mxu0 %v1134
        %2525 = vmatpush.bf16.msra.mxu0 %v1126
        %2526 = vmatpush.bf16.msra.mxu0 %v1118
        %2527 = vmatpush.bf16.msra.mxu0 %v1110
        %2528 = vmatmul.bf16.gmra.mxu0 %v2506
        %v2529 = vpop.f32.mrf.mxu0
        %v2530 = vadd.f32 %v2517, %v2529
        %v2531 = vpop.f32.mrf.mxu0
        %2532 = vdwg.mxu0
        %2533 = vmatpush.bf16.msra.mxu0 %v1103
        %2534 = vmatpush.bf16.msra.mxu0 %v1095
        %2535 = vmatpush.bf16.msra.mxu0 %v1087
        %2536 = vmatpush.bf16.msra.mxu0 %v1079
        %2537 = vmatpush.bf16.msra.mxu0 %v1071
        %2538 = vmatpush.bf16.msra.mxu0 %v1063
        %2539 = vmatpush.bf16.msra.mxu0 %v1055
        %2540 = vmatpush.bf16.msra.mxu0 %v1047
        %2541 = vmatmul.bf16.gmra.mxu0 %v2505
        %v2542 = vpop.f32.mrf.mxu0
        %v2543 = vadd.f32 0.0, %v2542
        %v2544 = vpop.f32.mrf.mxu0
        %2545 = vdwg.mxu0
        %2546 = vmatpush.bf16.msra.mxu0 %v1167
        %2547 = vmatpush.bf16.msra.mxu0 %v1159
        %2548 = vmatpush.bf16.msra.mxu0 %v1151
        %2549 = vmatpush.bf16.msra.mxu0 %v1143
        %2550 = vmatpush.bf16.msra.mxu0 %v1135
        %2551 = vmatpush.bf16.msra.mxu0 %v1127
        %2552 = vmatpush.bf16.msra.mxu0 %v1119
        %2553 = vmatpush.bf16.msra.mxu0 %v1111
        %2554 = vmatmul.bf16.gmra.mxu0 %v2506
        %v2555 = vpop.f32.mrf.mxu0
        %v2556 = vadd.f32 %v2543, %v2555
        %v2557 = vpop.f32.mrf.mxu0
        %2558 = vdwg.mxu0
        %2559 = vmatpush.bf16.msra.mxu0 %v1104
        %2560 = vmatpush.bf16.msra.mxu0 %v1096
        %2561 = vmatpush.bf16.msra.mxu0 %v1088
        %2562 = vmatpush.bf16.msra.mxu0 %v1080
        %2563 = vmatpush.bf16.msra.mxu0 %v1072
        %2564 = vmatpush.bf16.msra.mxu0 %v1064
        %2565 = vmatpush.bf16.msra.mxu0 %v1056
        %2566 = vmatpush.bf16.msra.mxu0 %v1048
        %2567 = vmatmul.bf16.gmra.mxu0 %v2505
        %v2568 = vpop.f32.mrf.mxu0
        %v2569 = vadd.f32 0.0, %v2568
        %v2570 = vpop.f32.mrf.mxu0
        %2571 = vdwg.mxu0
        %2572 = vmatpush.bf16.msra.mxu0 %v1168
        %2573 = vmatpush.bf16.msra.mxu0 %v1160
        %2574 = vmatpush.bf16.msra.mxu0 %v1152
        %2575 = vmatpush.bf16.msra.mxu0 %v1144
        %2576 = vmatpush.bf16.msra.mxu0 %v1136
        %2577 = vmatpush.bf16.msra.mxu0 %v1128
        %2578 = vmatpush.bf16.msra.mxu0 %v1120
        %2579 = vmatpush.bf16.msra.mxu0 %v1112
        %2580 = vmatmul.bf16.gmra.mxu0 %v2506
        %v2581 = vpop.f32.mrf.mxu0
        %v2582 = vadd.f32 %v2569, %v2581
        %v2583 = vpop.f32.mrf.mxu0
        %2584 = vdwg.mxu0
        %2585 = vmatpush.bf16.msra.mxu0 %v1105
        %2586 = vmatpush.bf16.msra.mxu0 %v1097
        %2587 = vmatpush.bf16.msra.mxu0 %v1089
        %2588 = vmatpush.bf16.msra.mxu0 %v1081
        %2589 = vmatpush.bf16.msra.mxu0 %v1073
        %2590 = vmatpush.bf16.msra.mxu0 %v1065
        %2591 = vmatpush.bf16.msra.mxu0 %v1057
        %2592 = vmatpush.bf16.msra.mxu0 %v1049
        %2593 = vmatmul.bf16.gmra.mxu0 %v2505
        %v2594 = vpop.f32.mrf.mxu0
        %v2595 = vadd.f32 0.0, %v2594
        %v2596 = vpop.f32.mrf.mxu0
        %2597 = vdwg.mxu0
        %2598 = vmatpush.bf16.msra.mxu0 %v1169
        %2599 = vmatpush.bf16.msra.mxu0 %v1161
        %2600 = vmatpush.bf16.msra.mxu0 %v1153
        %2601 = vmatpush.bf16.msra.mxu0 %v1145
        %2602 = vmatpush.bf16.msra.mxu0 %v1137
        %2603 = vmatpush.bf16.msra.mxu0 %v1129
        %2604 = vmatpush.bf16.msra.mxu0 %v1121
        %2605 = vmatpush.bf16.msra.mxu0 %v1113
        %2606 = vmatmul.bf16.gmra.mxu0 %v2506
        %v2607 = vpop.f32.mrf.mxu0
        %v2608 = vadd.f32 %v2595, %v2607
        %v2609 = vpop.f32.mrf.mxu0
        %2610 = vdwg.mxu0
        %2611 = vmatpush.bf16.msra.mxu0 %v1106
        %2612 = vmatpush.bf16.msra.mxu0 %v1098
        %2613 = vmatpush.bf16.msra.mxu0 %v1090
        %2614 = vmatpush.bf16.msra.mxu0 %v1082
        %2615 = vmatpush.bf16.msra.mxu0 %v1074
        %2616 = vmatpush.bf16.msra.mxu0 %v1066
        %2617 = vmatpush.bf16.msra.mxu0 %v1058
        %2618 = vmatpush.bf16.msra.mxu0 %v1050
        %2619 = vmatmul.bf16.gmra.mxu0 %v2505
        %v2620 = vpop.f32.mrf.mxu0
        %v2621 = vadd.f32 0.0, %v2620
        %v2622 = vpop.f32.mrf.mxu0
        %2623 = vdwg.mxu0
        %2624 = vmatpush.bf16.msra.mxu0 %v1170
        %2625 = vmatpush.bf16.msra.mxu0 %v1162
        %2626 = vmatpush.bf16.msra.mxu0 %v1154
        %2627 = vmatpush.bf16.msra.mxu0 %v1146
        %2628 = vmatpush.bf16.msra.mxu0 %v1138
        %2629 = vmatpush.bf16.msra.mxu0 %v1130
        %2630 = vmatpush.bf16.msra.mxu0 %v1122
        %2631 = vmatpush.bf16.msra.mxu0 %v1114
        %2632 = vmatmul.bf16.gmra.mxu0 %v2506
        %v2633 = vpop.f32.mrf.mxu0
        %v2634 = vadd.f32 %v2621, %v2633
        %v2635 = vpop.f32.mrf.mxu0
        %2636 = vdwg.mxu0
        %2637 = vmatpush.bf16.msra.mxu0 %v1107
        %2638 = vmatpush.bf16.msra.mxu0 %v1099
        %2639 = vmatpush.bf16.msra.mxu0 %v1091
        %2640 = vmatpush.bf16.msra.mxu0 %v1083
        %2641 = vmatpush.bf16.msra.mxu0 %v1075
        %2642 = vmatpush.bf16.msra.mxu0 %v1067
        %2643 = vmatpush.bf16.msra.mxu0 %v1059
        %2644 = vmatpush.bf16.msra.mxu0 %v1051
        %2645 = vmatmul.bf16.gmra.mxu0 %v2505
        %v2646 = vpop.f32.mrf.mxu0
        %v2647 = vadd.f32 0.0, %v2646
        %v2648 = vpop.f32.mrf.mxu0
        %2649 = vdwg.mxu0
        %2650 = vmatpush.bf16.msra.mxu0 %v1171
        %2651 = vmatpush.bf16.msra.mxu0 %v1163
        %2652 = vmatpush.bf16.msra.mxu0 %v1155
        %2653 = vmatpush.bf16.msra.mxu0 %v1147
        %2654 = vmatpush.bf16.msra.mxu0 %v1139
        %2655 = vmatpush.bf16.msra.mxu0 %v1131
        %2656 = vmatpush.bf16.msra.mxu0 %v1123
        %2657 = vmatpush.bf16.msra.mxu0 %v1115
        %2658 = vmatmul.bf16.gmra.mxu0 %v2506
        %v2659 = vpop.f32.mrf.mxu0
        %v2660 = vadd.f32 %v2647, %v2659
        %v2661 = vpop.f32.mrf.mxu0
        %2662 = vdwg.mxu0
        %2663 = vmatpush.bf16.msra.mxu0 %v1108
        %2664 = vmatpush.bf16.msra.mxu0 %v1100
        %2665 = vmatpush.bf16.msra.mxu0 %v1092
        %2666 = vmatpush.bf16.msra.mxu0 %v1084
        %2667 = vmatpush.bf16.msra.mxu0 %v1076
        %2668 = vmatpush.bf16.msra.mxu0 %v1068
        %2669 = vmatpush.bf16.msra.mxu0 %v1060
        %2670 = vmatpush.bf16.msra.mxu0 %v1052
        %2671 = vmatmul.bf16.gmra.mxu0 %v2505
        %v2672 = vpop.f32.mrf.mxu0
        %v2673 = vadd.f32 0.0, %v2672
        %v2674 = vpop.f32.mrf.mxu0
        %2675 = vdwg.mxu0
        %2676 = vmatpush.bf16.msra.mxu0 %v1172
        %2677 = vmatpush.bf16.msra.mxu0 %v1164
        %2678 = vmatpush.bf16.msra.mxu0 %v1156
        %2679 = vmatpush.bf16.msra.mxu0 %v1148
        %2680 = vmatpush.bf16.msra.mxu0 %v1140
        %2681 = vmatpush.bf16.msra.mxu0 %v1132
        %2682 = vmatpush.bf16.msra.mxu0 %v1124
        %2683 = vmatpush.bf16.msra.mxu0 %v1116
        %2684 = vmatmul.bf16.gmra.mxu0 %v2506
        %v2685 = vpop.f32.mrf.mxu0
        %v2686 = vadd.f32 %v2673, %v2685
        %v2687 = vpop.f32.mrf.mxu0
        %2688 = vdwg.mxu0
        %2689 = vmatpush.bf16.msra.mxu0 %v1109
        %2690 = vmatpush.bf16.msra.mxu0 %v1101
        %2691 = vmatpush.bf16.msra.mxu0 %v1093
        %2692 = vmatpush.bf16.msra.mxu0 %v1085
        %2693 = vmatpush.bf16.msra.mxu0 %v1077
        %2694 = vmatpush.bf16.msra.mxu0 %v1069
        %2695 = vmatpush.bf16.msra.mxu0 %v1061
        %2696 = vmatpush.bf16.msra.mxu0 %v1053
        %2697 = vmatmul.bf16.gmra.mxu0 %v2505
        %v2698 = vpop.f32.mrf.mxu0
        %v2699 = vadd.f32 0.0, %v2698
        %v2700 = vpop.f32.mrf.mxu0
        %2701 = vdwg.mxu0
        %2702 = vmatpush.bf16.msra.mxu0 %v1173
        %2703 = vmatpush.bf16.msra.mxu0 %v1165
        %2704 = vmatpush.bf16.msra.mxu0 %v1157
        %2705 = vmatpush.bf16.msra.mxu0 %v1149
        %2706 = vmatpush.bf16.msra.mxu0 %v1141
        %2707 = vmatpush.bf16.msra.mxu0 %v1133
        %2708 = vmatpush.bf16.msra.mxu0 %v1125
        %2709 = vmatpush.bf16.msra.mxu0 %v1117
        %2710 = vmatmul.bf16.gmra.mxu0 %v2506
        %v2711 = vpop.f32.mrf.mxu0
        %v2712 = vadd.f32 %v2699, %v2711
        %v2713 = vpop.f32.mrf.mxu0
        %2714 = vdwg.mxu0
        %s2715 = scalar_lea.vmem %s419, 12 [#allocation3]
        %v2716 = vld [vmem:[%s2715] sm:$0xf]
        %v2717 = vunpack.c.l.bf16 %v2716
        %v2722 = vrot.slane %v2556, 6
        %v2723 = vrot.slane %v2582, 4
        %v2724 = vrot.slane %v2608, 2
        %v2725 = vsel %vm1519, %v2530, %v2722
        %v2726 = vsel %vm1521, %v2723, %v2724
        %v2727 = vsel %vm1523, %v2725, %v2726
        %v2729 = vadd.f32 %v2717, %v2727
        %s2730 = scalar_lea.vmem %s426, 16 [#allocation4]
        %v2731 = vld [vmem:[%s2730] sm:$0xf]
        %v2732 = vunpack.c.l.bf16 %v2731
        %v2737 = vrot.slane %v2660, 6
        %v2738 = vrot.slane %v2686, 4
        %v2739 = vrot.slane %v2712, 2
        %v2740 = vsel %vm1519, %v2634, %v2737
        %v2741 = vsel %vm1521, %v2738, %v2739
        %v2742 = vsel %vm1523, %v2740, %v2741
        %v2744 = vadd.f32 %v2732, %v2742
        %v2745 = vxor.u32 %v2729, 2147483648
        %v2746 = vmul.f32 %v2745, 1.442695
        %v2747 = vpow.pop %v2746
        %v2748 = vadd.f32 %v2747, 1.0
        %v2749 = vrcp.pop %v2748
        %v2750 = vmul.f32 %v2748, %v2749
        %v2751 = vsub.f32 1.0, %v2750
        %v2752 = vmul.f32 %v2749, %v2751
        %v2753 = vadd.f32 %v2749, %v2752
        %vm2754 = vweird.f32 %v2748
        %vm2755 = vweird.f32 %v2749
        %vm2756 = vmor %vm2754, %vm2755
        %v2757 = vsel %vm2756, %v2749, %v2753
        %v2758 = vand.u32 2147483647, %v2748
        %vm2759 = vcmp.eq.f32.partialorder %v2758, 8.507059e+37
        %v2760 = vand.u32 %v2748, 2147483648
        %v2761 = vor.u32 1.1754944e-38, %v2760
        %v2762 = vsel %vm2759, %v2761, %v2757
        %v2763 = vmul.f32 1.0, %v2762
        %v2765 = vrot.slane %v2729, 2
        %v2767 = vxor.u32 %v2765, 2147483648
        %v2768 = vmul.f32 %v2767, 1.442695
        %v2769 = vpow.pop %v2768
        %v2770 = vadd.f32 %v2769, 1.0
        %v2771 = vrcp.pop %v2770
        %v2772 = vmul.f32 %v2770, %v2771
        %v2773 = vsub.f32 1.0, %v2772
        %v2774 = vmul.f32 %v2771, %v2773
        %v2775 = vadd.f32 %v2771, %v2774
        %vm2776 = vweird.f32 %v2770
        %vm2777 = vweird.f32 %v2771
        %vm2778 = vmor %vm2776, %vm2777
        %v2779 = vsel %vm2778, %v2771, %v2775
        %v2780 = vand.u32 2147483647, %v2770
        %vm2781 = vcmp.eq.f32.partialorder %v2780, 8.507059e+37
        %v2782 = vand.u32 %v2770, 2147483648
        %v2783 = vor.u32 1.1754944e-38, %v2782
        %v2784 = vsel %vm2781, %v2783, %v2779
        %v2785 = vmul.f32 1.0, %v2784
        %v2786 = vrot.slane %v2729, 4
        %v2788 = vtanh.pop %v2786
        %v2789 = vrot.slane %v2729, 6
        %v2791 = vxor.u32 %v2789, 2147483648
        %v2792 = vmul.f32 %v2791, 1.442695
        %v2793 = vpow.pop %v2792
        %v2794 = vadd.f32 %v2793, 1.0
        %v2795 = vrcp.pop %v2794
        %v2796 = vmul.f32 %v2794, %v2795
        %v2797 = vsub.f32 1.0, %v2796
        %v2798 = vmul.f32 %v2795, %v2797
        %v2799 = vadd.f32 %v2795, %v2798
        %vm2800 = vweird.f32 %v2794
        %vm2801 = vweird.f32 %v2795
        %vm2802 = vmor %vm2800, %vm2801
        %v2803 = vsel %vm2802, %v2795, %v2799
        %v2804 = vand.u32 2147483647, %v2794
        %vm2805 = vcmp.eq.f32.partialorder %v2804, 8.507059e+37
        %v2806 = vand.u32 %v2794, 2147483648
        %v2807 = vor.u32 1.1754944e-38, %v2806
        %v2808 = vsel %vm2805, %v2807, %v2803
        %v2809 = vmul.f32 1.0, %v2808
        %v2810 = vmul.f32 %v2785, %v2503
        %v2811 = vmul.f32 %v2763, %v2788
        %v2812 = vadd.f32 %v2810, %v2811
        %v2813 = vtanh.pop %v2812
        %v2814 = vmul.f32 %v2809, %v2813
        %v2815 = vxor.u32 %v2744, 2147483648
        %v2816 = vmul.f32 %v2815, 1.442695
        %v2817 = vpow.pop %v2816
        %v2818 = vadd.f32 %v2817, 1.0
        %v2819 = vrcp.pop %v2818
        %v2820 = vmul.f32 %v2818, %v2819
        %v2821 = vsub.f32 1.0, %v2820
        %v2822 = vmul.f32 %v2819, %v2821
        %v2823 = vadd.f32 %v2819, %v2822
        %vm2824 = vweird.f32 %v2818
        %vm2825 = vweird.f32 %v2819
        %vm2826 = vmor %vm2824, %vm2825
        %v2827 = vsel %vm2826, %v2819, %v2823
        %v2828 = vand.u32 2147483647, %v2818
        %vm2829 = vcmp.eq.f32.partialorder %v2828, 8.507059e+37
        %v2830 = vand.u32 %v2818, 2147483648
        %v2831 = vor.u32 1.1754944e-38, %v2830
        %v2832 = vsel %vm2829, %v2831, %v2827
        %v2833 = vmul.f32 1.0, %v2832
        %v2835 = vrot.slane %v2744, 2
        %v2837 = vxor.u32 %v2835, 2147483648
        %v2838 = vmul.f32 %v2837, 1.442695
        %v2839 = vpow.pop %v2838
        %v2840 = vadd.f32 %v2839, 1.0
        %v2841 = vrcp.pop %v2840
        %v2842 = vmul.f32 %v2840, %v2841
        %v2843 = vsub.f32 1.0, %v2842
        %v2844 = vmul.f32 %v2841, %v2843
        %v2845 = vadd.f32 %v2841, %v2844
        %vm2846 = vweird.f32 %v2840
        %vm2847 = vweird.f32 %v2841
        %vm2848 = vmor %vm2846, %vm2847
        %v2849 = vsel %vm2848, %v2841, %v2845
        %v2850 = vand.u32 2147483647, %v2840
        %vm2851 = vcmp.eq.f32.partialorder %v2850, 8.507059e+37
        %v2852 = vand.u32 %v2840, 2147483648
        %v2853 = vor.u32 1.1754944e-38, %v2852
        %v2854 = vsel %vm2851, %v2853, %v2849
        %v2855 = vmul.f32 1.0, %v2854
        %v2856 = vrot.slane %v2744, 4
        %v2858 = vtanh.pop %v2856
        %v2859 = vrot.slane %v2744, 6
        %v2861 = vxor.u32 %v2859, 2147483648
        %v2862 = vmul.f32 %v2861, 1.442695
        %v2863 = vpow.pop %v2862
        %v2864 = vadd.f32 %v2863, 1.0
        %v2865 = vrcp.pop %v2864
        %v2866 = vmul.f32 %v2864, %v2865
        %v2867 = vsub.f32 1.0, %v2866
        %v2868 = vmul.f32 %v2865, %v2867
        %v2869 = vadd.f32 %v2865, %v2868
        %vm2870 = vweird.f32 %v2864
        %vm2871 = vweird.f32 %v2865
        %vm2872 = vmor %vm2870, %vm2871
        %v2873 = vsel %vm2872, %v2865, %v2869
        %v2874 = vand.u32 2147483647, %v2864
        %vm2875 = vcmp.eq.f32.partialorder %v2874, 8.507059e+37
        %v2876 = vand.u32 %v2864, 2147483648
        %v2877 = vor.u32 1.1754944e-38, %v2876
        %v2878 = vsel %vm2875, %v2877, %v2873
        %v2879 = vmul.f32 1.0, %v2878
        %v2880 = vmul.f32 %v2855, %v2504
        %v2881 = vmul.f32 %v2833, %v2858
        %v2882 = vadd.f32 %v2880, %v2881
        %v2883 = vtanh.pop %v2882
        %v2884 = vmul.f32 %v2879, %v2883
        %v2885 = vmul.u32 %v650, 3
        %v2886 = vmul.u32 %v651, 3
        %v2887 = vadd.s32 %v648, %v2885
        %v2888 = vadd.s32 %v649, %v2886
        %2889 = vst [vmem:[#allocation1] ss:$4 sm:$0xff] %v636
        %v2890 = vld.sshfl [vmem:[#allocation1] sm:$0xff pattern:$0x73625140]
        %v2891 = vld.sshfl [vmem:[#allocation1 + $0x8] sm:$0xff pattern:$0x73625140]
        %vm2892 = vcmp.lt.s32.totalorder %v2887, %v2890
        %vm2893 = vcmp.lt.s32.totalorder %v2888, %v2891
        %v2894 = vsel %vm2892, %v2814, 0.0
        %v2895 = vsel %vm2893, %v2884, 0.0
        %s2896 = scalar_lea.vmem %s489, 6
        %2897 = vst [vmem:[%s2896] sm:$0x3] %v2894
        %s2898 = scalar_lea.vmem %s499, 8
        %2899 = vst [vmem:[%s2898] sm:$0x3] %v2895
        %v2900 = vsel %vm2892, %v2814, %v2501
        %v2901 = vsel %vm2893, %v2884, %v2502
        %v2902 = vsel %vm2892, %v2812, %v2503
        %v2903 = vsel %vm2893, %v2882, %v2504
        %v2904 = vpack.c.bf16 %v2900, %v2900
        %v2905 = vpack.c.bf16 %v2901, %v2901
        %2906 = vmatpush.bf16.msra.mxu0 %v1102
        %2907 = vmatpush.bf16.msra.mxu0 %v1094
        %2908 = vmatpush.bf16.msra.mxu0 %v1086
        %2909 = vmatpush.bf16.msra.mxu0 %v1078
        %2910 = vmatpush.bf16.msra.mxu0 %v1070
        %2911 = vmatpush.bf16.msra.mxu0 %v1062
        %2912 = vmatpush.bf16.msra.mxu0 %v1054
        %2913 = vmatpush.bf16.msra.mxu0 %v1046
        %2914 = vmatmul.bf16.gmra.mxu0 %v2904
        %v2915 = vpop.f32.mrf.mxu0
        %v2916 = vadd.f32 0.0, %v2915
        %v2917 = vpop.f32.mrf.mxu0
        %2918 = vdwg.mxu0
        %2919 = vmatpush.bf16.msra.mxu0 %v1166
        %2920 = vmatpush.bf16.msra.mxu0 %v1158
        %2921 = vmatpush.bf16.msra.mxu0 %v1150
        %2922 = vmatpush.bf16.msra.mxu0 %v1142
        %2923 = vmatpush.bf16.msra.mxu0 %v1134
        %2924 = vmatpush.bf16.msra.mxu0 %v1126
        %2925 = vmatpush.bf16.msra.mxu0 %v1118
        %2926 = vmatpush.bf16.msra.mxu0 %v1110
        %2927 = vmatmul.bf16.gmra.mxu0 %v2905
        %v2928 = vpop.f32.mrf.mxu0
        %v2929 = vadd.f32 %v2916, %v2928
        %v2930 = vpop.f32.mrf.mxu0
        %2931 = vdwg.mxu0
        %2932 = vmatpush.bf16.msra.mxu0 %v1103
        %2933 = vmatpush.bf16.msra.mxu0 %v1095
        %2934 = vmatpush.bf16.msra.mxu0 %v1087
        %2935 = vmatpush.bf16.msra.mxu0 %v1079
        %2936 = vmatpush.bf16.msra.mxu0 %v1071
        %2937 = vmatpush.bf16.msra.mxu0 %v1063
        %2938 = vmatpush.bf16.msra.mxu0 %v1055
        %2939 = vmatpush.bf16.msra.mxu0 %v1047
        %2940 = vmatmul.bf16.gmra.mxu0 %v2904
        %v2941 = vpop.f32.mrf.mxu0
        %v2942 = vadd.f32 0.0, %v2941
        %v2943 = vpop.f32.mrf.mxu0
        %2944 = vdwg.mxu0
        %2945 = vmatpush.bf16.msra.mxu0 %v1167
        %2946 = vmatpush.bf16.msra.mxu0 %v1159
        %2947 = vmatpush.bf16.msra.mxu0 %v1151
        %2948 = vmatpush.bf16.msra.mxu0 %v1143
        %2949 = vmatpush.bf16.msra.mxu0 %v1135
        %2950 = vmatpush.bf16.msra.mxu0 %v1127
        %2951 = vmatpush.bf16.msra.mxu0 %v1119
        %2952 = vmatpush.bf16.msra.mxu0 %v1111
        %2953 = vmatmul.bf16.gmra.mxu0 %v2905
        %v2954 = vpop.f32.mrf.mxu0
        %v2955 = vadd.f32 %v2942, %v2954
        %v2956 = vpop.f32.mrf.mxu0
        %2957 = vdwg.mxu0
        %2958 = vmatpush.bf16.msra.mxu0 %v1104
        %2959 = vmatpush.bf16.msra.mxu0 %v1096
        %2960 = vmatpush.bf16.msra.mxu0 %v1088
        %2961 = vmatpush.bf16.msra.mxu0 %v1080
        %2962 = vmatpush.bf16.msra.mxu0 %v1072
        %2963 = vmatpush.bf16.msra.mxu0 %v1064
        %2964 = vmatpush.bf16.msra.mxu0 %v1056
        %2965 = vmatpush.bf16.msra.mxu0 %v1048
        %2966 = vmatmul.bf16.gmra.mxu0 %v2904
        %v2967 = vpop.f32.mrf.mxu0
        %v2968 = vadd.f32 0.0, %v2967
        %v2969 = vpop.f32.mrf.mxu0
        %2970 = vdwg.mxu0
        %2971 = vmatpush.bf16.msra.mxu0 %v1168
        %2972 = vmatpush.bf16.msra.mxu0 %v1160
        %2973 = vmatpush.bf16.msra.mxu0 %v1152
        %2974 = vmatpush.bf16.msra.mxu0 %v1144
        %2975 = vmatpush.bf16.msra.mxu0 %v1136
        %2976 = vmatpush.bf16.msra.mxu0 %v1128
        %2977 = vmatpush.bf16.msra.mxu0 %v1120
        %2978 = vmatpush.bf16.msra.mxu0 %v1112
        %2979 = vmatmul.bf16.gmra.mxu0 %v2905
        %v2980 = vpop.f32.mrf.mxu0
        %v2981 = vadd.f32 %v2968, %v2980
        %v2982 = vpop.f32.mrf.mxu0
        %2983 = vdwg.mxu0
        %2984 = vmatpush.bf16.msra.mxu0 %v1105
        %2985 = vmatpush.bf16.msra.mxu0 %v1097
        %2986 = vmatpush.bf16.msra.mxu0 %v1089
        %2987 = vmatpush.bf16.msra.mxu0 %v1081
        %2988 = vmatpush.bf16.msra.mxu0 %v1073
        %2989 = vmatpush.bf16.msra.mxu0 %v1065
        %2990 = vmatpush.bf16.msra.mxu0 %v1057
        %2991 = vmatpush.bf16.msra.mxu0 %v1049
        %2992 = vmatmul.bf16.gmra.mxu0 %v2904
        %v2993 = vpop.f32.mrf.mxu0
        %v2994 = vadd.f32 0.0, %v2993
        %v2995 = vpop.f32.mrf.mxu0
        %2996 = vdwg.mxu0
        %2997 = vmatpush.bf16.msra.mxu0 %v1169
        %2998 = vmatpush.bf16.msra.mxu0 %v1161
        %2999 = vmatpush.bf16.msra.mxu0 %v1153
        %3000 = vmatpush.bf16.msra.mxu0 %v1145
        %3001 = vmatpush.bf16.msra.mxu0 %v1137
        %3002 = vmatpush.bf16.msra.mxu0 %v1129
        %3003 = vmatpush.bf16.msra.mxu0 %v1121
        %3004 = vmatpush.bf16.msra.mxu0 %v1113
        %3005 = vmatmul.bf16.gmra.mxu0 %v2905
        %v3006 = vpop.f32.mrf.mxu0
        %v3007 = vadd.f32 %v2994, %v3006
        %v3008 = vpop.f32.mrf.mxu0
        %3009 = vdwg.mxu0
        %3010 = vmatpush.bf16.msra.mxu0 %v1106
        %3011 = vmatpush.bf16.msra.mxu0 %v1098
        %3012 = vmatpush.bf16.msra.mxu0 %v1090
        %3013 = vmatpush.bf16.msra.mxu0 %v1082
        %3014 = vmatpush.bf16.msra.mxu0 %v1074
        %3015 = vmatpush.bf16.msra.mxu0 %v1066
        %3016 = vmatpush.bf16.msra.mxu0 %v1058
        %3017 = vmatpush.bf16.msra.mxu0 %v1050
        %3018 = vmatmul.bf16.gmra.mxu0 %v2904
        %v3019 = vpop.f32.mrf.mxu0
        %v3020 = vadd.f32 0.0, %v3019
        %v3021 = vpop.f32.mrf.mxu0
        %3022 = vdwg.mxu0
        %3023 = vmatpush.bf16.msra.mxu0 %v1170
        %3024 = vmatpush.bf16.msra.mxu0 %v1162
        %3025 = vmatpush.bf16.msra.mxu0 %v1154
        %3026 = vmatpush.bf16.msra.mxu0 %v1146
        %3027 = vmatpush.bf16.msra.mxu0 %v1138
        %3028 = vmatpush.bf16.msra.mxu0 %v1130
        %3029 = vmatpush.bf16.msra.mxu0 %v1122
        %3030 = vmatpush.bf16.msra.mxu0 %v1114
        %3031 = vmatmul.bf16.gmra.mxu0 %v2905
        %v3032 = vpop.f32.mrf.mxu0
        %v3033 = vadd.f32 %v3020, %v3032
        %v3034 = vpop.f32.mrf.mxu0
        %3035 = vdwg.mxu0
        %3036 = vmatpush.bf16.msra.mxu0 %v1107
        %3037 = vmatpush.bf16.msra.mxu0 %v1099
        %3038 = vmatpush.bf16.msra.mxu0 %v1091
        %3039 = vmatpush.bf16.msra.mxu0 %v1083
        %3040 = vmatpush.bf16.msra.mxu0 %v1075
        %3041 = vmatpush.bf16.msra.mxu0 %v1067
        %3042 = vmatpush.bf16.msra.mxu0 %v1059
        %3043 = vmatpush.bf16.msra.mxu0 %v1051
        %3044 = vmatmul.bf16.gmra.mxu0 %v2904
        %v3045 = vpop.f32.mrf.mxu0
        %v3046 = vadd.f32 0.0, %v3045
        %v3047 = vpop.f32.mrf.mxu0
        %3048 = vdwg.mxu0
        %3049 = vmatpush.bf16.msra.mxu0 %v1171
        %3050 = vmatpush.bf16.msra.mxu0 %v1163
        %3051 = vmatpush.bf16.msra.mxu0 %v1155
        %3052 = vmatpush.bf16.msra.mxu0 %v1147
        %3053 = vmatpush.bf16.msra.mxu0 %v1139
        %3054 = vmatpush.bf16.msra.mxu0 %v1131
        %3055 = vmatpush.bf16.msra.mxu0 %v1123
        %3056 = vmatpush.bf16.msra.mxu0 %v1115
        %3057 = vmatmul.bf16.gmra.mxu0 %v2905
        %v3058 = vpop.f32.mrf.mxu0
        %v3059 = vadd.f32 %v3046, %v3058
        %v3060 = vpop.f32.mrf.mxu0
        %3061 = vdwg.mxu0
        %3062 = vmatpush.bf16.msra.mxu0 %v1108
        %3063 = vmatpush.bf16.msra.mxu0 %v1100
        %3064 = vmatpush.bf16.msra.mxu0 %v1092
        %3065 = vmatpush.bf16.msra.mxu0 %v1084
        %3066 = vmatpush.bf16.msra.mxu0 %v1076
        %3067 = vmatpush.bf16.msra.mxu0 %v1068
        %3068 = vmatpush.bf16.msra.mxu0 %v1060
        %3069 = vmatpush.bf16.msra.mxu0 %v1052
        %3070 = vmatmul.bf16.gmra.mxu0 %v2904
        %v3071 = vpop.f32.mrf.mxu0
        %v3072 = vadd.f32 0.0, %v3071
        %v3073 = vpop.f32.mrf.mxu0
        %3074 = vdwg.mxu0
        %3075 = vmatpush.bf16.msra.mxu0 %v1172
        %3076 = vmatpush.bf16.msra.mxu0 %v1164
        %3077 = vmatpush.bf16.msra.mxu0 %v1156
        %3078 = vmatpush.bf16.msra.mxu0 %v1148
        %3079 = vmatpush.bf16.msra.mxu0 %v1140
        %3080 = vmatpush.bf16.msra.mxu0 %v1132
        %3081 = vmatpush.bf16.msra.mxu0 %v1124
        %3082 = vmatpush.bf16.msra.mxu0 %v1116
        %3083 = vmatmul.bf16.gmra.mxu0 %v2905
        %v3084 = vpop.f32.mrf.mxu0
        %v3085 = vadd.f32 %v3072, %v3084
        %v3086 = vpop.f32.mrf.mxu0
        %3087 = vdwg.mxu0
        %3088 = vmatpush.bf16.msra.mxu0 %v1109
        %3089 = vmatpush.bf16.msra.mxu0 %v1101
        %3090 = vmatpush.bf16.msra.mxu0 %v1093
        %3091 = vmatpush.bf16.msra.mxu0 %v1085
        %3092 = vmatpush.bf16.msra.mxu0 %v1077
        %3093 = vmatpush.bf16.msra.mxu0 %v1069
        %3094 = vmatpush.bf16.msra.mxu0 %v1061
        %3095 = vmatpush.bf16.msra.mxu0 %v1053
        %3096 = vmatmul.bf16.gmra.mxu0 %v2904
        %v3097 = vpop.f32.mrf.mxu0
        %v3098 = vadd.f32 0.0, %v3097
        %v3099 = vpop.f32.mrf.mxu0
        %3100 = vdwg.mxu0
        %3101 = vmatpush.bf16.msra.mxu0 %v1173
        %3102 = vmatpush.bf16.msra.mxu0 %v1165
        %3103 = vmatpush.bf16.msra.mxu0 %v1157
        %3104 = vmatpush.bf16.msra.mxu0 %v1149
        %3105 = vmatpush.bf16.msra.mxu0 %v1141
        %3106 = vmatpush.bf16.msra.mxu0 %v1133
        %3107 = vmatpush.bf16.msra.mxu0 %v1125
        %3108 = vmatpush.bf16.msra.mxu0 %v1117
        %3109 = vmatmul.bf16.gmra.mxu0 %v2905
        %v3110 = vpop.f32.mrf.mxu0
        %v3111 = vadd.f32 %v3098, %v3110
        %v3112 = vpop.f32.mrf.mxu0
        %3113 = vdwg.mxu0
        %s3114 = scalar_lea.vmem %s419, 16 [#allocation3]
        %v3115 = vld [vmem:[%s3114] sm:$0xf]
        %v3116 = vunpack.c.l.bf16 %v3115
        %v3121 = vrot.slane %v2955, 6
        %v3122 = vrot.slane %v2981, 4
        %v3123 = vrot.slane %v3007, 2
        %v3124 = vsel %vm1519, %v2929, %v3121
        %v3125 = vsel %vm1521, %v3122, %v3123
        %v3126 = vsel %vm1523, %v3124, %v3125
        %v3128 = vadd.f32 %v3116, %v3126
        %s3129 = scalar_lea.vmem %s426, 12 [#allocation4]
        %v3130 = vld [vmem:[%s3129] sm:$0xf]
        %v3131 = vunpack.c.l.bf16 %v3130
        %v3136 = vrot.slane %v3059, 6
        %v3137 = vrot.slane %v3085, 4
        %v3138 = vrot.slane %v3111, 2
        %v3139 = vsel %vm1519, %v3033, %v3136
        %v3140 = vsel %vm1521, %v3137, %v3138
        %v3141 = vsel %vm1523, %v3139, %v3140
        %v3143 = vadd.f32 %v3131, %v3141
        %v3144 = vxor.u32 %v3128, 2147483648
        %v3145 = vmul.f32 %v3144, 1.442695
        %v3146 = vpow.pop %v3145
        %v3147 = vadd.f32 %v3146, 1.0
        %v3148 = vrcp.pop %v3147
        %v3149 = vmul.f32 %v3147, %v3148
        %v3150 = vsub.f32 1.0, %v3149
        %v3151 = vmul.f32 %v3148, %v3150
        %v3152 = vadd.f32 %v3148, %v3151
        %vm3153 = vweird.f32 %v3147
        %vm3154 = vweird.f32 %v3148
        %vm3155 = vmor %vm3153, %vm3154
        %v3156 = vsel %vm3155, %v3148, %v3152
        %v3157 = vand.u32 2147483647, %v3147
        %vm3158 = vcmp.eq.f32.partialorder %v3157, 8.507059e+37
        %v3159 = vand.u32 %v3147, 2147483648
        %v3160 = vor.u32 1.1754944e-38, %v3159
        %v3161 = vsel %vm3158, %v3160, %v3156
        %v3162 = vmul.f32 1.0, %v3161
        %v3164 = vrot.slane %v3128, 2
        %v3166 = vxor.u32 %v3164, 2147483648
        %v3167 = vmul.f32 %v3166, 1.442695
        %v3168 = vpow.pop %v3167
        %v3169 = vadd.f32 %v3168, 1.0
        %v3170 = vrcp.pop %v3169
        %v3171 = vmul.f32 %v3169, %v3170
        %v3172 = vsub.f32 1.0, %v3171
        %v3173 = vmul.f32 %v3170, %v3172
        %v3174 = vadd.f32 %v3170, %v3173
        %vm3175 = vweird.f32 %v3169
        %vm3176 = vweird.f32 %v3170
        %vm3177 = vmor %vm3175, %vm3176
        %v3178 = vsel %vm3177, %v3170, %v3174
        %v3179 = vand.u32 2147483647, %v3169
        %vm3180 = vcmp.eq.f32.partialorder %v3179, 8.507059e+37
        %v3181 = vand.u32 %v3169, 2147483648
        %v3182 = vor.u32 1.1754944e-38, %v3181
        %v3183 = vsel %vm3180, %v3182, %v3178
        %v3184 = vmul.f32 1.0, %v3183
        %v3185 = vrot.slane %v3128, 4
        %v3187 = vtanh.pop %v3185
        %v3188 = vrot.slane %v3128, 6
        %v3190 = vxor.u32 %v3188, 2147483648
        %v3191 = vmul.f32 %v3190, 1.442695
        %v3192 = vpow.pop %v3191
        %v3193 = vadd.f32 %v3192, 1.0
        %v3194 = vrcp.pop %v3193
        %v3195 = vmul.f32 %v3193, %v3194
        %v3196 = vsub.f32 1.0, %v3195
        %v3197 = vmul.f32 %v3194, %v3196
        %v3198 = vadd.f32 %v3194, %v3197
        %vm3199 = vweird.f32 %v3193
        %vm3200 = vweird.f32 %v3194
        %vm3201 = vmor %vm3199, %vm3200
        %v3202 = vsel %vm3201, %v3194, %v3198
        %v3203 = vand.u32 2147483647, %v3193
        %vm3204 = vcmp.eq.f32.partialorder %v3203, 8.507059e+37
        %v3205 = vand.u32 %v3193, 2147483648
        %v3206 = vor.u32 1.1754944e-38, %v3205
        %v3207 = vsel %vm3204, %v3206, %v3202
        %v3208 = vmul.f32 1.0, %v3207
        %v3209 = vmul.f32 %v3184, %v2902
        %v3210 = vmul.f32 %v3162, %v3187
        %v3211 = vadd.f32 %v3209, %v3210
        %v3212 = vtanh.pop %v3211
        %v3213 = vmul.f32 %v3208, %v3212
        %v3214 = vxor.u32 %v3143, 2147483648
        %v3215 = vmul.f32 %v3214, 1.442695
        %v3216 = vpow.pop %v3215
        %v3217 = vadd.f32 %v3216, 1.0
        %v3218 = vrcp.pop %v3217
        %v3219 = vmul.f32 %v3217, %v3218
        %v3220 = vsub.f32 1.0, %v3219
        %v3221 = vmul.f32 %v3218, %v3220
        %v3222 = vadd.f32 %v3218, %v3221
        %vm3223 = vweird.f32 %v3217
        %vm3224 = vweird.f32 %v3218
        %vm3225 = vmor %vm3223, %vm3224
        %v3226 = vsel %vm3225, %v3218, %v3222
        %v3227 = vand.u32 2147483647, %v3217
        %vm3228 = vcmp.eq.f32.partialorder %v3227, 8.507059e+37
        %v3229 = vand.u32 %v3217, 2147483648
        %v3230 = vor.u32 1.1754944e-38, %v3229
        %v3231 = vsel %vm3228, %v3230, %v3226
        %v3232 = vmul.f32 1.0, %v3231
        %v3234 = vrot.slane %v3143, 2
        %v3236 = vxor.u32 %v3234, 2147483648
        %v3237 = vmul.f32 %v3236, 1.442695
        %v3238 = vpow.pop %v3237
        %v3239 = vadd.f32 %v3238, 1.0
        %v3240 = vrcp.pop %v3239
        %v3241 = vmul.f32 %v3239, %v3240
        %v3242 = vsub.f32 1.0, %v3241
        %v3243 = vmul.f32 %v3240, %v3242
        %v3244 = vadd.f32 %v3240, %v3243
        %vm3245 = vweird.f32 %v3239
        %vm3246 = vweird.f32 %v3240
        %vm3247 = vmor %vm3245, %vm3246
        %v3248 = vsel %vm3247, %v3240, %v3244
        %v3249 = vand.u32 2147483647, %v3239
        %vm3250 = vcmp.eq.f32.partialorder %v3249, 8.507059e+37
        %v3251 = vand.u32 %v3239, 2147483648
        %v3252 = vor.u32 1.1754944e-38, %v3251
        %v3253 = vsel %vm3250, %v3252, %v3248
        %v3254 = vmul.f32 1.0, %v3253
        %v3255 = vrot.slane %v3143, 4
        %v3257 = vtanh.pop %v3255
        %v3258 = vrot.slane %v3143, 6
        %v3260 = vxor.u32 %v3258, 2147483648
        %v3261 = vmul.f32 %v3260, 1.442695
        %v3262 = vpow.pop %v3261
        %v3263 = vadd.f32 %v3262, 1.0
        %v3264 = vrcp.pop %v3263
        %v3265 = vmul.f32 %v3263, %v3264
        %v3266 = vsub.f32 1.0, %v3265
        %v3267 = vmul.f32 %v3264, %v3266
        %v3268 = vadd.f32 %v3264, %v3267
        %vm3269 = vweird.f32 %v3263
        %vm3270 = vweird.f32 %v3264
        %vm3271 = vmor %vm3269, %vm3270
        %v3272 = vsel %vm3271, %v3264, %v3268
        %v3273 = vand.u32 2147483647, %v3263
        %vm3274 = vcmp.eq.f32.partialorder %v3273, 8.507059e+37
        %v3275 = vand.u32 %v3263, 2147483648
        %v3276 = vor.u32 1.1754944e-38, %v3275
        %v3277 = vsel %vm3274, %v3276, %v3272
        %v3278 = vmul.f32 1.0, %v3277
        %v3279 = vmul.f32 %v3254, %v2903
        %v3280 = vmul.f32 %v3232, %v3257
        %v3281 = vadd.f32 %v3279, %v3280
        %v3282 = vtanh.pop %v3281
        %v3283 = vmul.f32 %v3278, %v3282
        %v3284 = vmul.u32 %v650, 4
        %v3285 = vmul.u32 %v651, 4
        %v3286 = vadd.s32 %v648, %v3284
        %v3287 = vadd.s32 %v649, %v3285
        %3288 = vst [vmem:[#allocation1] ss:$4 sm:$0xff] %v636
        %v3289 = vld.sshfl [vmem:[#allocation1] sm:$0xff pattern:$0x73625140]
        %v3290 = vld.sshfl [vmem:[#allocation1 + $0x8] sm:$0xff pattern:$0x73625140]
        %vm3291 = vcmp.lt.s32.totalorder %v3286, %v3289
        %vm3292 = vcmp.lt.s32.totalorder %v3287, %v3290
        %v3293 = vsel %vm3291, %v3213, 0.0
        %v3294 = vsel %vm3292, %v3283, 0.0
        %s3295 = scalar_lea.vmem %s489, 8
        %3296 = vst [vmem:[%s3295] sm:$0x3] %v3293
        %s3297 = scalar_lea.vmem %s499, 6
        %3298 = vst [vmem:[%s3297] sm:$0x3] %v3294
        %v3299 = vsel %vm3291, %v3213, %v2900
        %v3300 = vsel %vm3292, %v3283, %v2901
        %v3301 = vsel %vm3291, %v3211, %v2902
        %v3302 = vsel %vm3292, %v3281, %v2903
        %v3303 = vpack.c.bf16 %v3299, %v3299
        %v3304 = vpack.c.bf16 %v3300, %v3300
        %3305 = vmatpush.bf16.msra.mxu0 %v1102
        %3306 = vmatpush.bf16.msra.mxu0 %v1094
        %3307 = vmatpush.bf16.msra.mxu0 %v1086
        %3308 = vmatpush.bf16.msra.mxu0 %v1078
        %3309 = vmatpush.bf16.msra.mxu0 %v1070
        %3310 = vmatpush.bf16.msra.mxu0 %v1062
        %3311 = vmatpush.bf16.msra.mxu0 %v1054
        %3312 = vmatpush.bf16.msra.mxu0 %v1046
        %3313 = vmatmul.bf16.gmra.mxu0 %v3303
        %v3314 = vpop.f32.mrf.mxu0
        %v3315 = vadd.f32 0.0, %v3314
        %v3316 = vpop.f32.mrf.mxu0
        %3317 = vdwg.mxu0
        %3318 = vmatpush.bf16.msra.mxu0 %v1166
        %3319 = vmatpush.bf16.msra.mxu0 %v1158
        %3320 = vmatpush.bf16.msra.mxu0 %v1150
        %3321 = vmatpush.bf16.msra.mxu0 %v1142
        %3322 = vmatpush.bf16.msra.mxu0 %v1134
        %3323 = vmatpush.bf16.msra.mxu0 %v1126
        %3324 = vmatpush.bf16.msra.mxu0 %v1118
        %3325 = vmatpush.bf16.msra.mxu0 %v1110
        %3326 = vmatmul.bf16.gmra.mxu0 %v3304
        %v3327 = vpop.f32.mrf.mxu0
        %v3328 = vadd.f32 %v3315, %v3327
        %v3329 = vpop.f32.mrf.mxu0
        %3330 = vdwg.mxu0
        %3331 = vmatpush.bf16.msra.mxu0 %v1103
        %3332 = vmatpush.bf16.msra.mxu0 %v1095
        %3333 = vmatpush.bf16.msra.mxu0 %v1087
        %3334 = vmatpush.bf16.msra.mxu0 %v1079
        %3335 = vmatpush.bf16.msra.mxu0 %v1071
        %3336 = vmatpush.bf16.msra.mxu0 %v1063
        %3337 = vmatpush.bf16.msra.mxu0 %v1055
        %3338 = vmatpush.bf16.msra.mxu0 %v1047
        %3339 = vmatmul.bf16.gmra.mxu0 %v3303
        %v3340 = vpop.f32.mrf.mxu0
        %v3341 = vadd.f32 0.0, %v3340
        %v3342 = vpop.f32.mrf.mxu0
        %3343 = vdwg.mxu0
        %3344 = vmatpush.bf16.msra.mxu0 %v1167
        %3345 = vmatpush.bf16.msra.mxu0 %v1159
        %3346 = vmatpush.bf16.msra.mxu0 %v1151
        %3347 = vmatpush.bf16.msra.mxu0 %v1143
        %3348 = vmatpush.bf16.msra.mxu0 %v1135
        %3349 = vmatpush.bf16.msra.mxu0 %v1127
        %3350 = vmatpush.bf16.msra.mxu0 %v1119
        %3351 = vmatpush.bf16.msra.mxu0 %v1111
        %3352 = vmatmul.bf16.gmra.mxu0 %v3304
        %v3353 = vpop.f32.mrf.mxu0
        %v3354 = vadd.f32 %v3341, %v3353
        %v3355 = vpop.f32.mrf.mxu0
        %3356 = vdwg.mxu0
        %3357 = vmatpush.bf16.msra.mxu0 %v1104
        %3358 = vmatpush.bf16.msra.mxu0 %v1096
        %3359 = vmatpush.bf16.msra.mxu0 %v1088
        %3360 = vmatpush.bf16.msra.mxu0 %v1080
        %3361 = vmatpush.bf16.msra.mxu0 %v1072
        %3362 = vmatpush.bf16.msra.mxu0 %v1064
        %3363 = vmatpush.bf16.msra.mxu0 %v1056
        %3364 = vmatpush.bf16.msra.mxu0 %v1048
        %3365 = vmatmul.bf16.gmra.mxu0 %v3303
        %v3366 = vpop.f32.mrf.mxu0
        %v3367 = vadd.f32 0.0, %v3366
        %v3368 = vpop.f32.mrf.mxu0
        %3369 = vdwg.mxu0
        %3370 = vmatpush.bf16.msra.mxu0 %v1168
        %3371 = vmatpush.bf16.msra.mxu0 %v1160
        %3372 = vmatpush.bf16.msra.mxu0 %v1152
        %3373 = vmatpush.bf16.msra.mxu0 %v1144
        %3374 = vmatpush.bf16.msra.mxu0 %v1136
        %3375 = vmatpush.bf16.msra.mxu0 %v1128
        %3376 = vmatpush.bf16.msra.mxu0 %v1120
        %3377 = vmatpush.bf16.msra.mxu0 %v1112
        %3378 = vmatmul.bf16.gmra.mxu0 %v3304
        %v3379 = vpop.f32.mrf.mxu0
        %v3380 = vadd.f32 %v3367, %v3379
        %v3381 = vpop.f32.mrf.mxu0
        %3382 = vdwg.mxu0
        %3383 = vmatpush.bf16.msra.mxu0 %v1105
        %3384 = vmatpush.bf16.msra.mxu0 %v1097
        %3385 = vmatpush.bf16.msra.mxu0 %v1089
        %3386 = vmatpush.bf16.msra.mxu0 %v1081
        %3387 = vmatpush.bf16.msra.mxu0 %v1073
        %3388 = vmatpush.bf16.msra.mxu0 %v1065
        %3389 = vmatpush.bf16.msra.mxu0 %v1057
        %3390 = vmatpush.bf16.msra.mxu0 %v1049
        %3391 = vmatmul.bf16.gmra.mxu0 %v3303
        %v3392 = vpop.f32.mrf.mxu0
        %v3393 = vadd.f32 0.0, %v3392
        %v3394 = vpop.f32.mrf.mxu0
        %3395 = vdwg.mxu0
        %3396 = vmatpush.bf16.msra.mxu0 %v1169
        %3397 = vmatpush.bf16.msra.mxu0 %v1161
        %3398 = vmatpush.bf16.msra.mxu0 %v1153
        %3399 = vmatpush.bf16.msra.mxu0 %v1145
        %3400 = vmatpush.bf16.msra.mxu0 %v1137
        %3401 = vmatpush.bf16.msra.mxu0 %v1129
        %3402 = vmatpush.bf16.msra.mxu0 %v1121
        %3403 = vmatpush.bf16.msra.mxu0 %v1113
        %3404 = vmatmul.bf16.gmra.mxu0 %v3304
        %v3405 = vpop.f32.mrf.mxu0
        %v3406 = vadd.f32 %v3393, %v3405
        %v3407 = vpop.f32.mrf.mxu0
        %3408 = vdwg.mxu0
        %3409 = vmatpush.bf16.msra.mxu0 %v1106
        %3410 = vmatpush.bf16.msra.mxu0 %v1098
        %3411 = vmatpush.bf16.msra.mxu0 %v1090
        %3412 = vmatpush.bf16.msra.mxu0 %v1082
        %3413 = vmatpush.bf16.msra.mxu0 %v1074
        %3414 = vmatpush.bf16.msra.mxu0 %v1066
        %3415 = vmatpush.bf16.msra.mxu0 %v1058
        %3416 = vmatpush.bf16.msra.mxu0 %v1050
        %3417 = vmatmul.bf16.gmra.mxu0 %v3303
        %v3418 = vpop.f32.mrf.mxu0
        %v3419 = vadd.f32 0.0, %v3418
        %v3420 = vpop.f32.mrf.mxu0
        %3421 = vdwg.mxu0
        %3422 = vmatpush.bf16.msra.mxu0 %v1170
        %3423 = vmatpush.bf16.msra.mxu0 %v1162
        %3424 = vmatpush.bf16.msra.mxu0 %v1154
        %3425 = vmatpush.bf16.msra.mxu0 %v1146
        %3426 = vmatpush.bf16.msra.mxu0 %v1138
        %3427 = vmatpush.bf16.msra.mxu0 %v1130
        %3428 = vmatpush.bf16.msra.mxu0 %v1122
        %3429 = vmatpush.bf16.msra.mxu0 %v1114
        %3430 = vmatmul.bf16.gmra.mxu0 %v3304
        %v3431 = vpop.f32.mrf.mxu0
        %v3432 = vadd.f32 %v3419, %v3431
        %v3433 = vpop.f32.mrf.mxu0
        %3434 = vdwg.mxu0
        %3435 = vmatpush.bf16.msra.mxu0 %v1107
        %3436 = vmatpush.bf16.msra.mxu0 %v1099
        %3437 = vmatpush.bf16.msra.mxu0 %v1091
        %3438 = vmatpush.bf16.msra.mxu0 %v1083
        %3439 = vmatpush.bf16.msra.mxu0 %v1075
        %3440 = vmatpush.bf16.msra.mxu0 %v1067
        %3441 = vmatpush.bf16.msra.mxu0 %v1059
        %3442 = vmatpush.bf16.msra.mxu0 %v1051
        %3443 = vmatmul.bf16.gmra.mxu0 %v3303
        %v3444 = vpop.f32.mrf.mxu0
        %v3445 = vadd.f32 0.0, %v3444
        %v3446 = vpop.f32.mrf.mxu0
        %3447 = vdwg.mxu0
        %3448 = vmatpush.bf16.msra.mxu0 %v1171
        %3449 = vmatpush.bf16.msra.mxu0 %v1163
        %3450 = vmatpush.bf16.msra.mxu0 %v1155
        %3451 = vmatpush.bf16.msra.mxu0 %v1147
        %3452 = vmatpush.bf16.msra.mxu0 %v1139
        %3453 = vmatpush.bf16.msra.mxu0 %v1131
        %3454 = vmatpush.bf16.msra.mxu0 %v1123
        %3455 = vmatpush.bf16.msra.mxu0 %v1115
        %3456 = vmatmul.bf16.gmra.mxu0 %v3304
        %v3457 = vpop.f32.mrf.mxu0
        %v3458 = vadd.f32 %v3445, %v3457
        %v3459 = vpop.f32.mrf.mxu0
        %3460 = vdwg.mxu0
        %3461 = vmatpush.bf16.msra.mxu0 %v1108
        %3462 = vmatpush.bf16.msra.mxu0 %v1100
        %3463 = vmatpush.bf16.msra.mxu0 %v1092
        %3464 = vmatpush.bf16.msra.mxu0 %v1084
        %3465 = vmatpush.bf16.msra.mxu0 %v1076
        %3466 = vmatpush.bf16.msra.mxu0 %v1068
        %3467 = vmatpush.bf16.msra.mxu0 %v1060
        %3468 = vmatpush.bf16.msra.mxu0 %v1052
        %3469 = vmatmul.bf16.gmra.mxu0 %v3303
        %v3470 = vpop.f32.mrf.mxu0
        %v3471 = vadd.f32 0.0, %v3470
        %v3472 = vpop.f32.mrf.mxu0
        %3473 = vdwg.mxu0
        %3474 = vmatpush.bf16.msra.mxu0 %v1172
        %3475 = vmatpush.bf16.msra.mxu0 %v1164
        %3476 = vmatpush.bf16.msra.mxu0 %v1156
        %3477 = vmatpush.bf16.msra.mxu0 %v1148
        %3478 = vmatpush.bf16.msra.mxu0 %v1140
        %3479 = vmatpush.bf16.msra.mxu0 %v1132
        %3480 = vmatpush.bf16.msra.mxu0 %v1124
        %3481 = vmatpush.bf16.msra.mxu0 %v1116
        %3482 = vmatmul.bf16.gmra.mxu0 %v3304
        %v3483 = vpop.f32.mrf.mxu0
        %v3484 = vadd.f32 %v3471, %v3483
        %v3485 = vpop.f32.mrf.mxu0
        %3486 = vdwg.mxu0
        %3487 = vmatpush.bf16.msra.mxu0 %v1109
        %3488 = vmatpush.bf16.msra.mxu0 %v1101
        %3489 = vmatpush.bf16.msra.mxu0 %v1093
        %3490 = vmatpush.bf16.msra.mxu0 %v1085
        %3491 = vmatpush.bf16.msra.mxu0 %v1077
        %3492 = vmatpush.bf16.msra.mxu0 %v1069
        %3493 = vmatpush.bf16.msra.mxu0 %v1061
        %3494 = vmatpush.bf16.msra.mxu0 %v1053
        %3495 = vmatmul.bf16.gmra.mxu0 %v3303
        %v3496 = vpop.f32.mrf.mxu0
        %v3497 = vadd.f32 0.0, %v3496
        %v3498 = vpop.f32.mrf.mxu0
        %3499 = vdwg.mxu0
        %3500 = vmatpush.bf16.msra.mxu0 %v1173
        %3501 = vmatpush.bf16.msra.mxu0 %v1165
        %3502 = vmatpush.bf16.msra.mxu0 %v1157
        %3503 = vmatpush.bf16.msra.mxu0 %v1149
        %3504 = vmatpush.bf16.msra.mxu0 %v1141
        %3505 = vmatpush.bf16.msra.mxu0 %v1133
        %3506 = vmatpush.bf16.msra.mxu0 %v1125
        %3507 = vmatpush.bf16.msra.mxu0 %v1117
        %3508 = vmatmul.bf16.gmra.mxu0 %v3304
        %v3509 = vpop.f32.mrf.mxu0
        %v3510 = vadd.f32 %v3497, %v3509
        %v3511 = vpop.f32.mrf.mxu0
        %3512 = vdwg.mxu0
        %s3513 = scalar_lea.vmem %s419, 20 [#allocation3]
        %v3514 = vld [vmem:[%s3513] sm:$0xf]
        %v3515 = vunpack.c.l.bf16 %v3514
        %v3520 = vrot.slane %v3354, 6
        %v3521 = vrot.slane %v3380, 4
        %v3522 = vrot.slane %v3406, 2
        %v3523 = vsel %vm1519, %v3328, %v3520
        %v3524 = vsel %vm1521, %v3521, %v3522
        %v3525 = vsel %vm1523, %v3523, %v3524
        %v3527 = vadd.f32 %v3515, %v3525
        %s3528 = scalar_lea.vmem %s426, 8 [#allocation4]
        %v3529 = vld [vmem:[%s3528] sm:$0xf]
        %v3530 = vunpack.c.l.bf16 %v3529
        %v3535 = vrot.slane %v3458, 6
        %v3536 = vrot.slane %v3484, 4
        %v3537 = vrot.slane %v3510, 2
        %v3538 = vsel %vm1519, %v3432, %v3535
        %v3539 = vsel %vm1521, %v3536, %v3537
        %v3540 = vsel %vm1523, %v3538, %v3539
        %v3542 = vadd.f32 %v3530, %v3540
        %v3543 = vxor.u32 %v3527, 2147483648
        %v3544 = vmul.f32 %v3543, 1.442695
        %v3545 = vpow.pop %v3544
        %v3546 = vadd.f32 %v3545, 1.0
        %v3547 = vrcp.pop %v3546
        %v3548 = vmul.f32 %v3546, %v3547
        %v3549 = vsub.f32 1.0, %v3548
        %v3550 = vmul.f32 %v3547, %v3549
        %v3551 = vadd.f32 %v3547, %v3550
        %vm3552 = vweird.f32 %v3546
        %vm3553 = vweird.f32 %v3547
        %vm3554 = vmor %vm3552, %vm3553
        %v3555 = vsel %vm3554, %v3547, %v3551
        %v3556 = vand.u32 2147483647, %v3546
        %vm3557 = vcmp.eq.f32.partialorder %v3556, 8.507059e+37
        %v3558 = vand.u32 %v3546, 2147483648
        %v3559 = vor.u32 1.1754944e-38, %v3558
        %v3560 = vsel %vm3557, %v3559, %v3555
        %v3561 = vmul.f32 1.0, %v3560
        %v3563 = vrot.slane %v3527, 2
        %v3565 = vxor.u32 %v3563, 2147483648
        %v3566 = vmul.f32 %v3565, 1.442695
        %v3567 = vpow.pop %v3566
        %v3568 = vadd.f32 %v3567, 1.0
        %v3569 = vrcp.pop %v3568
        %v3570 = vmul.f32 %v3568, %v3569
        %v3571 = vsub.f32 1.0, %v3570
        %v3572 = vmul.f32 %v3569, %v3571
        %v3573 = vadd.f32 %v3569, %v3572
        %vm3574 = vweird.f32 %v3568
        %vm3575 = vweird.f32 %v3569
        %vm3576 = vmor %vm3574, %vm3575
        %v3577 = vsel %vm3576, %v3569, %v3573
        %v3578 = vand.u32 2147483647, %v3568
        %vm3579 = vcmp.eq.f32.partialorder %v3578, 8.507059e+37
        %v3580 = vand.u32 %v3568, 2147483648
        %v3581 = vor.u32 1.1754944e-38, %v3580
        %v3582 = vsel %vm3579, %v3581, %v3577
        %v3583 = vmul.f32 1.0, %v3582
        %v3584 = vrot.slane %v3527, 4
        %v3586 = vtanh.pop %v3584
        %v3587 = vrot.slane %v3527, 6
        %v3589 = vxor.u32 %v3587, 2147483648
        %v3590 = vmul.f32 %v3589, 1.442695
        %v3591 = vpow.pop %v3590
        %v3592 = vadd.f32 %v3591, 1.0
        %v3593 = vrcp.pop %v3592
        %v3594 = vmul.f32 %v3592, %v3593
        %v3595 = vsub.f32 1.0, %v3594
        %v3596 = vmul.f32 %v3593, %v3595
        %v3597 = vadd.f32 %v3593, %v3596
        %vm3598 = vweird.f32 %v3592
        %vm3599 = vweird.f32 %v3593
        %vm3600 = vmor %vm3598, %vm3599
        %v3601 = vsel %vm3600, %v3593, %v3597
        %v3602 = vand.u32 2147483647, %v3592
        %vm3603 = vcmp.eq.f32.partialorder %v3602, 8.507059e+37
        %v3604 = vand.u32 %v3592, 2147483648
        %v3605 = vor.u32 1.1754944e-38, %v3604
        %v3606 = vsel %vm3603, %v3605, %v3601
        %v3607 = vmul.f32 1.0, %v3606
        %v3608 = vmul.f32 %v3583, %v3301
        %v3609 = vmul.f32 %v3561, %v3586
        %v3610 = vadd.f32 %v3608, %v3609
        %v3611 = vtanh.pop %v3610
        %v3612 = vmul.f32 %v3607, %v3611
        %v3613 = vxor.u32 %v3542, 2147483648
        %v3614 = vmul.f32 %v3613, 1.442695
        %v3615 = vpow.pop %v3614
        %v3616 = vadd.f32 %v3615, 1.0
        %v3617 = vrcp.pop %v3616
        %v3618 = vmul.f32 %v3616, %v3617
        %v3619 = vsub.f32 1.0, %v3618
        %v3620 = vmul.f32 %v3617, %v3619
        %v3621 = vadd.f32 %v3617, %v3620
        %vm3622 = vweird.f32 %v3616
        %vm3623 = vweird.f32 %v3617
        %vm3624 = vmor %vm3622, %vm3623
        %v3625 = vsel %vm3624, %v3617, %v3621
        %v3626 = vand.u32 2147483647, %v3616
        %vm3627 = vcmp.eq.f32.partialorder %v3626, 8.507059e+37
        %v3628 = vand.u32 %v3616, 2147483648
        %v3629 = vor.u32 1.1754944e-38, %v3628
        %v3630 = vsel %vm3627, %v3629, %v3625
        %v3631 = vmul.f32 1.0, %v3630
        %v3633 = vrot.slane %v3542, 2
        %v3635 = vxor.u32 %v3633, 2147483648
        %v3636 = vmul.f32 %v3635, 1.442695
        %v3637 = vpow.pop %v3636
        %v3638 = vadd.f32 %v3637, 1.0
        %v3639 = vrcp.pop %v3638
        %v3640 = vmul.f32 %v3638, %v3639
        %v3641 = vsub.f32 1.0, %v3640
        %v3642 = vmul.f32 %v3639, %v3641
        %v3643 = vadd.f32 %v3639, %v3642
        %vm3644 = vweird.f32 %v3638
        %vm3645 = vweird.f32 %v3639
        %vm3646 = vmor %vm3644, %vm3645
        %v3647 = vsel %vm3646, %v3639, %v3643
        %v3648 = vand.u32 2147483647, %v3638
        %vm3649 = vcmp.eq.f32.partialorder %v3648, 8.507059e+37
        %v3650 = vand.u32 %v3638, 2147483648
        %v3651 = vor.u32 1.1754944e-38, %v3650
        %v3652 = vsel %vm3649, %v3651, %v3647
        %v3653 = vmul.f32 1.0, %v3652
        %v3654 = vrot.slane %v3542, 4
        %v3656 = vtanh.pop %v3654
        %v3657 = vrot.slane %v3542, 6
        %v3659 = vxor.u32 %v3657, 2147483648
        %v3660 = vmul.f32 %v3659, 1.442695
        %v3661 = vpow.pop %v3660
        %v3662 = vadd.f32 %v3661, 1.0
        %v3663 = vrcp.pop %v3662
        %v3664 = vmul.f32 %v3662, %v3663
        %v3665 = vsub.f32 1.0, %v3664
        %v3666 = vmul.f32 %v3663, %v3665
        %v3667 = vadd.f32 %v3663, %v3666
        %vm3668 = vweird.f32 %v3662
        %vm3669 = vweird.f32 %v3663
        %vm3670 = vmor %vm3668, %vm3669
        %v3671 = vsel %vm3670, %v3663, %v3667
        %v3672 = vand.u32 2147483647, %v3662
        %vm3673 = vcmp.eq.f32.partialorder %v3672, 8.507059e+37
        %v3674 = vand.u32 %v3662, 2147483648
        %v3675 = vor.u32 1.1754944e-38, %v3674
        %v3676 = vsel %vm3673, %v3675, %v3671
        %v3677 = vmul.f32 1.0, %v3676
        %v3678 = vmul.f32 %v3653, %v3302
        %v3679 = vmul.f32 %v3631, %v3656
        %v3680 = vadd.f32 %v3678, %v3679
        %v3681 = vtanh.pop %v3680
        %v3682 = vmul.f32 %v3677, %v3681
        %v3683 = vmul.u32 %v650, 5
        %v3684 = vmul.u32 %v651, 5
        %v3685 = vadd.s32 %v648, %v3683
        %v3686 = vadd.s32 %v649, %v3684
        %3687 = vst [vmem:[#allocation1] ss:$4 sm:$0xff] %v636
        %v3688 = vld.sshfl [vmem:[#allocation1] sm:$0xff pattern:$0x73625140]
        %v3689 = vld.sshfl [vmem:[#allocation1 + $0x8] sm:$0xff pattern:$0x73625140]
        %vm3690 = vcmp.lt.s32.totalorder %v3685, %v3688
        %vm3691 = vcmp.lt.s32.totalorder %v3686, %v3689
        %v3692 = vsel %vm3690, %v3612, 0.0
        %v3693 = vsel %vm3691, %v3682, 0.0
        %s3694 = scalar_lea.vmem %s489, 10
        %3695 = vst [vmem:[%s3694] sm:$0x3] %v3692
        %s3696 = scalar_lea.vmem %s499, 4
        %3697 = vst [vmem:[%s3696] sm:$0x3] %v3693
        %v3698 = vsel %vm3690, %v3612, %v3299
        %v3699 = vsel %vm3691, %v3682, %v3300
        %v3700 = vsel %vm3690, %v3610, %v3301
        %v3701 = vsel %vm3691, %v3680, %v3302
        %v3702 = vpack.c.bf16 %v3698, %v3698
        %v3703 = vpack.c.bf16 %v3699, %v3699
        %3704 = vmatpush.bf16.msra.mxu0 %v1102
        %3705 = vmatpush.bf16.msra.mxu0 %v1094
        %3706 = vmatpush.bf16.msra.mxu0 %v1086
        %3707 = vmatpush.bf16.msra.mxu0 %v1078
        %3708 = vmatpush.bf16.msra.mxu0 %v1070
        %3709 = vmatpush.bf16.msra.mxu0 %v1062
        %3710 = vmatpush.bf16.msra.mxu0 %v1054
        %3711 = vmatpush.bf16.msra.mxu0 %v1046
        %3712 = vmatmul.bf16.gmra.mxu0 %v3702
        %v3713 = vpop.f32.mrf.mxu0
        %v3714 = vadd.f32 0.0, %v3713
        %v3715 = vpop.f32.mrf.mxu0
        %3716 = vdwg.mxu0
        %3717 = vmatpush.bf16.msra.mxu0 %v1166
        %3718 = vmatpush.bf16.msra.mxu0 %v1158
        %3719 = vmatpush.bf16.msra.mxu0 %v1150
        %3720 = vmatpush.bf16.msra.mxu0 %v1142
        %3721 = vmatpush.bf16.msra.mxu0 %v1134
        %3722 = vmatpush.bf16.msra.mxu0 %v1126
        %3723 = vmatpush.bf16.msra.mxu0 %v1118
        %3724 = vmatpush.bf16.msra.mxu0 %v1110
        %3725 = vmatmul.bf16.gmra.mxu0 %v3703
        %v3726 = vpop.f32.mrf.mxu0
        %v3727 = vadd.f32 %v3714, %v3726
        %v3728 = vpop.f32.mrf.mxu0
        %3729 = vdwg.mxu0
        %3730 = vmatpush.bf16.msra.mxu0 %v1103
        %3731 = vmatpush.bf16.msra.mxu0 %v1095
        %3732 = vmatpush.bf16.msra.mxu0 %v1087
        %3733 = vmatpush.bf16.msra.mxu0 %v1079
        %3734 = vmatpush.bf16.msra.mxu0 %v1071
        %3735 = vmatpush.bf16.msra.mxu0 %v1063
        %3736 = vmatpush.bf16.msra.mxu0 %v1055
        %3737 = vmatpush.bf16.msra.mxu0 %v1047
        %3738 = vmatmul.bf16.gmra.mxu0 %v3702
        %v3739 = vpop.f32.mrf.mxu0
        %v3740 = vadd.f32 0.0, %v3739
        %v3741 = vpop.f32.mrf.mxu0
        %3742 = vdwg.mxu0
        %3743 = vmatpush.bf16.msra.mxu0 %v1167
        %3744 = vmatpush.bf16.msra.mxu0 %v1159
        %3745 = vmatpush.bf16.msra.mxu0 %v1151
        %3746 = vmatpush.bf16.msra.mxu0 %v1143
        %3747 = vmatpush.bf16.msra.mxu0 %v1135
        %3748 = vmatpush.bf16.msra.mxu0 %v1127
        %3749 = vmatpush.bf16.msra.mxu0 %v1119
        %3750 = vmatpush.bf16.msra.mxu0 %v1111
        %3751 = vmatmul.bf16.gmra.mxu0 %v3703
        %v3752 = vpop.f32.mrf.mxu0
        %v3753 = vadd.f32 %v3740, %v3752
        %v3754 = vpop.f32.mrf.mxu0
        %3755 = vdwg.mxu0
        %3756 = vmatpush.bf16.msra.mxu0 %v1104
        %3757 = vmatpush.bf16.msra.mxu0 %v1096
        %3758 = vmatpush.bf16.msra.mxu0 %v1088
        %3759 = vmatpush.bf16.msra.mxu0 %v1080
        %3760 = vmatpush.bf16.msra.mxu0 %v1072
        %3761 = vmatpush.bf16.msra.mxu0 %v1064
        %3762 = vmatpush.bf16.msra.mxu0 %v1056
        %3763 = vmatpush.bf16.msra.mxu0 %v1048
        %3764 = vmatmul.bf16.gmra.mxu0 %v3702
        %v3765 = vpop.f32.mrf.mxu0
        %v3766 = vadd.f32 0.0, %v3765
        %v3767 = vpop.f32.mrf.mxu0
        %3768 = vdwg.mxu0
        %3769 = vmatpush.bf16.msra.mxu0 %v1168
        %3770 = vmatpush.bf16.msra.mxu0 %v1160
        %3771 = vmatpush.bf16.msra.mxu0 %v1152
        %3772 = vmatpush.bf16.msra.mxu0 %v1144
        %3773 = vmatpush.bf16.msra.mxu0 %v1136
        %3774 = vmatpush.bf16.msra.mxu0 %v1128
        %3775 = vmatpush.bf16.msra.mxu0 %v1120
        %3776 = vmatpush.bf16.msra.mxu0 %v1112
        %3777 = vmatmul.bf16.gmra.mxu0 %v3703
        %v3778 = vpop.f32.mrf.mxu0
        %v3779 = vadd.f32 %v3766, %v3778
        %v3780 = vpop.f32.mrf.mxu0
        %3781 = vdwg.mxu0
        %3782 = vmatpush.bf16.msra.mxu0 %v1105
        %3783 = vmatpush.bf16.msra.mxu0 %v1097
        %3784 = vmatpush.bf16.msra.mxu0 %v1089
        %3785 = vmatpush.bf16.msra.mxu0 %v1081
        %3786 = vmatpush.bf16.msra.mxu0 %v1073
        %3787 = vmatpush.bf16.msra.mxu0 %v1065
        %3788 = vmatpush.bf16.msra.mxu0 %v1057
        %3789 = vmatpush.bf16.msra.mxu0 %v1049
        %3790 = vmatmul.bf16.gmra.mxu0 %v3702
        %v3791 = vpop.f32.mrf.mxu0
        %v3792 = vadd.f32 0.0, %v3791
        %v3793 = vpop.f32.mrf.mxu0
        %3794 = vdwg.mxu0
        %3795 = vmatpush.bf16.msra.mxu0 %v1169
        %3796 = vmatpush.bf16.msra.mxu0 %v1161
        %3797 = vmatpush.bf16.msra.mxu0 %v1153
        %3798 = vmatpush.bf16.msra.mxu0 %v1145
        %3799 = vmatpush.bf16.msra.mxu0 %v1137
        %3800 = vmatpush.bf16.msra.mxu0 %v1129
        %3801 = vmatpush.bf16.msra.mxu0 %v1121
        %3802 = vmatpush.bf16.msra.mxu0 %v1113
        %3803 = vmatmul.bf16.gmra.mxu0 %v3703
        %v3804 = vpop.f32.mrf.mxu0
        %v3805 = vadd.f32 %v3792, %v3804
        %v3806 = vpop.f32.mrf.mxu0
        %3807 = vdwg.mxu0
        %3808 = vmatpush.bf16.msra.mxu0 %v1106
        %3809 = vmatpush.bf16.msra.mxu0 %v1098
        %3810 = vmatpush.bf16.msra.mxu0 %v1090
        %3811 = vmatpush.bf16.msra.mxu0 %v1082
        %3812 = vmatpush.bf16.msra.mxu0 %v1074
        %3813 = vmatpush.bf16.msra.mxu0 %v1066
        %3814 = vmatpush.bf16.msra.mxu0 %v1058
        %3815 = vmatpush.bf16.msra.mxu0 %v1050
        %3816 = vmatmul.bf16.gmra.mxu0 %v3702
        %v3817 = vpop.f32.mrf.mxu0
        %v3818 = vadd.f32 0.0, %v3817
        %v3819 = vpop.f32.mrf.mxu0
        %3820 = vdwg.mxu0
        %3821 = vmatpush.bf16.msra.mxu0 %v1170
        %3822 = vmatpush.bf16.msra.mxu0 %v1162
        %3823 = vmatpush.bf16.msra.mxu0 %v1154
        %3824 = vmatpush.bf16.msra.mxu0 %v1146
        %3825 = vmatpush.bf16.msra.mxu0 %v1138
        %3826 = vmatpush.bf16.msra.mxu0 %v1130
        %3827 = vmatpush.bf16.msra.mxu0 %v1122
        %3828 = vmatpush.bf16.msra.mxu0 %v1114
        %3829 = vmatmul.bf16.gmra.mxu0 %v3703
        %v3830 = vpop.f32.mrf.mxu0
        %v3831 = vadd.f32 %v3818, %v3830
        %v3832 = vpop.f32.mrf.mxu0
        %3833 = vdwg.mxu0
        %3834 = vmatpush.bf16.msra.mxu0 %v1107
        %3835 = vmatpush.bf16.msra.mxu0 %v1099
        %3836 = vmatpush.bf16.msra.mxu0 %v1091
        %3837 = vmatpush.bf16.msra.mxu0 %v1083
        %3838 = vmatpush.bf16.msra.mxu0 %v1075
        %3839 = vmatpush.bf16.msra.mxu0 %v1067
        %3840 = vmatpush.bf16.msra.mxu0 %v1059
        %3841 = vmatpush.bf16.msra.mxu0 %v1051
        %3842 = vmatmul.bf16.gmra.mxu0 %v3702
        %v3843 = vpop.f32.mrf.mxu0
        %v3844 = vadd.f32 0.0, %v3843
        %v3845 = vpop.f32.mrf.mxu0
        %3846 = vdwg.mxu0
        %3847 = vmatpush.bf16.msra.mxu0 %v1171
        %3848 = vmatpush.bf16.msra.mxu0 %v1163
        %3849 = vmatpush.bf16.msra.mxu0 %v1155
        %3850 = vmatpush.bf16.msra.mxu0 %v1147
        %3851 = vmatpush.bf16.msra.mxu0 %v1139
        %3852 = vmatpush.bf16.msra.mxu0 %v1131
        %3853 = vmatpush.bf16.msra.mxu0 %v1123
        %3854 = vmatpush.bf16.msra.mxu0 %v1115
        %3855 = vmatmul.bf16.gmra.mxu0 %v3703
        %v3856 = vpop.f32.mrf.mxu0
        %v3857 = vadd.f32 %v3844, %v3856
        %v3858 = vpop.f32.mrf.mxu0
        %3859 = vdwg.mxu0
        %3860 = vmatpush.bf16.msra.mxu0 %v1108
        %3861 = vmatpush.bf16.msra.mxu0 %v1100
        %3862 = vmatpush.bf16.msra.mxu0 %v1092
        %3863 = vmatpush.bf16.msra.mxu0 %v1084
        %3864 = vmatpush.bf16.msra.mxu0 %v1076
        %3865 = vmatpush.bf16.msra.mxu0 %v1068
        %3866 = vmatpush.bf16.msra.mxu0 %v1060
        %3867 = vmatpush.bf16.msra.mxu0 %v1052
        %3868 = vmatmul.bf16.gmra.mxu0 %v3702
        %v3869 = vpop.f32.mrf.mxu0
        %v3870 = vadd.f32 0.0, %v3869
        %v3871 = vpop.f32.mrf.mxu0
        %3872 = vdwg.mxu0
        %3873 = vmatpush.bf16.msra.mxu0 %v1172
        %3874 = vmatpush.bf16.msra.mxu0 %v1164
        %3875 = vmatpush.bf16.msra.mxu0 %v1156
        %3876 = vmatpush.bf16.msra.mxu0 %v1148
        %3877 = vmatpush.bf16.msra.mxu0 %v1140
        %3878 = vmatpush.bf16.msra.mxu0 %v1132
        %3879 = vmatpush.bf16.msra.mxu0 %v1124
        %3880 = vmatpush.bf16.msra.mxu0 %v1116
        %3881 = vmatmul.bf16.gmra.mxu0 %v3703
        %v3882 = vpop.f32.mrf.mxu0
        %v3883 = vadd.f32 %v3870, %v3882
        %v3884 = vpop.f32.mrf.mxu0
        %3885 = vdwg.mxu0
        %3886 = vmatpush.bf16.msra.mxu0 %v1109
        %3887 = vmatpush.bf16.msra.mxu0 %v1101
        %3888 = vmatpush.bf16.msra.mxu0 %v1093
        %3889 = vmatpush.bf16.msra.mxu0 %v1085
        %3890 = vmatpush.bf16.msra.mxu0 %v1077
        %3891 = vmatpush.bf16.msra.mxu0 %v1069
        %3892 = vmatpush.bf16.msra.mxu0 %v1061
        %3893 = vmatpush.bf16.msra.mxu0 %v1053
        %3894 = vmatmul.bf16.gmra.mxu0 %v3702
        %v3895 = vpop.f32.mrf.mxu0
        %v3896 = vadd.f32 0.0, %v3895
        %v3897 = vpop.f32.mrf.mxu0
        %3898 = vdwg.mxu0
        %3899 = vmatpush.bf16.msra.mxu0 %v1173
        %3900 = vmatpush.bf16.msra.mxu0 %v1165
        %3901 = vmatpush.bf16.msra.mxu0 %v1157
        %3902 = vmatpush.bf16.msra.mxu0 %v1149
        %3903 = vmatpush.bf16.msra.mxu0 %v1141
        %3904 = vmatpush.bf16.msra.mxu0 %v1133
        %3905 = vmatpush.bf16.msra.mxu0 %v1125
        %3906 = vmatpush.bf16.msra.mxu0 %v1117
        %3907 = vmatmul.bf16.gmra.mxu0 %v3703
        %v3908 = vpop.f32.mrf.mxu0
        %v3909 = vadd.f32 %v3896, %v3908
        %v3910 = vpop.f32.mrf.mxu0
        %3911 = vdwg.mxu0
        %s3912 = scalar_lea.vmem %s419, 24 [#allocation3]
        %v3913 = vld [vmem:[%s3912] sm:$0xf]
        %v3914 = vunpack.c.l.bf16 %v3913
        %v3919 = vrot.slane %v3753, 6
        %v3920 = vrot.slane %v3779, 4
        %v3921 = vrot.slane %v3805, 2
        %v3922 = vsel %vm1519, %v3727, %v3919
        %v3923 = vsel %vm1521, %v3920, %v3921
        %v3924 = vsel %vm1523, %v3922, %v3923
        %v3926 = vadd.f32 %v3914, %v3924
        %s3927 = scalar_lea.vmem %s426, 4 [#allocation4]
        %v3928 = vld [vmem:[%s3927] sm:$0xf]
        %v3929 = vunpack.c.l.bf16 %v3928
        %v3934 = vrot.slane %v3857, 6
        %v3935 = vrot.slane %v3883, 4
        %v3936 = vrot.slane %v3909, 2
        %v3937 = vsel %vm1519, %v3831, %v3934
        %v3938 = vsel %vm1521, %v3935, %v3936
        %v3939 = vsel %vm1523, %v3937, %v3938
        %v3941 = vadd.f32 %v3929, %v3939
        %v3942 = vxor.u32 %v3926, 2147483648
        %v3943 = vmul.f32 %v3942, 1.442695
        %v3944 = vpow.pop %v3943
        %v3945 = vadd.f32 %v3944, 1.0
        %v3946 = vrcp.pop %v3945
        %v3947 = vmul.f32 %v3945, %v3946
        %v3948 = vsub.f32 1.0, %v3947
        %v3949 = vmul.f32 %v3946, %v3948
        %v3950 = vadd.f32 %v3946, %v3949
        %vm3951 = vweird.f32 %v3945
        %vm3952 = vweird.f32 %v3946
        %vm3953 = vmor %vm3951, %vm3952
        %v3954 = vsel %vm3953, %v3946, %v3950
        %v3955 = vand.u32 2147483647, %v3945
        %vm3956 = vcmp.eq.f32.partialorder %v3955, 8.507059e+37
        %v3957 = vand.u32 %v3945, 2147483648
        %v3958 = vor.u32 1.1754944e-38, %v3957
        %v3959 = vsel %vm3956, %v3958, %v3954
        %v3960 = vmul.f32 1.0, %v3959
        %v3962 = vrot.slane %v3926, 2
        %v3964 = vxor.u32 %v3962, 2147483648
        %v3965 = vmul.f32 %v3964, 1.442695
        %v3966 = vpow.pop %v3965
        %v3967 = vadd.f32 %v3966, 1.0
        %v3968 = vrcp.pop %v3967
        %v3969 = vmul.f32 %v3967, %v3968
        %v3970 = vsub.f32 1.0, %v3969
        %v3971 = vmul.f32 %v3968, %v3970
        %v3972 = vadd.f32 %v3968, %v3971
        %vm3973 = vweird.f32 %v3967
        %vm3974 = vweird.f32 %v3968
        %vm3975 = vmor %vm3973, %vm3974
        %v3976 = vsel %vm3975, %v3968, %v3972
        %v3977 = vand.u32 2147483647, %v3967
        %vm3978 = vcmp.eq.f32.partialorder %v3977, 8.507059e+37
        %v3979 = vand.u32 %v3967, 2147483648
        %v3980 = vor.u32 1.1754944e-38, %v3979
        %v3981 = vsel %vm3978, %v3980, %v3976
        %v3982 = vmul.f32 1.0, %v3981
        %v3983 = vrot.slane %v3926, 4
        %v3985 = vtanh.pop %v3983
        %v3986 = vrot.slane %v3926, 6
        %v3988 = vxor.u32 %v3986, 2147483648
        %v3989 = vmul.f32 %v3988, 1.442695
        %v3990 = vpow.pop %v3989
        %v3991 = vadd.f32 %v3990, 1.0
        %v3992 = vrcp.pop %v3991
        %v3993 = vmul.f32 %v3991, %v3992
        %v3994 = vsub.f32 1.0, %v3993
        %v3995 = vmul.f32 %v3992, %v3994
        %v3996 = vadd.f32 %v3992, %v3995
        %vm3997 = vweird.f32 %v3991
        %vm3998 = vweird.f32 %v3992
        %vm3999 = vmor %vm3997, %vm3998
        %v4000 = vsel %vm3999, %v3992, %v3996
        %v4001 = vand.u32 2147483647, %v3991
        %vm4002 = vcmp.eq.f32.partialorder %v4001, 8.507059e+37
        %v4003 = vand.u32 %v3991, 2147483648
        %v4004 = vor.u32 1.1754944e-38, %v4003
        %v4005 = vsel %vm4002, %v4004, %v4000
        %v4006 = vmul.f32 1.0, %v4005
        %v4007 = vmul.f32 %v3982, %v3700
        %v4008 = vmul.f32 %v3960, %v3985
        %v4009 = vadd.f32 %v4007, %v4008
        %v4010 = vtanh.pop %v4009
        %v4011 = vmul.f32 %v4006, %v4010
        %v4012 = vxor.u32 %v3941, 2147483648
        %v4013 = vmul.f32 %v4012, 1.442695
        %v4014 = vpow.pop %v4013
        %v4015 = vadd.f32 %v4014, 1.0
        %v4016 = vrcp.pop %v4015
        %v4017 = vmul.f32 %v4015, %v4016
        %v4018 = vsub.f32 1.0, %v4017
        %v4019 = vmul.f32 %v4016, %v4018
        %v4020 = vadd.f32 %v4016, %v4019
        %vm4021 = vweird.f32 %v4015
        %vm4022 = vweird.f32 %v4016
        %vm4023 = vmor %vm4021, %vm4022
        %v4024 = vsel %vm4023, %v4016, %v4020
        %v4025 = vand.u32 2147483647, %v4015
        %vm4026 = vcmp.eq.f32.partialorder %v4025, 8.507059e+37
        %v4027 = vand.u32 %v4015, 2147483648
        %v4028 = vor.u32 1.1754944e-38, %v4027
        %v4029 = vsel %vm4026, %v4028, %v4024
        %v4030 = vmul.f32 1.0, %v4029
        %v4032 = vrot.slane %v3941, 2
        %v4034 = vxor.u32 %v4032, 2147483648
        %v4035 = vmul.f32 %v4034, 1.442695
        %v4036 = vpow.pop %v4035
        %v4037 = vadd.f32 %v4036, 1.0
        %v4038 = vrcp.pop %v4037
        %v4039 = vmul.f32 %v4037, %v4038
        %v4040 = vsub.f32 1.0, %v4039
        %v4041 = vmul.f32 %v4038, %v4040
        %v4042 = vadd.f32 %v4038, %v4041
        %vm4043 = vweird.f32 %v4037
        %vm4044 = vweird.f32 %v4038
        %vm4045 = vmor %vm4043, %vm4044
        %v4046 = vsel %vm4045, %v4038, %v4042
        %v4047 = vand.u32 2147483647, %v4037
        %vm4048 = vcmp.eq.f32.partialorder %v4047, 8.507059e+37
        %v4049 = vand.u32 %v4037, 2147483648
        %v4050 = vor.u32 1.1754944e-38, %v4049
        %v4051 = vsel %vm4048, %v4050, %v4046
        %v4052 = vmul.f32 1.0, %v4051
        %v4053 = vrot.slane %v3941, 4
        %v4055 = vtanh.pop %v4053
        %v4056 = vrot.slane %v3941, 6
        %v4058 = vxor.u32 %v4056, 2147483648
        %v4059 = vmul.f32 %v4058, 1.442695
        %v4060 = vpow.pop %v4059
        %v4061 = vadd.f32 %v4060, 1.0
        %v4062 = vrcp.pop %v4061
        %v4063 = vmul.f32 %v4061, %v4062
        %v4064 = vsub.f32 1.0, %v4063
        %v4065 = vmul.f32 %v4062, %v4064
        %v4066 = vadd.f32 %v4062, %v4065
        %vm4067 = vweird.f32 %v4061
        %vm4068 = vweird.f32 %v4062
        %vm4069 = vmor %vm4067, %vm4068
        %v4070 = vsel %vm4069, %v4062, %v4066
        %v4071 = vand.u32 2147483647, %v4061
        %vm4072 = vcmp.eq.f32.partialorder %v4071, 8.507059e+37
        %v4073 = vand.u32 %v4061, 2147483648
        %v4074 = vor.u32 1.1754944e-38, %v4073
        %v4075 = vsel %vm4072, %v4074, %v4070
        %v4076 = vmul.f32 1.0, %v4075
        %v4077 = vmul.f32 %v4052, %v3701
        %v4078 = vmul.f32 %v4030, %v4055
        %v4079 = vadd.f32 %v4077, %v4078
        %v4080 = vtanh.pop %v4079
        %v4081 = vmul.f32 %v4076, %v4080
        %v4082 = vmul.u32 %v650, 6
        %v4083 = vmul.u32 %v651, 6
        %v4084 = vadd.s32 %v648, %v4082
        %v4085 = vadd.s32 %v649, %v4083
        %4086 = vst [vmem:[#allocation1] ss:$4 sm:$0xff] %v636
        %v4087 = vld.sshfl [vmem:[#allocation1] sm:$0xff pattern:$0x73625140]
        %v4088 = vld.sshfl [vmem:[#allocation1 + $0x8] sm:$0xff pattern:$0x73625140]
        %vm4089 = vcmp.lt.s32.totalorder %v4084, %v4087
        %vm4090 = vcmp.lt.s32.totalorder %v4085, %v4088
        %v4091 = vsel %vm4089, %v4011, 0.0
        %v4092 = vsel %vm4090, %v4081, 0.0
        %s4093 = scalar_lea.vmem %s489, 12
        %4094 = vst [vmem:[%s4093] sm:$0x3] %v4091
        %s4095 = scalar_lea.vmem %s499, 2
        %4096 = vst [vmem:[%s4095] sm:$0x3] %v4092
        %v4097 = vsel %vm4089, %v4011, %v3698
        %v4098 = vsel %vm4090, %v4081, %v3699
        %v4099 = vsel %vm4089, %v4009, %v3700
        %v4100 = vsel %vm4090, %v4079, %v3701
        %v4101 = vpack.c.bf16 %v4097, %v4097
        %v4102 = vpack.c.bf16 %v4098, %v4098
        %4103 = vmatpush.bf16.msra.mxu0 %v1102
        %4104 = vmatpush.bf16.msra.mxu0 %v1094
        %4105 = vmatpush.bf16.msra.mxu0 %v1086
        %4106 = vmatpush.bf16.msra.mxu0 %v1078
        %4107 = vmatpush.bf16.msra.mxu0 %v1070
        %4108 = vmatpush.bf16.msra.mxu0 %v1062
        %4109 = vmatpush.bf16.msra.mxu0 %v1054
        %4110 = vmatpush.bf16.msra.mxu0 %v1046
        %4111 = vmatmul.bf16.gmra.mxu0 %v4101
        %v4112 = vpop.f32.mrf.mxu0
        %v4113 = vadd.f32 0.0, %v4112
        %v4114 = vpop.f32.mrf.mxu0
        %4115 = vdwg.mxu0
        %4116 = vmatpush.bf16.msra.mxu0 %v1166
        %4117 = vmatpush.bf16.msra.mxu0 %v1158
        %4118 = vmatpush.bf16.msra.mxu0 %v1150
        %4119 = vmatpush.bf16.msra.mxu0 %v1142
        %4120 = vmatpush.bf16.msra.mxu0 %v1134
        %4121 = vmatpush.bf16.msra.mxu0 %v1126
        %4122 = vmatpush.bf16.msra.mxu0 %v1118
        %4123 = vmatpush.bf16.msra.mxu0 %v1110
        %4124 = vmatmul.bf16.gmra.mxu0 %v4102
        %v4125 = vpop.f32.mrf.mxu0
        %v4126 = vadd.f32 %v4113, %v4125
        %v4127 = vpop.f32.mrf.mxu0
        %4128 = vdwg.mxu0
        %4129 = vmatpush.bf16.msra.mxu0 %v1103
        %4130 = vmatpush.bf16.msra.mxu0 %v1095
        %4131 = vmatpush.bf16.msra.mxu0 %v1087
        %4132 = vmatpush.bf16.msra.mxu0 %v1079
        %4133 = vmatpush.bf16.msra.mxu0 %v1071
        %4134 = vmatpush.bf16.msra.mxu0 %v1063
        %4135 = vmatpush.bf16.msra.mxu0 %v1055
        %4136 = vmatpush.bf16.msra.mxu0 %v1047
        %4137 = vmatmul.bf16.gmra.mxu0 %v4101
        %v4138 = vpop.f32.mrf.mxu0
        %v4139 = vadd.f32 0.0, %v4138
        %v4140 = vpop.f32.mrf.mxu0
        %4141 = vdwg.mxu0
        %4142 = vmatpush.bf16.msra.mxu0 %v1167
        %4143 = vmatpush.bf16.msra.mxu0 %v1159
        %4144 = vmatpush.bf16.msra.mxu0 %v1151
        %4145 = vmatpush.bf16.msra.mxu0 %v1143
        %4146 = vmatpush.bf16.msra.mxu0 %v1135
        %4147 = vmatpush.bf16.msra.mxu0 %v1127
        %4148 = vmatpush.bf16.msra.mxu0 %v1119
        %4149 = vmatpush.bf16.msra.mxu0 %v1111
        %4150 = vmatmul.bf16.gmra.mxu0 %v4102
        %v4151 = vpop.f32.mrf.mxu0
        %v4152 = vadd.f32 %v4139, %v4151
        %v4153 = vpop.f32.mrf.mxu0
        %4154 = vdwg.mxu0
        %4155 = vmatpush.bf16.msra.mxu0 %v1104
        %4156 = vmatpush.bf16.msra.mxu0 %v1096
        %4157 = vmatpush.bf16.msra.mxu0 %v1088
        %4158 = vmatpush.bf16.msra.mxu0 %v1080
        %4159 = vmatpush.bf16.msra.mxu0 %v1072
        %4160 = vmatpush.bf16.msra.mxu0 %v1064
        %4161 = vmatpush.bf16.msra.mxu0 %v1056
        %4162 = vmatpush.bf16.msra.mxu0 %v1048
        %4163 = vmatmul.bf16.gmra.mxu0 %v4101
        %v4164 = vpop.f32.mrf.mxu0
        %v4165 = vadd.f32 0.0, %v4164
        %v4166 = vpop.f32.mrf.mxu0
        %4167 = vdwg.mxu0
        %4168 = vmatpush.bf16.msra.mxu0 %v1168
        %4169 = vmatpush.bf16.msra.mxu0 %v1160
        %4170 = vmatpush.bf16.msra.mxu0 %v1152
        %4171 = vmatpush.bf16.msra.mxu0 %v1144
        %4172 = vmatpush.bf16.msra.mxu0 %v1136
        %4173 = vmatpush.bf16.msra.mxu0 %v1128
        %4174 = vmatpush.bf16.msra.mxu0 %v1120
        %4175 = vmatpush.bf16.msra.mxu0 %v1112
        %4176 = vmatmul.bf16.gmra.mxu0 %v4102
        %v4177 = vpop.f32.mrf.mxu0
        %v4178 = vadd.f32 %v4165, %v4177
        %v4179 = vpop.f32.mrf.mxu0
        %4180 = vdwg.mxu0
        %4181 = vmatpush.bf16.msra.mxu0 %v1105
        %4182 = vmatpush.bf16.msra.mxu0 %v1097
        %4183 = vmatpush.bf16.msra.mxu0 %v1089
        %4184 = vmatpush.bf16.msra.mxu0 %v1081
        %4185 = vmatpush.bf16.msra.mxu0 %v1073
        %4186 = vmatpush.bf16.msra.mxu0 %v1065
        %4187 = vmatpush.bf16.msra.mxu0 %v1057
        %4188 = vmatpush.bf16.msra.mxu0 %v1049
        %4189 = vmatmul.bf16.gmra.mxu0 %v4101
        %v4190 = vpop.f32.mrf.mxu0
        %v4191 = vadd.f32 0.0, %v4190
        %v4192 = vpop.f32.mrf.mxu0
        %4193 = vdwg.mxu0
        %4194 = vmatpush.bf16.msra.mxu0 %v1169
        %4195 = vmatpush.bf16.msra.mxu0 %v1161
        %4196 = vmatpush.bf16.msra.mxu0 %v1153
        %4197 = vmatpush.bf16.msra.mxu0 %v1145
        %4198 = vmatpush.bf16.msra.mxu0 %v1137
        %4199 = vmatpush.bf16.msra.mxu0 %v1129
        %4200 = vmatpush.bf16.msra.mxu0 %v1121
        %4201 = vmatpush.bf16.msra.mxu0 %v1113
        %4202 = vmatmul.bf16.gmra.mxu0 %v4102
        %v4203 = vpop.f32.mrf.mxu0
        %v4204 = vadd.f32 %v4191, %v4203
        %v4205 = vpop.f32.mrf.mxu0
        %4206 = vdwg.mxu0
        %4207 = vmatpush.bf16.msra.mxu0 %v1106
        %4208 = vmatpush.bf16.msra.mxu0 %v1098
        %4209 = vmatpush.bf16.msra.mxu0 %v1090
        %4210 = vmatpush.bf16.msra.mxu0 %v1082
        %4211 = vmatpush.bf16.msra.mxu0 %v1074
        %4212 = vmatpush.bf16.msra.mxu0 %v1066
        %4213 = vmatpush.bf16.msra.mxu0 %v1058
        %4214 = vmatpush.bf16.msra.mxu0 %v1050
        %4215 = vmatmul.bf16.gmra.mxu0 %v4101
        %v4216 = vpop.f32.mrf.mxu0
        %v4217 = vadd.f32 0.0, %v4216
        %v4218 = vpop.f32.mrf.mxu0
        %4219 = vdwg.mxu0
        %4220 = vmatpush.bf16.msra.mxu0 %v1170
        %4221 = vmatpush.bf16.msra.mxu0 %v1162
        %4222 = vmatpush.bf16.msra.mxu0 %v1154
        %4223 = vmatpush.bf16.msra.mxu0 %v1146
        %4224 = vmatpush.bf16.msra.mxu0 %v1138
        %4225 = vmatpush.bf16.msra.mxu0 %v1130
        %4226 = vmatpush.bf16.msra.mxu0 %v1122
        %4227 = vmatpush.bf16.msra.mxu0 %v1114
        %4228 = vmatmul.bf16.gmra.mxu0 %v4102
        %v4229 = vpop.f32.mrf.mxu0
        %v4230 = vadd.f32 %v4217, %v4229
        %v4231 = vpop.f32.mrf.mxu0
        %4232 = vdwg.mxu0
        %4233 = vmatpush.bf16.msra.mxu0 %v1107
        %4234 = vmatpush.bf16.msra.mxu0 %v1099
        %4235 = vmatpush.bf16.msra.mxu0 %v1091
        %4236 = vmatpush.bf16.msra.mxu0 %v1083
        %4237 = vmatpush.bf16.msra.mxu0 %v1075
        %4238 = vmatpush.bf16.msra.mxu0 %v1067
        %4239 = vmatpush.bf16.msra.mxu0 %v1059
        %4240 = vmatpush.bf16.msra.mxu0 %v1051
        %4241 = vmatmul.bf16.gmra.mxu0 %v4101
        %v4242 = vpop.f32.mrf.mxu0
        %v4243 = vadd.f32 0.0, %v4242
        %v4244 = vpop.f32.mrf.mxu0
        %4245 = vdwg.mxu0
        %4246 = vmatpush.bf16.msra.mxu0 %v1171
        %4247 = vmatpush.bf16.msra.mxu0 %v1163
        %4248 = vmatpush.bf16.msra.mxu0 %v1155
        %4249 = vmatpush.bf16.msra.mxu0 %v1147
        %4250 = vmatpush.bf16.msra.mxu0 %v1139
        %4251 = vmatpush.bf16.msra.mxu0 %v1131
        %4252 = vmatpush.bf16.msra.mxu0 %v1123
        %4253 = vmatpush.bf16.msra.mxu0 %v1115
        %4254 = vmatmul.bf16.gmra.mxu0 %v4102
        %v4255 = vpop.f32.mrf.mxu0
        %v4256 = vadd.f32 %v4243, %v4255
        %v4257 = vpop.f32.mrf.mxu0
        %4258 = vdwg.mxu0
        %4259 = vmatpush.bf16.msra.mxu0 %v1108
        %4260 = vmatpush.bf16.msra.mxu0 %v1100
        %4261 = vmatpush.bf16.msra.mxu0 %v1092
        %4262 = vmatpush.bf16.msra.mxu0 %v1084
        %4263 = vmatpush.bf16.msra.mxu0 %v1076
        %4264 = vmatpush.bf16.msra.mxu0 %v1068
        %4265 = vmatpush.bf16.msra.mxu0 %v1060
        %4266 = vmatpush.bf16.msra.mxu0 %v1052
        %4267 = vmatmul.bf16.gmra.mxu0 %v4101
        %v4268 = vpop.f32.mrf.mxu0
        %v4269 = vadd.f32 0.0, %v4268
        %v4270 = vpop.f32.mrf.mxu0
        %4271 = vdwg.mxu0
        %4272 = vmatpush.bf16.msra.mxu0 %v1172
        %4273 = vmatpush.bf16.msra.mxu0 %v1164
        %4274 = vmatpush.bf16.msra.mxu0 %v1156
        %4275 = vmatpush.bf16.msra.mxu0 %v1148
        %4276 = vmatpush.bf16.msra.mxu0 %v1140
        %4277 = vmatpush.bf16.msra.mxu0 %v1132
        %4278 = vmatpush.bf16.msra.mxu0 %v1124
        %4279 = vmatpush.bf16.msra.mxu0 %v1116
        %4280 = vmatmul.bf16.gmra.mxu0 %v4102
        %v4281 = vpop.f32.mrf.mxu0
        %v4282 = vadd.f32 %v4269, %v4281
        %v4283 = vpop.f32.mrf.mxu0
        %4284 = vdwg.mxu0
        %4285 = vmatpush.bf16.msra.mxu0 %v1109
        %4286 = vmatpush.bf16.msra.mxu0 %v1101
        %4287 = vmatpush.bf16.msra.mxu0 %v1093
        %4288 = vmatpush.bf16.msra.mxu0 %v1085
        %4289 = vmatpush.bf16.msra.mxu0 %v1077
        %4290 = vmatpush.bf16.msra.mxu0 %v1069
        %4291 = vmatpush.bf16.msra.mxu0 %v1061
        %4292 = vmatpush.bf16.msra.mxu0 %v1053
        %4293 = vmatmul.bf16.gmra.mxu0 %v4101
        %v4294 = vpop.f32.mrf.mxu0
        %v4295 = vadd.f32 0.0, %v4294
        %v4296 = vpop.f32.mrf.mxu0
        %4297 = vdwg.mxu0
        %4298 = vmatpush.bf16.msra.mxu0 %v1173
        %4299 = vmatpush.bf16.msra.mxu0 %v1165
        %4300 = vmatpush.bf16.msra.mxu0 %v1157
        %4301 = vmatpush.bf16.msra.mxu0 %v1149
        %4302 = vmatpush.bf16.msra.mxu0 %v1141
        %4303 = vmatpush.bf16.msra.mxu0 %v1133
        %4304 = vmatpush.bf16.msra.mxu0 %v1125
        %4305 = vmatpush.bf16.msra.mxu0 %v1117
        %4306 = vmatmul.bf16.gmra.mxu0 %v4102
        %v4307 = vpop.f32.mrf.mxu0
        %v4308 = vadd.f32 %v4295, %v4307
        %v4309 = vpop.f32.mrf.mxu0
        %4310 = vdwg.mxu0
        %s4311 = scalar_lea.vmem %s419, 28 [#allocation3]
        %v4312 = vld [vmem:[%s4311] sm:$0xf]
        %v4313 = vunpack.c.l.bf16 %v4312
        %v4318 = vrot.slane %v4152, 6
        %v4319 = vrot.slane %v4178, 4
        %v4320 = vrot.slane %v4204, 2
        %v4321 = vsel %vm1519, %v4126, %v4318
        %v4322 = vsel %vm1521, %v4319, %v4320
        %v4323 = vsel %vm1523, %v4321, %v4322
        %v4325 = vadd.f32 %v4313, %v4323
        %v4326 = vld [vmem:[%s426] sm:$0xf]
        %v4327 = vunpack.c.l.bf16 %v4326
        %v4332 = vrot.slane %v4256, 6
        %v4333 = vrot.slane %v4282, 4
        %v4334 = vrot.slane %v4308, 2
        %v4335 = vsel %vm1519, %v4230, %v4332
        %v4336 = vsel %vm1521, %v4333, %v4334
        %v4337 = vsel %vm1523, %v4335, %v4336
        %v4339 = vadd.f32 %v4327, %v4337
        %v4340 = vxor.u32 %v4325, 2147483648
        %v4341 = vmul.f32 %v4340, 1.442695
        %v4342 = vpow.pop %v4341
        %v4343 = vadd.f32 %v4342, 1.0
        %v4344 = vrcp.pop %v4343
        %v4345 = vmul.f32 %v4343, %v4344
        %v4346 = vsub.f32 1.0, %v4345
        %v4347 = vmul.f32 %v4344, %v4346
        %v4348 = vadd.f32 %v4344, %v4347
        %vm4349 = vweird.f32 %v4343
        %vm4350 = vweird.f32 %v4344
        %vm4351 = vmor %vm4349, %vm4350
        %v4352 = vsel %vm4351, %v4344, %v4348
        %v4353 = vand.u32 2147483647, %v4343
        %vm4354 = vcmp.eq.f32.partialorder %v4353, 8.507059e+37
        %v4355 = vand.u32 %v4343, 2147483648
        %v4356 = vor.u32 1.1754944e-38, %v4355
        %v4357 = vsel %vm4354, %v4356, %v4352
        %v4358 = vmul.f32 1.0, %v4357
        %v4360 = vrot.slane %v4325, 2
        %v4362 = vxor.u32 %v4360, 2147483648
        %v4363 = vmul.f32 %v4362, 1.442695
        %v4364 = vpow.pop %v4363
        %v4365 = vadd.f32 %v4364, 1.0
        %v4366 = vrcp.pop %v4365
        %v4367 = vmul.f32 %v4365, %v4366
        %v4368 = vsub.f32 1.0, %v4367
        %v4369 = vmul.f32 %v4366, %v4368
        %v4370 = vadd.f32 %v4366, %v4369
        %vm4371 = vweird.f32 %v4365
        %vm4372 = vweird.f32 %v4366
        %vm4373 = vmor %vm4371, %vm4372
        %v4374 = vsel %vm4373, %v4366, %v4370
        %v4375 = vand.u32 2147483647, %v4365
        %vm4376 = vcmp.eq.f32.partialorder %v4375, 8.507059e+37
        %v4377 = vand.u32 %v4365, 2147483648
        %v4378 = vor.u32 1.1754944e-38, %v4377
        %v4379 = vsel %vm4376, %v4378, %v4374
        %v4380 = vmul.f32 1.0, %v4379
        %v4381 = vrot.slane %v4325, 4
        %v4383 = vtanh.pop %v4381
        %v4384 = vrot.slane %v4325, 6
        %v4386 = vxor.u32 %v4384, 2147483648
        %v4387 = vmul.f32 %v4386, 1.442695
        %v4388 = vpow.pop %v4387
        %v4389 = vadd.f32 %v4388, 1.0
        %v4390 = vrcp.pop %v4389
        %v4391 = vmul.f32 %v4389, %v4390
        %v4392 = vsub.f32 1.0, %v4391
        %v4393 = vmul.f32 %v4390, %v4392
        %v4394 = vadd.f32 %v4390, %v4393
        %vm4395 = vweird.f32 %v4389
        %vm4396 = vweird.f32 %v4390
        %vm4397 = vmor %vm4395, %vm4396
        %v4398 = vsel %vm4397, %v4390, %v4394
        %v4399 = vand.u32 2147483647, %v4389
        %vm4400 = vcmp.eq.f32.partialorder %v4399, 8.507059e+37
        %v4401 = vand.u32 %v4389, 2147483648
        %v4402 = vor.u32 1.1754944e-38, %v4401
        %v4403 = vsel %vm4400, %v4402, %v4398
        %v4404 = vmul.f32 1.0, %v4403
        %v4405 = vmul.f32 %v4380, %v4099
        %v4406 = vmul.f32 %v4358, %v4383
        %v4407 = vadd.f32 %v4405, %v4406
        %v4408 = vtanh.pop %v4407
        %v4409 = vmul.f32 %v4404, %v4408
        %v4410 = vxor.u32 %v4339, 2147483648
        %v4411 = vmul.f32 %v4410, 1.442695
        %v4412 = vpow.pop %v4411
        %v4413 = vadd.f32 %v4412, 1.0
        %v4414 = vrcp.pop %v4413
        %v4415 = vmul.f32 %v4413, %v4414
        %v4416 = vsub.f32 1.0, %v4415
        %v4417 = vmul.f32 %v4414, %v4416
        %v4418 = vadd.f32 %v4414, %v4417
        %vm4419 = vweird.f32 %v4413
        %vm4420 = vweird.f32 %v4414
        %vm4421 = vmor %vm4419, %vm4420
        %v4422 = vsel %vm4421, %v4414, %v4418
        %v4423 = vand.u32 2147483647, %v4413
        %vm4424 = vcmp.eq.f32.partialorder %v4423, 8.507059e+37
        %v4425 = vand.u32 %v4413, 2147483648
        %v4426 = vor.u32 1.1754944e-38, %v4425
        %v4427 = vsel %vm4424, %v4426, %v4422
        %v4428 = vmul.f32 1.0, %v4427
        %v4430 = vrot.slane %v4339, 2
        %v4432 = vxor.u32 %v4430, 2147483648
        %v4433 = vmul.f32 %v4432, 1.442695
        %v4434 = vpow.pop %v4433
        %v4435 = vadd.f32 %v4434, 1.0
        %v4436 = vrcp.pop %v4435
        %v4437 = vmul.f32 %v4435, %v4436
        %v4438 = vsub.f32 1.0, %v4437
        %v4439 = vmul.f32 %v4436, %v4438
        %v4440 = vadd.f32 %v4436, %v4439
        %vm4441 = vweird.f32 %v4435
        %vm4442 = vweird.f32 %v4436
        %vm4443 = vmor %vm4441, %vm4442
        %v4444 = vsel %vm4443, %v4436, %v4440
        %v4445 = vand.u32 2147483647, %v4435
        %vm4446 = vcmp.eq.f32.partialorder %v4445, 8.507059e+37
        %v4447 = vand.u32 %v4435, 2147483648
        %v4448 = vor.u32 1.1754944e-38, %v4447
        %v4449 = vsel %vm4446, %v4448, %v4444
        %v4450 = vmul.f32 1.0, %v4449
        %v4451 = vrot.slane %v4339, 4
        %v4453 = vtanh.pop %v4451
        %v4454 = vrot.slane %v4339, 6
        %v4456 = vxor.u32 %v4454, 2147483648
        %v4457 = vmul.f32 %v4456, 1.442695
        %v4458 = vpow.pop %v4457
        %v4459 = vadd.f32 %v4458, 1.0
        %v4460 = vrcp.pop %v4459
        %v4461 = vmul.f32 %v4459, %v4460
        %v4462 = vsub.f32 1.0, %v4461
        %v4463 = vmul.f32 %v4460, %v4462
        %v4464 = vadd.f32 %v4460, %v4463
        %vm4465 = vweird.f32 %v4459
        %vm4466 = vweird.f32 %v4460
        %vm4467 = vmor %vm4465, %vm4466
        %v4468 = vsel %vm4467, %v4460, %v4464
        %v4469 = vand.u32 2147483647, %v4459
        %vm4470 = vcmp.eq.f32.partialorder %v4469, 8.507059e+37
        %v4471 = vand.u32 %v4459, 2147483648
        %v4472 = vor.u32 1.1754944e-38, %v4471
        %v4473 = vsel %vm4470, %v4472, %v4468
        %v4474 = vmul.f32 1.0, %v4473
        %v4475 = vmul.f32 %v4450, %v4100
        %v4476 = vmul.f32 %v4428, %v4453
        %v4477 = vadd.f32 %v4475, %v4476
        %v4478 = vtanh.pop %v4477
        %v4479 = vmul.f32 %v4474, %v4478
        %v4480 = vmul.u32 %v650, 7
        %v4481 = vmul.u32 %v651, 7
        %v4482 = vadd.s32 %v648, %v4480
        %v4483 = vadd.s32 %v649, %v4481
        %4484 = vst [vmem:[#allocation1] ss:$4 sm:$0xff] %v636
        %v4485 = vld.sshfl [vmem:[#allocation1] sm:$0xff pattern:$0x73625140]
        %v4486 = vld.sshfl [vmem:[#allocation1 + $0x8] sm:$0xff pattern:$0x73625140]
        %vm4487 = vcmp.lt.s32.totalorder %v4482, %v4485
        %vm4488 = vcmp.lt.s32.totalorder %v4483, %v4486
        %v4489 = vsel %vm4487, %v4409, 0.0
        %v4490 = vsel %vm4488, %v4479, 0.0
        %s4491 = scalar_lea.vmem %s489, 14
        %4492 = vst [vmem:[%s4491] sm:$0x3] %v4489
        %4493 = vst [vmem:[%s499] sm:$0x3] %v4490
        %v4494 = vsel %vm4487, %v4409, %v4097
        %v4495 = vsel %vm4488, %v4479, %v4098
        %v4496 = vsel %vm4487, %v4407, %v4099
        %v4497 = vsel %vm4488, %v4477, %v4100
        %v4500 = vrot.slane %v4495, 6
        %v4501 = vsel %vm1519, %v4494, %v4500
        %4503 = vst [vmem:[#allocation5] sm:$0xf] %v4501
        %v4506 = vrot.slane %v4497, 6
        %v4507 = vsel %vm1519, %v4496, %v4506
        %4509 = vst [vmem:[#allocation2] sm:$0xf] %v4507
        %s4510 = smul.u32 8, %s24
        %p4511 = scmp.lt.s32.totalorder %s4510, 23
        %s4512 = scalar_select %p4511, %s4510, 23
        %p4513 = scmp.lt.s32.totalorder %s23, 0
        %s4514 = scalar_select %p4513, %s23, 0
        %s4515 = sadd.s32 %s4514, %s4512
        %s4516 = smul.addr %s4515, 2
        %s4517 = scalar_lea.vmem %s4, %s4516
        %s4518 = ssub.s32 2, %s24
        %s4519 = smul.u32 8, %s4518
        %p4520 = scmp.lt.s32.totalorder %s4519, 23
        %s4521 = scalar_select %p4520, %s4519, 23
        %p4522 = scmp.lt.s32.totalorder %s23, 0
        %s4523 = scalar_select %p4522, %s23, 0
        %s4524 = sadd.s32 %s4523, %s4521
        %s4525 = smul.addr %s4524, 2
        %s4526 = scalar_lea.vmem %s5, %s4525
        // Predicated region
        $region123: #{encoder_forward.1} parent=109 // pred_check
          %p4527 = pneg %p156
        $region124: #{encoder_forward.1} parent=109 // pred_check_branch
          %4529 = sbr.rel (%p4527) target = $region126
        $region125: #{encoder_forward.1} parent=109 // pred_region
          %s4530 = smul.u32 8, %s24
        $region126: #{encoder_forward.1} parent=109 // pred_fallthru
          _
        // Predicated region
        $region127: #{encoder_forward.1} parent=109 // pred_check
          %p4531 = pneg %p186
        $region128: #{encoder_forward.1} parent=109 // pred_check_branch
          %4533 = sbr.rel (%p4531) target = $region130
        $region129: #{encoder_forward.1} parent=109 // pred_region
          %s4534 = ssub.s32 2, %s24
          %s4535 = smul.u32 8, %s4534
        $region130: #{encoder_forward.1} parent=109 // pred_fallthru
          _
        // Predicated region
        $region131: #{encoder_forward.1} parent=109 // pred_check
          %p4536 = pneg %p212
        $region132: #{encoder_forward.1} parent=109 // pred_check_branch
          %4538 = sbr.rel (%p4536) target = $region134
        $region133: #{encoder_forward.1} parent=109 // pred_region
          %4540 = vsyncadd [#allocation6], 0
          %s4541 = smul.addr %s23, 2
          %s4542 = smul.addr %s4541, 2
          %s4543 = scalar_lea.hbm %s6, %s4542
          %s4545 = sshll.u32 [#allocation5], 4
          %s4546 = int_to_ptr.vmem [resolvable:$true] %s4545
          %s4547 = sshll.u32 %s4543, 4
          %s4548 = int_to_ptr.hbm [resolvable:$true] %s4547
          %4550 = dma.vmem_to_hbm [thread:$0]  %s4546, 64, %s4548, [#allocation6]
        $region134: #{encoder_forward.1} parent=109 // pred_fallthru
          _
        // Predicated region
        $region135: #{encoder_forward.1} parent=109 // pred_check
          %p4551 = pneg %p212
        $region136: #{encoder_forward.1} parent=109 // pred_check_branch
          %4553 = sbr.rel (%p4551) target = $region138
        $region137: #{encoder_forward.1} parent=109 // pred_region
          %4555 = dma.done [#allocation6], 64
        $region138: #{encoder_forward.1} parent=109 // pred_fallthru
          _
      $region110: #{encoder_forward.1} parent=5 // pred_fallthru
        _
      %p4556 = scmp.le.s32.totalorder 2, %s14
      // Predicated region
      $region139: #{encoder_forward.1} parent=5 // pred_check
        %p4557 = pneg %p4556
      $region140: #{encoder_forward.1} parent=5 // pred_check_branch
        %4559 = sbr.rel (%p4557) target = $region142
      $region141: #{encoder_forward.1} parent=5 // pred_region
        %s4560 = ssub.s32 %s14, 2
        // Predicated region
        $region143: #{encoder_forward.1} parent=141 // pred_check
          %p4561 = pneg %p162
        $region144: #{encoder_forward.1} parent=141 // pred_check_branch
          %4563 = sbr.rel (%p4561) target = $region146
        $region145: #{encoder_forward.1} parent=141 // pred_region
          %s4564 = smul.u32 8, %s26
          %p4565 = scmp.lt.s32.totalorder %s4564, 23
          %s4566 = scalar_select %p4565, %s4564, 23
          %p4567 = scmp.lt.s32.totalorder %s25, 0
          %s4568 = scalar_select %p4567, %s25, 0
          %s4569 = sadd.s32 %s4568, %s4566
          %s4570 = smul.addr %s4569, 2
          %s4571 = scalar_lea.vmem %s4, %s4570
        $region146: #{encoder_forward.1} parent=141 // pred_fallthru
          _
        // Predicated region
        $region147: #{encoder_forward.1} parent=141 // pred_check
          %p4572 = pneg %p192
        $region148: #{encoder_forward.1} parent=141 // pred_check_branch
          %4574 = sbr.rel (%p4572) target = $region150
        $region149: #{encoder_forward.1} parent=141 // pred_region
          %s4575 = ssub.s32 2, %s26
          %s4576 = smul.u32 8, %s4575
          %p4577 = scmp.lt.s32.totalorder %s4576, 23
          %s4578 = scalar_select %p4577, %s4576, 23
          %p4579 = scmp.lt.s32.totalorder %s25, 0
          %s4580 = scalar_select %p4579, %s25, 0
          %s4581 = sadd.s32 %s4580, %s4578
          %s4582 = smul.addr %s4581, 2
          %s4583 = scalar_lea.vmem %s5, %s4582
        $region150: #{encoder_forward.1} parent=141 // pred_fallthru
          _
      $region142: #{encoder_forward.1} parent=5 // pred_fallthru
        _
    $region6: #{encoder_forward.1} parent=1 // loop_footer
      %s18 = sadd.s32 1, %s14
    $region7: #{encoder_forward.1} parent=1 // loop_footer_branch
      %13 = sbr.rel target = $region3
    $region8: #{encoder_forward.1} parent=1 // loop_exit
      _
    %4584 = vsyncpa [#allocation6], 1
    %s4585 = scalar_lea.sflag [#allocation6], 1
    %4586 = vsyncpa %s4585, 1

</llo_original>
